<compile_context>
chip_gen: v6e
topology: v6e:2x2x1
jax: 0.10.0
libtpu: 0.0.40
codegen_flags: <defaults>
</compile_context>

<pallas_src>
import functools
import math

import jax
import jax.numpy as jnp
from jax.experimental import pallas as pl
from jax.experimental.pallas import tpu as pltpu

BN_EPS = 1e-5
LANE = 128                       # channel padding -> lane-dense vector stores


def _make_divisible(v, divisor, min_value=None):
    if min_value is None:
        min_value = divisor
    new_v = max(min_value, int(v + divisor / 2) // divisor * divisor)
    if new_v < 0.9 * v:
        new_v += divisor
    return new_v


def _round_up(v, m):
    return ((v + m - 1) // m) * m


def _pad_to(a, axis, size):
    pad = size - a.shape[axis]
    if pad == 0:
        return a
    widths = [(0, 0)] * a.ndim
    widths[axis] = (0, pad)
    return jnp.pad(a, widths)


# --------------------------------------------------------------------------
# Generation-dependent VMEM budget / default tile sizes
# --------------------------------------------------------------------------
def _vmem_limit_bytes():
    try:
        cap = int(getattr(pltpu.get_tpu_info(), "vmem_capacity_bytes", 0) or 0)
        if cap > 0:
            # ~48 MiB on v7x (64 MiB physical), ~96 MiB on v5e/v6e (128 MiB).
            return max(32 << 20, min(100 << 20, (cap * 3) // 4))
    except Exception:
        pass
    return 48 << 20


_VMEM_LIMIT = _vmem_limit_bytes()
_DEFAULT_TM = 2048 if _VMEM_LIMIT >= (80 << 20) else 1024


def _cparams(dimension_semantics):
    return pltpu.CompilerParams(dimension_semantics=dimension_semantics,
                                vmem_limit_bytes=_VMEM_LIMIT)


_VMEM_SPEC = pl.BlockSpec(memory_space=pltpu.MemorySpace.VMEM)


# --------------------------------------------------------------------------
# In-kernel math helpers
# --------------------------------------------------------------------------
_INV_SQRT2 = 1.0 / math.sqrt(2.0)


def _erf(x):
    # Abramowitz & Stegun 7.1.26 polynomial (|err| < 1.5e-7); exp and the
    # approx reciprocal both go to the EUP slot, keeping the VALU/MXU free.
    a1, a2, a3, a4, a5 = (0.254829592, -0.284496736, 1.421413741,
                          -1.453152027, 1.061405429)
    p = 0.3275911
    s = jnp.where(x >= 0.0, 1.0, -1.0)
    z = jnp.abs(x)
    t = pl.reciprocal(1.0 + p * z, approx=True)
    poly = ((((a5 * t + a4) * t + a3) * t + a2) * t + a1) * t
    return s * (1.0 - poly * jnp.exp(-z * z))


def _gelu(x):
    # Exact (erf-based) GELU semantics, matching torch.nn.GELU default.
    return 0.5 * x * (1.0 + _erf(x * _INV_SQRT2))


# --------------------------------------------------------------------------
# Pallas kernels
# --------------------------------------------------------------------------
def _mm_kernel(x_ref, w_ref, b_ref, o_ref, *, apply_gelu):
    """Single-K-step matmul tile: y = x @ w + b (+ GELU). bf16 in, bf16 out."""
    acc = jnp.dot(x_ref[...], w_ref[...],
                  preferred_element_type=jnp.float32) + b_ref[...]
    if apply_gelu:
        acc = _gelu(acc)
    o_ref[...] = acc.astype(o_ref.dtype)


def _mm_acc_kernel(x_ref, w_ref, b_ref, o_ref, acc_ref, *, apply_gelu):
    """K-accumulating matmul tile (f32 VMEM scratch, pl.when init/finalize)."""
    k = pl.program_id(2)

    @pl.when(k == 0)
    def _():
        acc_ref[...] = jnp.zeros_like(acc_ref)

    acc_ref[...] += jnp.dot(x_ref[...], w_ref[...],
                            preferred_element_type=jnp.float32)

    @pl.when(k == pl.num_programs(2) - 1)
    def _():
        acc = acc_ref[...] + b_ref[...]
        if apply_gelu:
            acc = _gelu(acc)
        o_ref[...] = acc.astype(o_ref.dtype)


def _mixer_kernel(x_ref, w1_ref, b1_ref, w2_ref, b2_ref, o_ref):
    """Fused Residual(1x1 -> GELU -> 1x1): hidden activation never leaves VMEM."""
    x = x_ref[...]                                                   # (tm, C) bf16
    h = jnp.dot(x, w1_ref[...], preferred_element_type=jnp.float32) + b1_ref[...]
    h = _gelu(h)
    y = jnp.dot(h.astype(jnp.bfloat16), w2_ref[...],
                preferred_element_type=jnp.float32) + b2_ref[...]
    o_ref[...] = (x.astype(jnp.float32) + y).astype(o_ref.dtype)     # f32 residual


def _pw_mixer_kernel(x_ref, wp_ref, bp_ref, w1_ref, b1_ref, w2_ref, b2_ref, o_ref):
    """Fused stride-2 channel path: 1x1 pw conv -> Residual(1x1 -> GELU -> 1x1).

    The pw output (the residual base) and the 2*C hidden stay in VMEM."""
    y = jnp.dot(x_ref[...], wp_ref[...],
                preferred_element_type=jnp.float32) + bp_ref[...]
    h = jnp.dot(y.astype(jnp.bfloat16), w1_ref[...],
                preferred_element_type=jnp.float32) + b1_ref[...]
    h = _gelu(h)
    z = jnp.dot(h.astype(jnp.bfloat16), w2_ref[...],
                preferred_element_type=jnp.float32) + b2_ref[...]
    o_ref[...] = (y + z).astype(o_ref.dtype)


def _dw3x3_s1_kernel(x_ref, w_ref, b_ref, o_ref):
    # x_ref: (1, H+2, W+2, 128) zero-padded bf16 tile; 9 shifted MACs in f32.
    x = x_ref[...]
    ho = x.shape[1] - 2
    wo = x.shape[2] - 2
    acc = jnp.zeros((1, ho, wo, x.shape[3]), jnp.float32)
    for kh in range(3):
        for kw in range(3):
            acc = acc + (x[:, kh:kh + ho, kw:kw + wo, :].astype(jnp.float32)
                         * w_ref[kh, kw, :])
    o_ref[...] = (acc + b_ref[0]).astype(o_ref.dtype)


def _dw3x3_s2_kernel(p00_ref, p01_ref, p10_ref, p11_ref, w_ref, b_ref, o_ref):
    # Direct stride-2 depthwise conv on 4 phase tensors: only the needed
    # output positions are computed (no 4x waste, no ::2 slicing pass).
    ho, wo = o_ref.shape[1], o_ref.shape[2]
    phases = ((p00_ref[...], p01_ref[...]), (p10_ref[...], p11_ref[...]))
    acc = jnp.zeros((1, ho, wo, o_ref.shape[3]), jnp.float32)
    for kh in range(3):
        for kw in range(3):
            ph = phases[kh % 2][kw % 2]
            r0, c0 = kh // 2, kw // 2
            acc = acc + (ph[:, r0:r0 + ho, c0:c0 + wo, :].astype(jnp.float32)
                         * w_ref[kh, kw, :])
    o_ref[...] = (acc + b_ref[0]).astype(o_ref.dtype)


def _pool_fc_kernel(x_ref, w_ref, b_ref, o_ref):
    # adaptive_avg_pool2d(x, 1) + fused BN_Linear classifier in one kernel.
    pooled = jnp.mean(x_ref[...].astype(jnp.float32), axis=1)        # (N, C)
    o_ref[...] = jnp.dot(pooled.astype(jnp.bfloat16), w_ref[...],
                         preferred_element_type=jnp.float32) + b_ref[...]


# --------------------------------------------------------------------------
# Kernel wrappers
# --------------------------------------------------------------------------
def matmul_bias(x, w, b, *, gelu=False, out_dtype=jnp.bfloat16,
                tm=None, tn=256, tk=512, single_k_max=2048):
    """y = x @ w + b (optional fused GELU).  bf16 MXU operands, f32 accumulate.

    If the padded K fits in one tile (true for every layer in this network),
    use the scratch-free single-step kernel; otherwise accumulate over a K
    grid axis in a f32 VMEM scratch."""
    m, k = x.shape
    k2, n = w.shape
    assert k == k2
    tm = _DEFAULT_TM if tm is None else tm
    tm = min(tm, _round_up(m, 8))
    tn = min(tn, _round_up(n, LANE))
    kp_full = _round_up(k, LANE)
    single_k = kp_full <= single_k_max
    tk = kp_full if single_k else min(tk, kp_full)
    mp, np_, kp = _round_up(m, tm), _round_up(n, tn), _round_up(k, tk)

    x = x.astype(jnp.bfloat16)
    if (mp, kp) != (m, k):
        x = jnp.pad(x, ((0, mp - m), (0, kp - k)))
    if (kp, np_) != (k, n):
        w = jnp.pad(w, ((0, kp - k), (0, np_ - n)))
    bp = b.astype(jnp.float32)
    if np_ != n:
        bp = jnp.pad(bp, (0, np_ - n))
    bp = bp.reshape(1, np_)

    if single_k:
        out = pl.pallas_call(
            functools.partial(_mm_kernel, apply_gelu=gelu),
            grid=(mp // tm, np_ // tn),
            in_specs=[pl.BlockSpec((tm, kp), lambda i, j: (i, 0)),
                      pl.BlockSpec((kp, tn), lambda i, j: (0, j)),
                      pl.BlockSpec((1, tn), lambda i, j: (0, j))],
            out_specs=pl.BlockSpec((tm, tn), lambda i, j: (i, j)),
            out_shape=jax.ShapeDtypeStruct((mp, np_), out_dtype),
            compiler_params=_cparams(("parallel", "parallel")),
        )(x, w, bp)
    else:
        out = pl.pallas_call(
            functools.partial(_mm_acc_kernel, apply_gelu=gelu),
            grid=(mp // tm, np_ // tn, kp // tk),
            in_specs=[pl.BlockSpec((tm, tk), lambda i, j, kk: (i, kk)),
                      pl.BlockSpec((tk, tn), lambda i, j, kk: (kk, j)),
                      pl.BlockSpec((1, tn), lambda i, j, kk: (0, j))],
            out_specs=pl.BlockSpec((tm, tn), lambda i, j, kk: (i, j)),
            out_shape=jax.ShapeDtypeStruct((mp, np_), out_dtype),
            scratch_shapes=[pltpu.VMEM((tm, tn), jnp.float32)],
            compiler_params=_cparams(("parallel", "parallel", "arbitrary")),
        )(x, w, bp)
    if mp != m or np_ != n:
        out = out[:m, :n]
    return out


def conv3x3_s2_as_matmul(x, w_cat, bias, *, gelu):
    """Dense 3x3 stride-2 pad-1 conv (BN fused) as one tiled matmul.

    The 9 taps are concatenated on the channel axis so the MXU sees a single
    matmul with K = 9*Cin (full K-utilization even for the 3/4-channel first
    conv), and M = N*Ho*Wo is tiled with a 'parallel' grid axis."""
    n, h, wdt, cin = x.shape
    assert h % 2 == 0 and wdt % 2 == 0
    ho, wo = h // 2, wdt // 2
    xp = jnp.pad(x, ((0, 0), (1, 1), (1, 1), (0, 0)))
    # TODO(synk): build the tap-concat inside the kernel (4-phase split +
    # strided pl.ds reads) to avoid materializing ~2.25x the input in HBM.
    taps = [xp[:, kh:kh + 2 * ho:2, kw:kw + 2 * wo:2, :]
            for kh in range(3) for kw in range(3)]
    col = jnp.concatenate(taps, axis=-1).reshape(n * ho * wo, 9 * cin)
    out = matmul_bias(col, w_cat, bias, gelu=gelu)
    return out.reshape(n, ho, wo, w_cat.shape[1])


def channel_mixer(flat, w1, b1, w2, b2, *, tm=None):
    """Fused residual channel mixer over M tiles; weights stay VMEM-resident."""
    m, c = flat.shape
    hd = w1.shape[1]
    tm = _DEFAULT_TM if tm is None else tm
    tm = min(tm, _round_up(m, 8))
    mp = _round_up(m, tm)
    xin = flat if mp == m else jnp.pad(flat, ((0, mp - m), (0, 0)))
    out = pl.pallas_call(
        _mixer_kernel,
        grid=(mp // tm,),
        in_specs=[pl.BlockSpec((tm, c), lambda i: (i, 0)),
                  pl.BlockSpec((c, hd), lambda i: (0, 0)),
                  pl.BlockSpec((1, hd), lambda i: (0, 0)),
                  pl.BlockSpec((hd, c), lambda i: (0, 0)),
                  pl.BlockSpec((1, c), lambda i: (0, 0))],
        out_specs=pl.BlockSpec((tm, c), lambda i: (i, 0)),
        out_shape=jax.ShapeDtypeStruct((mp, c), jnp.bfloat16),
        compiler_params=_cparams(("parallel",)),
    )(xin, w1, b1.reshape(1, hd).astype(jnp.float32),
      w2, b2.reshape(1, c).astype(jnp.float32))
    return out if mp == m else out[:m]


def pw_channel_mixer(flat, wp, bp, w1, b1, w2, b2, *, tm=None):
    """Fused stride-2 path: 1x1 token-mixer pw conv + residual channel mixer."""
    m, cin = flat.shape
    cout = wp.shape[1]
    hd = w1.shape[1]
    tm = _DEFAULT_TM if tm is None else tm
    tm = min(tm, _round_up(m, 8))
    mp = _round_up(m, tm)
    xin = flat if mp == m else jnp.pad(flat, ((0, mp - m), (0, 0)))
    out = pl.pallas_call(
        _pw_mixer_kernel,
        grid=(mp // tm,),
        in_specs=[pl.BlockSpec((tm, cin), lambda i: (i, 0)),
                  pl.BlockSpec((cin, cout), lambda i: (0, 0)),
                  pl.BlockSpec((1, cout), lambda i: (0, 0)),
                  pl.BlockSpec((cout, hd), lambda i: (0, 0)),
                  pl.BlockSpec((1, hd), lambda i: (0, 0)),
                  pl.BlockSpec((hd, cout), lambda i: (0, 0)),
                  pl.BlockSpec((1, cout), lambda i: (0, 0))],
        out_specs=pl.BlockSpec((tm, cout), lambda i: (i, 0)),
        out_shape=jax.ShapeDtypeStruct((mp, cout), jnp.bfloat16),
        compiler_params=_cparams(("parallel",)),
    )(xin, wp, bp.reshape(1, cout).astype(jnp.float32),
      w1, b1.reshape(1, hd).astype(jnp.float32),
      w2, b2.reshape(1, cout).astype(jnp.float32))
    return out if mp == m else out[:m]


def depthwise3x3_s1(x, w_dw, bias):
    """Stride-1 depthwise 3x3 conv, padding 1.  Grid (batch, 128-ch tiles)."""
    # TODO(synk): move the zero-pad / halo handling in-kernel (row strips with
    # a 2-row halo) to drop this XLA-side padded copy at very large resolutions.
    n, h, wdt, c = x.shape
    assert c % LANE == 0
    xp = jnp.pad(x, ((0, 0), (1, 1), (1, 1), (0, 0)))
    return pl.pallas_call(
        _dw3x3_s1_kernel,
        grid=(n, c // LANE),
        in_specs=[pl.BlockSpec((1, h + 2, wdt + 2, LANE), lambda b, cc: (b, 0, 0, cc)),
                  pl.BlockSpec((3, 3, LANE), lambda b, cc: (0, 0, cc)),
                  pl.BlockSpec((1, LANE), lambda b, cc: (0, cc))],
        out_specs=pl.BlockSpec((1, h, wdt, LANE), lambda b, cc: (b, 0, 0, cc)),
        out_shape=jax.ShapeDtypeStruct((n, h, wdt, c), jnp.bfloat16),
        compiler_params=_cparams(("parallel", "parallel")),
    )(xp, w_dw, bias.reshape(1, c).astype(jnp.float32))


def _phase_split(x):
    """(N,H,W,C) -> 4 phase tensors of the pad-1 input, each (N, H/2+1, W/2+1, C)."""
    xp = jnp.pad(x, ((0, 0), (1, 1), (1, 1), (0, 0)))
    return (xp[:, 0::2, 0::2, :], xp[:, 0::2, 1::2, :],
            xp[:, 1::2, 0::2, :], xp[:, 1::2, 1::2, :])


def depthwise3x3_s2(x, w_dw, bias):
    """Stride-2 depthwise 3x3 conv, padding 1, computed directly (no waste)."""
    # TODO(synk): do the phase extraction in-kernel (strided pl.ds reads of a
    # padded VMEM strip) to avoid the XLA-side phase materialization.
    n, h, wdt, c = x.shape
    assert h % 2 == 0 and wdt % 2 == 0 and c % LANE == 0
    ho, wo = h // 2, wdt // 2
    phases = _phase_split(x)
    return pl.pallas_call(
        _dw3x3_s2_kernel,
        grid=(n, c // LANE),
        in_specs=([pl.BlockSpec((1, ho + 1, wo + 1, LANE), lambda b, cc: (b, 0, 0, cc))] * 4
                  + [pl.BlockSpec((3, 3, LANE), lambda b, cc: (0, 0, cc)),
                     pl.BlockSpec((1, LANE), lambda b, cc: (0, cc))]),
        out_specs=pl.BlockSpec((1, ho, wo, LANE), lambda b, cc: (b, 0, 0, cc)),
        out_shape=jax.ShapeDtypeStruct((n, ho, wo, c), jnp.bfloat16),
        compiler_params=_cparams(("parallel", "parallel")),
    )(*phases, w_dw, bias.reshape(1, c).astype(jnp.float32))


def pool_classifier(x, w, b, num_classes):
    """Fused global average pool + BN_Linear classifier (single tiny kernel)."""
    n, h, wdt, c = x.shape
    xf = jnp.reshape(x, (n, h * wdt, c))
    ncp = w.shape[1]
    out = pl.pallas_call(
        _pool_fc_kernel,
        in_specs=[_VMEM_SPEC, _VMEM_SPEC, _VMEM_SPEC],
        out_specs=_VMEM_SPEC,
        out_shape=jax.ShapeDtypeStruct((n, ncp), jnp.float32),
        compiler_params=pltpu.CompilerParams(vmem_limit_bytes=_VMEM_LIMIT),
    )(xf, w, b.reshape(1, ncp).astype(jnp.float32))
    return out[:, :num_classes]


# --------------------------------------------------------------------------
# Parameter construction (deterministic, mirrors the module __init__ shapes)
# --------------------------------------------------------------------------
def _fused_conv_bn(key, cout, cin_per_group, k, bn_weight_init=1.0, w_scale=0.1):
    """Conv2d(bias=False) + eval-mode BatchNorm2d fused -> (weight, bias)."""
    w = jax.random.normal(key, (cout, cin_per_group, k, k), jnp.float32) * w_scale
    scale = bn_weight_init / math.sqrt(1.0 + BN_EPS)   # gamma/sqrt(var+eps), mean=0, beta=0
    return w * scale, jnp.zeros((cout,), jnp.float32)


def _to_tap_weight(w):   # (Cout, Cin, 3, 3) -> (9, Cin, Cout), tap index = kh*3+kw
    cout, cin, k, _ = w.shape
    return jnp.transpose(w, (2, 3, 1, 0)).reshape(k * k, cin, cout)


def _to_dw_weight(w):    # (C, 1, 3, 3) -> (3, 3, C)
    return jnp.transpose(w[:, 0], (1, 2, 0))


def _to_pw_weight(w):    # (Cout, Cin, 1, 1) -> (Cin, Cout)
    return jnp.transpose(w[:, :, 0, 0], (1, 0))


def _tap_concat_weight(w, cin_pad, cout_pad):
    """(Cout,Cin,3,3) conv weight -> (9*cin_pad, cout_pad) bf16 for the
    channel-concatenated im2col matmul (tap order kh*3+kw)."""
    tap = _to_tap_weight(w)                                   # (9, Cin, Cout)
    tap = _pad_to(_pad_to(tap, 1, cin_pad), 2, cout_pad)
    return tap.reshape(9 * cin_pad, cout_pad).astype(jnp.bfloat16)


def init_repvit(key, cfgs, image_channel, num_classes):
    keys = iter(jax.random.split(key, 64))
    params = {'num_classes': num_classes}
    input_channel = cfgs[0][2]

    # --- patch embed: Conv2d_BN(ic, c/2, 3, 2, 1) -> GELU -> Conv2d_BN(c/2, c, 3, 2, 1)
    c_half = input_channel // 2
    c_half_pad = _round_up(c_half, LANE)
    c_in_pad = _round_up(input_channel, LANE)
    w1, b1 = _fused_conv_bn(next(keys), c_half, image_channel, 3)
    w2, b2 = _fused_conv_bn(next(keys), input_channel, c_half, 3)
    params['patch_embed'] = dict(
        w1=_tap_concat_weight(w1, image_channel, c_half_pad),   # K = 9*ic (raw input)
        b1=_pad_to(b1, 0, c_half_pad),
        w2=_tap_concat_weight(w2, c_half_pad, c_in_pad),        # K = 9*128 (padded act)
        b2=_pad_to(b2, 0, c_in_pad))

    blocks = []
    for (k, t, c, use_se, use_hs, s) in cfgs:
        # TODO(synk): SqueezeExcite comes from timm and is not defined in the
        # reference source; this config keeps use_se=0 so it is nn.Identity().
        assert use_se == 0 and k == 3
        oup = _make_divisible(c, 8)
        hidden = _make_divisible(input_channel * t, 8)
        assert hidden == 2 * input_channel
        inp_pad = _round_up(input_channel, LANE)
        oup_pad = _round_up(oup, LANE)
        hid_pad = _round_up(2 * oup, LANE)
        blk = {'stride': s}
        if s == 1:
            assert input_channel == oup
            # RepVGGDW: bn( dw3x3_ConvBN(x) + dw1x1_Conv(x) + x ) -> one dw3x3
            w3, b3 = _fused_conv_bn(next(keys), input_channel, 1, 3)
            w1x1 = jax.random.normal(next(keys), (input_channel,), jnp.float32) * 0.1
            b1x1 = jax.random.normal(next(keys), (input_channel,), jnp.float32) * 0.01
            bn_scale = 1.0 / math.sqrt(1.0 + BN_EPS)       # outer BN (default stats)
            w_sum = _to_dw_weight(w3)                      # fused dw3x3 Conv+BN
            w_sum = w_sum.at[1, 1].add(w1x1 + 1.0)         # + dw1x1 conv + identity
            blk['dw_w'] = _pad_to(w_sum * bn_scale, 2, inp_pad)   # outer BN on whole sum
            blk['dw_b'] = _pad_to((b3 + b1x1) * bn_scale, 0, inp_pad)
            blk['pw'] = None
        else:
            # token_mixer: dw Conv2d_BN(inp,inp,3,2,1,groups=inp) -> 1x1 Conv2d_BN(inp,oup)
            wdw, bdw = _fused_conv_bn(next(keys), input_channel, 1, 3)
            wpw, bpw = _fused_conv_bn(next(keys), oup, input_channel, 1)
            blk['dw_w'] = _pad_to(_to_dw_weight(wdw), 2, inp_pad)
            blk['dw_b'] = _pad_to(bdw, 0, inp_pad)
            blk['pw'] = (
                _pad_to(_pad_to(_to_pw_weight(wpw), 0, inp_pad), 1, oup_pad).astype(jnp.bfloat16),
                _pad_to(bpw, 0, oup_pad))
        # channel_mixer: Residual( 1x1(oup->2*oup) -> GELU -> 1x1(2*oup->oup, bn_weight_init=0) )
        wcm1, bcm1 = _fused_conv_bn(next(keys), 2 * oup, oup, 1)
        wcm2, bcm2 = _fused_conv_bn(next(keys), oup, 2 * oup, 1, bn_weight_init=0.0)
        blk['cm1_w'] = _pad_to(_pad_to(_to_pw_weight(wcm1), 0, oup_pad), 1, hid_pad).astype(jnp.bfloat16)
        blk['cm1_b'] = _pad_to(bcm1, 0, hid_pad)
        blk['cm2_w'] = _pad_to(_pad_to(_to_pw_weight(wcm2), 0, hid_pad), 1, oup_pad).astype(jnp.bfloat16)
        blk['cm2_b'] = _pad_to(bcm2, 0, oup_pad)
        blocks.append(blk)
        input_channel = oup
    params['blocks'] = blocks

    # --- classifier: Classfier(dim, num_classes, distillation=False) = BN_Linear
    dim_pad = _round_up(input_channel, LANE)
    ncls_pad = _round_up(num_classes, LANE)
    lw = jax.random.normal(next(keys), (num_classes, input_channel), jnp.float32) * 0.02
    bn_scale = 1.0 / math.sqrt(1.0 + BN_EPS)               # eval BatchNorm1d fused into Linear
    cls_w = jnp.transpose(lw, (1, 0)) * bn_scale
    params['cls_w'] = _pad_to(_pad_to(cls_w, 0, dim_pad), 1, ncls_pad).astype(jnp.bfloat16)
    params['cls_b'] = jnp.zeros((ncls_pad,), jnp.float32)
    return params


# --------------------------------------------------------------------------
# Forward pass
# --------------------------------------------------------------------------
def repvit_forward(params, x_nchw):
    # layout: PyTorch NCHW input -> NHWC; activations live in HBM as bf16.
    x = jnp.transpose(x_nchw, (0, 2, 3, 1)).astype(jnp.bfloat16)

    pe = params['patch_embed']
    x = conv3x3_s2_as_matmul(x, pe['w1'], pe['b1'], gelu=True)
    x = conv3x3_s2_as_matmul(x, pe['w2'], pe['b2'], gelu=False)

    for blk in params['blocks']:
        if blk['stride'] == 1:
            # ---- token mixer: fused RepVGGDW depthwise 3x3
            x = depthwise3x3_s1(x, blk['dw_w'], blk['dw_b'])
            n, h, w, c = x.shape
            # ---- channel mixer (fused residual 1x1 -> GELU -> 1x1)
            x = channel_mixer(x.reshape(n * h * w, c),
                              blk['cm1_w'], blk['cm1_b'],
                              blk['cm2_w'], blk['cm2_b']).reshape(n, h, w, c)
        else:
            # ---- token mixer dw s2, then pw conv fused into the channel mixer
            x = depthwise3x3_s2(x, blk['dw_w'], blk['dw_b'])
            n, h, w, cin = x.shape
            wpw, bpw = blk['pw']
            cout = wpw.shape[1]
            x = pw_channel_mixer(x.reshape(n * h * w, cin), wpw, bpw,
                                 blk['cm1_w'], blk['cm1_b'],
                                 blk['cm2_w'], blk['cm2_b']).reshape(n, h, w, cout)

    return pool_classifier(x, params['cls_w'], params['cls_b'], params['num_classes'])


if __name__ == "__main__":
    key = jax.random.PRNGKey(0)
    kp, kx = jax.random.split(key)

    # cfgs: (kernel, expansion t, channels, use_se, use_hs, stride)
    cfgs = [
        (3, 2, 16, 0, 0, 1),   # stride-1 block (RepVGGDW token mixer)
        (3, 2, 32, 0, 1, 2),   # stride-2 block (dw s2 + 1x1 token mixer)
    ]
    image_channel = 4
    num_classes = 10

    params = init_repvit(kp, cfgs, image_channel, num_classes)
    x = jax.random.normal(kx, (2, image_channel, 16, 16), jnp.float32)  # NCHW, like PyTorch

    fwd = jax.jit(lambda xx: repvit_forward(params, xx))
    out = jax.block_until_ready(fwd(x))
    assert out.shape == (2, num_classes)
    assert bool(jnp.all(jnp.isfinite(out)))
    print("KERNEL_OK")
</pallas_src>

<mosaic_0001>
module attributes {stable_mosaic.version = 11 : i64} {
  func.func @_mm_kernel(%arg0: i32, %arg1: i32, %arg2: memref<128x128xbf16, #tpu.memory_space<vmem>>, %arg3: memref<128x128xbf16, #tpu.memory_space<vmem>>, %arg4: memref<1x128xf32, #tpu.memory_space<vmem>>, %arg5: memref<128x128xbf16, #tpu.memory_space<vmem>>) attributes {dimension_semantics = [#tpu.dimension_semantics<parallel>, #tpu.dimension_semantics<parallel>], iteration_bounds = array<i64: 1, 1>, scalar_prefetch = 0 : i64, scratch_operands = 0 : i64, tpu.core_type = #tpu.core_type<tc>, window_params = [{transform_indices = @transform_0, window_bounds = array<i64: 128, 128>}, {transform_indices = @transform_1, window_bounds = array<i64: 128, 128>}, {transform_indices = @transform_2, window_bounds = array<i64: 1, 128>}, {transform_indices = @transform_3, window_bounds = array<i64: 128, 128>}]} {
    %c0 = arith.constant 0 : index
    %c0_0 = arith.constant 0 : index
    %0 = vector.load %arg2[%c0, %c0_0] : memref<128x128xbf16, #tpu.memory_space<vmem>>, vector<128x128xbf16>
    %c0_1 = arith.constant 0 : index
    %c0_2 = arith.constant 0 : index
    %1 = vector.load %arg3[%c0_1, %c0_2] : memref<128x128xbf16, #tpu.memory_space<vmem>>, vector<128x128xbf16>
    %cst = arith.constant dense<0.000000e+00> : vector<128x128xf32>
    %2 = tpu.matmul %0, %1, %cst {dimension_numbers = #tpu.dot_dimension_numbers<[1], [0], [0], [1], [0, 0, 1, 1], [], []>} : vector<128x128xbf16>, vector<128x128xbf16>, vector<128x128xf32> -> vector<128x128xf32>
    %c0_3 = arith.constant 0 : index
    %c0_4 = arith.constant 0 : index
    %3 = vector.load %arg4[%c0_3, %c0_4] : memref<1x128xf32, #tpu.memory_space<vmem>>, vector<1x128xf32>
    %4 = vector.broadcast %3 : vector<1x128xf32> to vector<128x128xf32>
    %5 = arith.addf %2, %4 : vector<128x128xf32>
    %cst_5 = arith.constant 5.000000e-01 : f32
    %6 = vector.broadcast %cst_5 : f32 to vector<128x128xf32>
    %7 = arith.mulf %6, %5 : vector<128x128xf32>
    %cst_6 = arith.constant 0.707106769 : f32
    %8 = vector.broadcast %cst_6 : f32 to vector<128x128xf32>
    %9 = arith.mulf %5, %8 : vector<128x128xf32>
    %cst_7 = arith.constant 0.000000e+00 : f32
    %10 = vector.broadcast %cst_7 : f32 to vector<128x128xf32>
    %11 = arith.cmpf oge, %9, %10 : vector<128x128xf32>
    %cst_8 = arith.constant 1.000000e+00 : f32
    %cst_9 = arith.constant -1.000000e+00 : f32
    %12 = vector.broadcast %cst_8 : f32 to vector<128x128xf32>
    %13 = vector.broadcast %cst_9 : f32 to vector<128x128xf32>
    %14 = arith.select %11, %12, %13 : vector<128x128xi1>, vector<128x128xf32>
    %15 = math.absf %9 : vector<128x128xf32>
    %cst_10 = arith.constant 0.327591091 : f32
    %16 = vector.broadcast %cst_10 : f32 to vector<128x128xf32>
    %17 = arith.mulf %16, %15 : vector<128x128xf32>
    %cst_11 = arith.constant 1.000000e+00 : f32
    %18 = vector.broadcast %cst_11 : f32 to vector<128x128xf32>
    %19 = arith.addf %18, %17 : vector<128x128xf32>
    %20 = tpu.reciprocal %19 {approx = true} : vector<128x128xf32> -> vector<128x128xf32>
    %cst_12 = arith.constant 1.06140542 : f32
    %21 = vector.broadcast %cst_12 : f32 to vector<128x128xf32>
    %22 = arith.mulf %21, %20 : vector<128x128xf32>
    %cst_13 = arith.constant -1.45315206 : f32
    %23 = vector.broadcast %cst_13 : f32 to vector<128x128xf32>
    %24 = arith.addf %22, %23 : vector<128x128xf32>
    %25 = arith.mulf %24, %20 : vector<128x128xf32>
    %cst_14 = arith.constant 1.42141378 : f32
    %26 = vector.broadcast %cst_14 : f32 to vector<128x128xf32>
    %27 = arith.addf %25, %26 : vector<128x128xf32>
    %28 = arith.mulf %27, %20 : vector<128x128xf32>
    %cst_15 = arith.constant -0.284496725 : f32
    %29 = vector.broadcast %cst_15 : f32 to vector<128x128xf32>
    %30 = arith.addf %28, %29 : vector<128x128xf32>
    %31 = arith.mulf %30, %20 : vector<128x128xf32>
    %cst_16 = arith.constant 0.254829586 : f32
    %32 = vector.broadcast %cst_16 : f32 to vector<128x128xf32>
    %33 = arith.addf %31, %32 : vector<128x128xf32>
    %34 = arith.mulf %33, %20 : vector<128x128xf32>
    %cst_17 = arith.constant 0.000000e+00 : f32
    %35 = vector.broadcast %cst_17 : f32 to vector<128x128xf32>
    %36 = arith.subf %35, %15 : vector<128x128xf32>
    %37 = arith.mulf %36, %15 : vector<128x128xf32>
    %38 = math.exp %37 : vector<128x128xf32>
    %39 = arith.mulf %34, %38 : vector<128x128xf32>
    %cst_18 = arith.constant 1.000000e+00 : f32
    %40 = vector.broadcast %cst_18 : f32 to vector<128x128xf32>
    %41 = arith.subf %40, %39 : vector<128x128xf32>
    %42 = arith.mulf %14, %41 : vector<128x128xf32>
    %cst_19 = arith.constant 1.000000e+00 : f32
    %43 = vector.broadcast %cst_19 : f32 to vector<128x128xf32>
    %44 = arith.addf %43, %42 : vector<128x128xf32>
    %45 = arith.mulf %7, %44 : vector<128x128xf32>
    %46 = arith.truncf %45 : vector<128x128xf32> to vector<128x128xbf16>
    %c0_20 = arith.constant 0 : index
    %c0_21 = arith.constant 0 : index
    %47 = vector.load %arg5[%c0_20, %c0_21] : memref<128x128xbf16, #tpu.memory_space<vmem>>, vector<128x128xbf16>
    tpu.vector_store %arg5[%c0_20, %c0_21], %46 {strides = array<i32>} : memref<128x128xbf16, #tpu.memory_space<vmem>>, vector<128x128xbf16>,
    return
  }
  func.func @transform_0(%arg0: i32, %arg1: i32) -> (i32, i32) {
    %c0_i32 = arith.constant 0 : i32
    %c0_i32_0 = arith.constant 0 : i32
    return %arg0, %c0_i32 : i32, i32
  }
  func.func @transform_1(%arg0: i32, %arg1: i32) -> (i32, i32) {
    %c0_i32 = arith.constant 0 : i32
    %c0_i32_0 = arith.constant 0 : i32
    return %c0_i32, %arg1 : i32, i32
  }
  func.func @transform_2(%arg0: i32, %arg1: i32) -> (i32, i32) {
    %c0_i32 = arith.constant 0 : i32
    %c0_i32_0 = arith.constant 0 : i32
    return %c0_i32, %arg1 : i32, i32
  }
  func.func @transform_3(%arg0: i32, %arg1: i32) -> (i32, i32) {
    %c0_i32 = arith.constant 0 : i32
    return %arg0, %arg1 : i32, i32
  }
}

module attributes {stable_mosaic.version = 11 : i64} {
  func.func @_dw3x3_s1_kernel(%arg0: i32, %arg1: i32, %arg2: memref<1x6x6x128xbf16, #tpu.memory_space<vmem>>, %arg3: memref<3x3x128xf32, #tpu.memory_space<vmem>>, %arg4: memref<1x128xf32, #tpu.memory_space<vmem>>, %arg5: memref<1x4x4x128xbf16, #tpu.memory_space<vmem>>) attributes {dimension_semantics = [#tpu.dimension_semantics<parallel>, #tpu.dimension_semantics<parallel>], iteration_bounds = array<i64: 2, 1>, scalar_prefetch = 0 : i64, scratch_operands = 0 : i64, tpu.core_type = #tpu.core_type<tc>, window_params = [{transform_indices = @transform_0, window_bounds = array<i64: 1, 6, 6, 128>}, {transform_indices = @transform_1, window_bounds = array<i64: 3, 3, 128>}, {transform_indices = @transform_2, window_bounds = array<i64: 1, 128>}, {transform_indices = @transform_3, window_bounds = array<i64: 1, 4, 4, 128>}]} {
    %c0 = arith.constant 0 : index
    %c0_0 = arith.constant 0 : index
    %c0_1 = arith.constant 0 : index
    %c0_2 = arith.constant 0 : index
    %0 = vector.load %arg2[%c0, %c0_0, %c0_1, %c0_2] : memref<1x6x6x128xbf16, #tpu.memory_space<vmem>>, vector<1x6x6x128xbf16>
    %cst = arith.constant 0.000000e+00 : f32
    %1 = vector.broadcast %cst : f32 to vector<1x4x4x128xf32>
    %2 = vector.extract_strided_slice %0 {offsets = [0, 0, 0, 0], sizes = [1, 4, 4, 128], strides = [1, 1, 1, 1]} : vector<1x6x6x128xbf16> to vector<1x4x4x128xbf16>
    %3 = arith.extf %2 : vector<1x4x4x128xbf16> to vector<1x4x4x128xf32>
    %c0_3 = arith.constant 0 : index
    %c0_4 = arith.constant 0 : index
    %c0_5 = arith.constant 0 : index
    %4 = vector.load %arg3[%c0_3, %c0_4, %c0_5] : memref<3x3x128xf32, #tpu.memory_space<vmem>>, vector<1x1x128xf32>
    %5 = vector.shape_cast %4 : vector<1x1x128xf32> to vector<128xf32>
    %6 = vector.shape_cast %5 : vector<128xf32> to vector<1x1x1x128xf32>
    %7 = vector.broadcast %6 : vector<1x1x1x128xf32> to vector<1x4x4x128xf32>
    %8 = arith.mulf %3, %7 : vector<1x4x4x128xf32>
    %9 = arith.addf %1, %8 : vector<1x4x4x128xf32>
    %10 = vector.extract_strided_slice %0 {offsets = [0, 0, 1, 0], sizes = [1, 4, 4, 128], strides = [1, 1, 1, 1]} : vector<1x6x6x128xbf16> to vector<1x4x4x128xbf16>
    %11 = arith.extf %10 : vector<1x4x4x128xbf16> to vector<1x4x4x128xf32>
    %c0_6 = arith.constant 0 : index
    %c1 = arith.constant 1 : index
    %c0_7 = arith.constant 0 : index
    %12 = vector.load %arg3[%c0_6, %c1, %c0_7] : memref<3x3x128xf32, #tpu.memory_space<vmem>>, vector<1x1x128xf32>
    %13 = vector.shape_cast %12 : vector<1x1x128xf32> to vector<128xf32>
    %14 = vector.shape_cast %13 : vector<128xf32> to vector<1x1x1x128xf32>
    %15 = vector.broadcast %14 : vector<1x1x1x128xf32> to vector<1x4x4x128xf32>
    %16 = arith.mulf %11, %15 : vector<1x4x4x128xf32>
    %17 = arith.addf %9, %16 : vector<1x4x4x128xf32>
    %18 = vector.extract_strided_slice %0 {offsets = [0, 0, 2, 0], sizes = [1, 4, 4, 128], strides = [1, 1, 1, 1]} : vector<1x6x6x128xbf16> to vector<1x4x4x128xbf16>
    %19 = arith.extf %18 : vector<1x4x4x128xbf16> to vector<1x4x4x128xf32>
    %c0_8 = arith.constant 0 : index
    %c2 = arith.constant 2 : index
    %c0_9 = arith.constant 0 : index
    %20 = vector.load %arg3[%c0_8, %c2, %c0_9] : memref<3x3x128xf32, #tpu.memory_space<vmem>>, vector<1x1x128xf32>
    %21 = vector.shape_cast %20 : vector<1x1x128xf32> to vector<128xf32>
    %22 = vector.shape_cast %21 : vector<128xf32> to vector<1x1x1x128xf32>
    %23 = vector.broadcast %22 : vector<1x1x1x128xf32> to vector<1x4x4x128xf32>
    %24 = arith.mulf %19, %23 : vector<1x4x4x128xf32>
    %25 = arith.addf %17, %24 : vector<1x4x4x128xf32>
    %26 = vector.extract_strided_slice %0 {offsets = [0, 1, 0, 0], sizes = [1, 4, 4, 128], strides = [1, 1, 1, 1]} : vector<1x6x6x128xbf16> to vector<1x4x4x128xbf16>
    %27 = arith.extf %26 : vector<1x4x4x128xbf16> to vector<1x4x4x128xf32>
    %c1_10 = arith.constant 1 : index
    %c0_11 = arith.constant 0 : index
    %c0_12 = arith.constant 0 : index
    %28 = vector.load %arg3[%c1_10, %c0_11, %c0_12] : memref<3x3x128xf32, #tpu.memory_space<vmem>>, vector<1x1x128xf32>
    %29 = vector.shape_cast %28 : vector<1x1x128xf32> to vector<128xf32>
    %30 = vector.shape_cast %29 : vector<128xf32> to vector<1x1x1x128xf32>
    %31 = vector.broadcast %30 : vector<1x1x1x128xf32> to vector<1x4x4x128xf32>
    %32 = arith.mulf %27, %31 : vector<1x4x4x128xf32>
    %33 = arith.addf %25, %32 : vector<1x4x4x128xf32>
    %34 = vector.extract_strided_slice %0 {offsets = [0, 1, 1, 0], sizes = [1, 4, 4, 128], strides = [1, 1, 1, 1]} : vector<1x6x6x128xbf16> to vector<1x4x4x128xbf16>
    %35 = arith.extf %34 : vector<1x4x4x128xbf16> to vector<1x4x4x128xf32>
    %c1_13 = arith.constant 1 : index
    %c1_14 = arith.constant 1 : index
    %c0_15 = arith.constant 0 : index
    %36 = vector.load %arg3[%c1_13, %c1_14, %c0_15] : memref<3x3x128xf32, #tpu.memory_space<vmem>>, vector<1x1x128xf32>
    %37 = vector.shape_cast %36 : vector<1x1x128xf32> to vector<128xf32>
    %38 = vector.shape_cast %37 : vector<128xf32> to vector<1x1x1x128xf32>
    %39 = vector.broadcast %38 : vector<1x1x1x128xf32> to vector<1x4x4x128xf32>
    %40 = arith.mulf %35, %39 : vector<1x4x4x128xf32>
    %41 = arith.addf %33, %40 : vector<1x4x4x128xf32>
    %42 = vector.extract_strided_slice %0 {offsets = [0, 1, 2, 0], sizes = [1, 4, 4, 128], strides = [1, 1, 1, 1]} : vector<1x6x6x128xbf16> to vector<1x4x4x128xbf16>
    %43 = arith.extf %42 : vector<1x4x4x128xbf16> to vector<1x4x4x128xf32>
    %c1_16 = arith.constant 1 : index
    %c2_17 = arith.constant 2 : index
    %c0_18 = arith.constant 0 : index
    %44 = vector.load %arg3[%c1_16, %c2_17, %c0_18] : memref<3x3x128xf32, #tpu.memory_space<vmem>>, vector<1x1x128xf32>
    %45 = vector.shape_cast %44 : vector<1x1x128xf32> to vector<128xf32>
    %46 = vector.shape_cast %45 : vector<128xf32> to vector<1x1x1x128xf32>
    %47 = vector.broadcast %46 : vector<1x1x1x128xf32> to vector<1x4x4x128xf32>
    %48 = arith.mulf %43, %47 : vector<1x4x4x128xf32>
    %49 = arith.addf %41, %48 : vector<1x4x4x128xf32>
    %50 = vector.extract_strided_slice %0 {offsets = [0, 2, 0, 0], sizes = [1, 4, 4, 128], strides = [1, 1, 1, 1]} : vector<1x6x6x128xbf16> to vector<1x4x4x128xbf16>
    %51 = arith.extf %50 : vector<1x4x4x128xbf16> to vector<1x4x4x128xf32>
    %c2_19 = arith.constant 2 : index
    %c0_20 = arith.constant 0 : index
    %c0_21 = arith.constant 0 : index
    %52 = vector.load %arg3[%c2_19, %c0_20, %c0_21] : memref<3x3x128xf32, #tpu.memory_space<vmem>>, vector<1x1x128xf32>
    %53 = vector.shape_cast %52 : vector<1x1x128xf32> to vector<128xf32>
    %54 = vector.shape_cast %53 : vector<128xf32> to vector<1x1x1x128xf32>
    %55 = vector.broadcast %54 : vector<1x1x1x128xf32> to vector<1x4x4x128xf32>
    %56 = arith.mulf %51, %55 : vector<1x4x4x128xf32>
    %57 = arith.addf %49, %56 : vector<1x4x4x128xf32>
    %58 = vector.extract_strided_slice %0 {offsets = [0, 2, 1, 0], sizes = [1, 4, 4, 128], strides = [1, 1, 1, 1]} : vector<1x6x6x128xbf16> to vector<1x4x4x128xbf16>
    %59 = arith.extf %58 : vector<1x4x4x128xbf16> to vector<1x4x4x128xf32>
    %c2_22 = arith.constant 2 : index
    %c1_23 = arith.constant 1 : index
    %c0_24 = arith.constant 0 : index
    %60 = vector.load %arg3[%c2_22, %c1_23, %c0_24] : memref<3x3x128xf32, #tpu.memory_space<vmem>>, vector<1x1x128xf32>
    %61 = vector.shape_cast %60 : vector<1x1x128xf32> to vector<128xf32>
    %62 = vector.shape_cast %61 : vector<128xf32> to vector<1x1x1x128xf32>
    %63 = vector.broadcast %62 : vector<1x1x1x128xf32> to vector<1x4x4x128xf32>
    %64 = arith.mulf %59, %63 : vector<1x4x4x128xf32>
    %65 = arith.addf %57, %64 : vector<1x4x4x128xf32>
    %66 = vector.extract_strided_slice %0 {offsets = [0, 2, 2, 0], sizes = [1, 4, 4, 128], strides = [1, 1, 1, 1]} : vector<1x6x6x128xbf16> to vector<1x4x4x128xbf16>
    %67 = arith.extf %66 : vector<1x4x4x128xbf16> to vector<1x4x4x128xf32>
    %c2_25 = arith.constant 2 : index
    %c2_26 = arith.constant 2 : index
    %c0_27 = arith.constant 0 : index
    %68 = vector.load %arg3[%c2_25, %c2_26, %c0_27] : memref<3x3x128xf32, #tpu.memory_space<vmem>>, vector<1x1x128xf32>
    %69 = vector.shape_cast %68 : vector<1x1x128xf32> to vector<128xf32>
    %70 = vector.shape_cast %69 : vector<128xf32> to vector<1x1x1x128xf32>
    %71 = vector.broadcast %70 : vector<1x1x1x128xf32> to vector<1x4x4x128xf32>
    %72 = arith.mulf %67, %71 : vector<1x4x4x128xf32>
    %73 = arith.addf %65, %72 : vector<1x4x4x128xf32>
    %c0_28 = arith.constant 0 : index
    %c0_29 = arith.constant 0 : index
    %74 = vector.load %arg4[%c0_28, %c0_29] : memref<1x128xf32, #tpu.memory_space<vmem>>, vector<1x128xf32>
    %75 = vector.shape_cast %74 : vector<1x128xf32> to vector<128xf32>
    %76 = vector.shape_cast %75 : vector<128xf32> to vector<1x1x1x128xf32>
    %77 = vector.broadcast %76 : vector<1x1x1x128xf32> to vector<1x4x4x128xf32>
    %78 = arith.addf %73, %77 : vector<1x4x4x128xf32>
    %79 = arith.truncf %78 : vector<1x4x4x128xf32> to vector<1x4x4x128xbf16>
    %c0_30 = arith.constant 0 : index
    %c0_31 = arith.constant 0 : index
    %c0_32 = arith.constant 0 : index
    %c0_33 = arith.constant 0 : index
    %80 = vector.load %arg5[%c0_30, %c0_31, %c0_32, %c0_33] : memref<1x4x4x128xbf16, #tpu.memory_space<vmem>>, vector<1x4x4x128xbf16>
    tpu.vector_store %arg5[%c0_30, %c0_31, %c0_32, %c0_33], %79 {strides = array<i32>} : memref<1x4x4x128xbf16, #tpu.memory_space<vmem>>, vector<1x4x4x128xbf16>,
    return
  }
  func.func @transform_0(%arg0: i32, %arg1: i32) -> (i32, i32, i32, i32) {
    %c0_i32 = arith.constant 0 : i32
    %c0_i32_0 = arith.constant 0 : i32
    %c0_i32_1 = arith.constant 0 : i32
    return %arg0, %c0_i32, %c0_i32_0, %arg1 : i32, i32, i32, i32
  }
  func.func @transform_1(%arg0: i32, %arg1: i32) -> (i32, i32, i32) {
    %c0_i32 = arith.constant 0 : i32
    %c0_i32_0 = arith.constant 0 : i32
    %c0_i32_1 = arith.constant 0 : i32
    return %c0_i32, %c0_i32_0, %arg1 : i32, i32, i32
  }
  func.func @transform_2(%arg0: i32, %arg1: i32) -> (i32, i32) {
    %c0_i32 = arith.constant 0 : i32
    %c0_i32_0 = arith.constant 0 : i32
    return %c0_i32, %arg1 : i32, i32
  }
  func.func @transform_3(%arg0: i32, %arg1: i32) -> (i32, i32, i32, i32) {
    %c0_i32 = arith.constant 0 : i32
    %c0_i32_0 = arith.constant 0 : i32
    %c0_i32_1 = arith.constant 0 : i32
    return %arg0, %c0_i32, %c0_i32_0, %arg1 : i32, i32, i32, i32
  }
}

module attributes {stable_mosaic.version = 11 : i64} {
  func.func @_mm_kernel(%arg0: i32, %arg1: i32, %arg2: memref<32x1152xbf16, #tpu.memory_space<vmem>>, %arg3: memref<1152x128xbf16, #tpu.memory_space<vmem>>, %arg4: memref<1x128xf32, #tpu.memory_space<vmem>>, %arg5: memref<32x128xbf16, #tpu.memory_space<vmem>>) attributes {dimension_semantics = [#tpu.dimension_semantics<parallel>, #tpu.dimension_semantics<parallel>], iteration_bounds = array<i64: 1, 1>, scalar_prefetch = 0 : i64, scratch_operands = 0 : i64, tpu.core_type = #tpu.core_type<tc>, window_params = [{transform_indices = @transform_0, window_bounds = array<i64: 32, 1152>}, {transform_indices = @transform_1, window_bounds = array<i64: 1152, 128>}, {transform_indices = @transform_2, window_bounds = array<i64: 1, 128>}, {transform_indices = @transform_3, window_bounds = array<i64: 32, 128>}]} {
    %c0 = arith.constant 0 : index
    %c0_0 = arith.constant 0 : index
    %0 = vector.load %arg2[%c0, %c0_0] : memref<32x1152xbf16, #tpu.memory_space<vmem>>, vector<32x1152xbf16>
    %c0_1 = arith.constant 0 : index
    %c0_2 = arith.constant 0 : index
    %1 = vector.load %arg3[%c0_1, %c0_2] : memref<1152x128xbf16, #tpu.memory_space<vmem>>, vector<1152x128xbf16>
    %cst = arith.constant dense<0.000000e+00> : vector<32x128xf32>
    %2 = tpu.matmul %0, %1, %cst {dimension_numbers = #tpu.dot_dimension_numbers<[1], [0], [0], [1], [0, 0, 1, 1], [], []>} : vector<32x1152xbf16>, vector<1152x128xbf16>, vector<32x128xf32> -> vector<32x128xf32>
    %c0_3 = arith.constant 0 : index
    %c0_4 = arith.constant 0 : index
    %3 = vector.load %arg4[%c0_3, %c0_4] : memref<1x128xf32, #tpu.memory_space<vmem>>, vector<1x128xf32>
    %4 = vector.broadcast %3 : vector<1x128xf32> to vector<32x128xf32>
    %5 = arith.addf %2, %4 : vector<32x128xf32>
    %6 = arith.truncf %5 : vector<32x128xf32> to vector<32x128xbf16>
    %c0_5 = arith.constant 0 : index
    %c0_6 = arith.constant 0 : index
    %7 = vector.load %arg5[%c0_5, %c0_6] : memref<32x128xbf16, #tpu.memory_space<vmem>>, vector<32x128xbf16>
    tpu.vector_store %arg5[%c0_5, %c0_6], %6 {strides = array<i32>} : memref<32x128xbf16, #tpu.memory_space<vmem>>, vector<32x128xbf16>,
    return
  }
  func.func @transform_0(%arg0: i32, %arg1: i32) -> (i32, i32) {
    %c0_i32 = arith.constant 0 : i32
    %c0_i32_0 = arith.constant 0 : i32
    return %arg0, %c0_i32 : i32, i32
  }
  func.func @transform_1(%arg0: i32, %arg1: i32) -> (i32, i32) {
    %c0_i32 = arith.constant 0 : i32
    %c0_i32_0 = arith.constant 0 : i32
    return %c0_i32, %arg1 : i32, i32
  }
  func.func @transform_2(%arg0: i32, %arg1: i32) -> (i32, i32) {
    %c0_i32 = arith.constant 0 : i32
    %c0_i32_0 = arith.constant 0 : i32
    return %c0_i32, %arg1 : i32, i32
  }
  func.func @transform_3(%arg0: i32, %arg1: i32) -> (i32, i32) {
    %c0_i32 = arith.constant 0 : i32
    return %arg0, %arg1 : i32, i32
  }
}

module attributes {stable_mosaic.version = 11 : i64} {
  func.func @_mixer_kernel(%arg0: i32, %arg1: memref<32x128xbf16, #tpu.memory_space<vmem>>, %arg2: memref<128x128xbf16, #tpu.memory_space<vmem>>, %arg3: memref<1x128xf32, #tpu.memory_space<vmem>>, %arg4: memref<128x128xbf16, #tpu.memory_space<vmem>>, %arg5: memref<1x128xf32, #tpu.memory_space<vmem>>, %arg6: memref<32x128xbf16, #tpu.memory_space<vmem>>) attributes {dimension_semantics = [#tpu.dimension_semantics<parallel>], iteration_bounds = array<i64: 1>, scalar_prefetch = 0 : i64, scratch_operands = 0 : i64, tpu.core_type = #tpu.core_type<tc>, window_params = [{transform_indices = @transform_0, window_bounds = array<i64: 32, 128>}, {pipeline_mode = #tpu.pipeline_mode<synchronous>, transform_indices = @transform_1, window_bounds = array<i64: 128, 128>}, {pipeline_mode = #tpu.pipeline_mode<synchronous>, transform_indices = @transform_2, window_bounds = array<i64: 1, 128>}, {pipeline_mode = #tpu.pipeline_mode<synchronous>, transform_indices = @transform_3, window_bounds = array<i64: 128, 128>}, {pipeline_mode = #tpu.pipeline_mode<synchronous>, transform_indices = @transform_4, window_bounds = array<i64: 1, 128>}, {transform_indices = @transform_5, window_bounds = array<i64: 32, 128>}]} {
    %c0 = arith.constant 0 : index
    %c0_0 = arith.constant 0 : index
    %0 = vector.load %arg1[%c0, %c0_0] : memref<32x128xbf16, #tpu.memory_space<vmem>>, vector<32x128xbf16>
    %c0_1 = arith.constant 0 : index
    %c0_2 = arith.constant 0 : index
    %1 = vector.load %arg2[%c0_1, %c0_2] : memref<128x128xbf16, #tpu.memory_space<vmem>>, vector<128x128xbf16>
    %cst = arith.constant dense<0.000000e+00> : vector<32x128xf32>
    %2 = tpu.matmul %0, %1, %cst {dimension_numbers = #tpu.dot_dimension_numbers<[1], [0], [0], [1], [0, 0, 1, 1], [], []>} : vector<32x128xbf16>, vector<128x128xbf16>, vector<32x128xf32> -> vector<32x128xf32>
    %c0_3 = arith.constant 0 : index
    %c0_4 = arith.constant 0 : index
    %3 = vector.load %arg3[%c0_3, %c0_4] : memref<1x128xf32, #tpu.memory_space<vmem>>, vector<1x128xf32>
    %4 = vector.broadcast %3 : vector<1x128xf32> to vector<32x128xf32>
    %5 = arith.addf %2, %4 : vector<32x128xf32>
    %cst_5 = arith.constant 5.000000e-01 : f32
    %6 = vector.broadcast %cst_5 : f32 to vector<32x128xf32>
    %7 = arith.mulf %6, %5 : vector<32x128xf32>
    %cst_6 = arith.constant 0.707106769 : f32
    %8 = vector.broadcast %cst_6 : f32 to vector<32x128xf32>
    %9 = arith.mulf %5, %8 : vector<32x128xf32>
    %cst_7 = arith.constant 0.000000e+00 : f32
    %10 = vector.broadcast %cst_7 : f32 to vector<32x128xf32>
    %11 = arith.cmpf oge, %9, %10 : vector<32x128xf32>
    %cst_8 = arith.constant 1.000000e+00 : f32
    %cst_9 = arith.constant -1.000000e+00 : f32
    %12 = vector.broadcast %cst_8 : f32 to vector<32x128xf32>
    %13 = vector.broadcast %cst_9 : f32 to vector<32x128xf32>
    %14 = arith.select %11, %12, %13 : vector<32x128xi1>, vector<32x128xf32>
    %15 = math.absf %9 : vector<32x128xf32>
    %cst_10 = arith.constant 0.327591091 : f32
    %16 = vector.broadcast %cst_10 : f32 to vector<32x128xf32>
    %17 = arith.mulf %16, %15 : vector<32x128xf32>
    %cst_11 = arith.constant 1.000000e+00 : f32
    %18 = vector.broadcast %cst_11 : f32 to vector<32x128xf32>
    %19 = arith.addf %18, %17 : vector<32x128xf32>
    %20 = tpu.reciprocal %19 {approx = true} : vector<32x128xf32> -> vector<32x128xf32>
    %cst_12 = arith.constant 1.06140542 : f32
    %21 = vector.broadcast %cst_12 : f32 to vector<32x128xf32>
    %22 = arith.mulf %21, %20 : vector<32x128xf32>
    %cst_13 = arith.constant -1.45315206 : f32
    %23 = vector.broadcast %cst_13 : f32 to vector<32x128xf32>
    %24 = arith.addf %22, %23 : vector<32x128xf32>
    %25 = arith.mulf %24, %20 : vector<32x128xf32>
    %cst_14 = arith.constant 1.42141378 : f32
    %26 = vector.broadcast %cst_14 : f32 to vector<32x128xf32>
    %27 = arith.addf %25, %26 : vector<32x128xf32>
    %28 = arith.mulf %27, %20 : vector<32x128xf32>
    %cst_15 = arith.constant -0.284496725 : f32
    %29 = vector.broadcast %cst_15 : f32 to vector<32x128xf32>
    %30 = arith.addf %28, %29 : vector<32x128xf32>
    %31 = arith.mulf %30, %20 : vector<32x128xf32>
    %cst_16 = arith.constant 0.254829586 : f32
    %32 = vector.broadcast %cst_16 : f32 to vector<32x128xf32>
    %33 = arith.addf %31, %32 : vector<32x128xf32>
    %34 = arith.mulf %33, %20 : vector<32x128xf32>
    %cst_17 = arith.constant 0.000000e+00 : f32
    %35 = vector.broadcast %cst_17 : f32 to vector<32x128xf32>
    %36 = arith.subf %35, %15 : vector<32x128xf32>
    %37 = arith.mulf %36, %15 : vector<32x128xf32>
    %38 = math.exp %37 : vector<32x128xf32>
    %39 = arith.mulf %34, %38 : vector<32x128xf32>
    %cst_18 = arith.constant 1.000000e+00 : f32
    %40 = vector.broadcast %cst_18 : f32 to vector<32x128xf32>
    %41 = arith.subf %40, %39 : vector<32x128xf32>
    %42 = arith.mulf %14, %41 : vector<32x128xf32>
    %cst_19 = arith.constant 1.000000e+00 : f32
    %43 = vector.broadcast %cst_19 : f32 to vector<32x128xf32>
    %44 = arith.addf %43, %42 : vector<32x128xf32>
    %45 = arith.mulf %7, %44 : vector<32x128xf32>
    %46 = arith.truncf %45 : vector<32x128xf32> to vector<32x128xbf16>
    %c0_20 = arith.constant 0 : index
    %c0_21 = arith.constant 0 : index
    %47 = vector.load %arg4[%c0_20, %c0_21] : memref<128x128xbf16, #tpu.memory_space<vmem>>, vector<128x128xbf16>
    %cst_22 = arith.constant dense<0.000000e+00> : vector<32x128xf32>
    %48 = tpu.matmul %46, %47, %cst_22 {dimension_numbers = #tpu.dot_dimension_numbers<[1], [0], [0], [1], [0, 0, 1, 1], [], []>} : vector<32x128xbf16>, vector<128x128xbf16>, vector<32x128xf32> -> vector<32x128xf32>
    %c0_23 = arith.constant 0 : index
    %c0_24 = arith.constant 0 : index
    %49 = vector.load %arg5[%c0_23, %c0_24] : memref<1x128xf32, #tpu.memory_space<vmem>>, vector<1x128xf32>
    %50 = vector.broadcast %49 : vector<1x128xf32> to vector<32x128xf32>
    %51 = arith.addf %48, %50 : vector<32x128xf32>
    %52 = arith.extf %0 : vector<32x128xbf16> to vector<32x128xf32>
    %53 = arith.addf %52, %51 : vector<32x128xf32>
    %54 = arith.truncf %53 : vector<32x128xf32> to vector<32x128xbf16>
    %c0_25 = arith.constant 0 : index
    %c0_26 = arith.constant 0 : index
    %55 = vector.load %arg6[%c0_25, %c0_26] : memref<32x128xbf16, #tpu.memory_space<vmem>>, vector<32x128xbf16>
    tpu.vector_store %arg6[%c0_25, %c0_26], %54 {strides = array<i32>} : memref<32x128xbf16, #tpu.memory_space<vmem>>, vector<32x128xbf16>,
    return
  }
  func.func @transform_0(%arg0: i32) -> (i32, i32) {
    %c0_i32 = arith.constant 0 : i32
    %c0_i32_0 = arith.constant 0 : i32
    return %arg0, %c0_i32 : i32, i32
  }
  func.func @transform_1(%arg0: i32) -> (i32, i32) {
    %c0_i32 = arith.constant 0 : i32
    %c0_i32_0 = arith.constant 0 : i32
    %c0_i32_1 = arith.constant 0 : i32
    return %c0_i32, %c0_i32_0 : i32, i32
  }
  func.func @transform_2(%arg0: i32) -> (i32, i32) {
    %c0_i32 = arith.constant 0 : i32
    %c0_i32_0 = arith.constant 0 : i32
    %c0_i32_1 = arith.constant 0 : i32
    return %c0_i32, %c0_i32_0 : i32, i32
  }
  func.func @transform_3(%arg0: i32) -> (i32, i32) {
    %c0_i32 = arith.constant 0 : i32
    %c0_i32_0 = arith.constant 0 : i32
    %c0_i32_1 = arith.constant 0 : i32
    return %c0_i32, %c0_i32_0 : i32, i32
  }
  func.func @transform_4(%arg0: i32) -> (i32, i32) {
    %c0_i32 = arith.constant 0 : i32
    %c0_i32_0 = arith.constant 0 : i32
    %c0_i32_1 = arith.constant 0 : i32
    return %c0_i32, %c0_i32_0 : i32, i32
  }
  func.func @transform_5(%arg0: i32) -> (i32, i32) {
    %c0_i32 = arith.constant 0 : i32
    %c0_i32_0 = arith.constant 0 : i32
    return %arg0, %c0_i32 : i32, i32
  }
}

module attributes {stable_mosaic.version = 11 : i64} {
  func.func @_dw3x3_s2_kernel(%arg0: i32, %arg1: i32, %arg2: memref<1x3x3x128xbf16, #tpu.memory_space<vmem>>, %arg3: memref<1x3x3x128xbf16, #tpu.memory_space<vmem>>, %arg4: memref<1x3x3x128xbf16, #tpu.memory_space<vmem>>, %arg5: memref<1x3x3x128xbf16, #tpu.memory_space<vmem>>, %arg6: memref<3x3x128xf32, #tpu.memory_space<vmem>>, %arg7: memref<1x128xf32, #tpu.memory_space<vmem>>, %arg8: memref<1x2x2x128xbf16, #tpu.memory_space<vmem>>) attributes {dimension_semantics = [#tpu.dimension_semantics<parallel>, #tpu.dimension_semantics<parallel>], iteration_bounds = array<i64: 2, 1>, scalar_prefetch = 0 : i64, scratch_operands = 0 : i64, tpu.core_type = #tpu.core_type<tc>, window_params = [{transform_indices = @transform_0, window_bounds = array<i64: 1, 3, 3, 128>}, {transform_indices = @transform_1, window_bounds = array<i64: 1, 3, 3, 128>}, {transform_indices = @transform_2, window_bounds = array<i64: 1, 3, 3, 128>}, {transform_indices = @transform_3, window_bounds = array<i64: 1, 3, 3, 128>}, {transform_indices = @transform_4, window_bounds = array<i64: 3, 3, 128>}, {transform_indices = @transform_5, window_bounds = array<i64: 1, 128>}, {transform_indices = @transform_6, window_bounds = array<i64: 1, 2, 2, 128>}]} {
    %c0 = arith.constant 0 : index
    %c0_0 = arith.constant 0 : index
    %c0_1 = arith.constant 0 : index
    %c0_2 = arith.constant 0 : index
    %0 = vector.load %arg2[%c0, %c0_0, %c0_1, %c0_2] : memref<1x3x3x128xbf16, #tpu.memory_space<vmem>>, vector<1x3x3x128xbf16>
    %c0_3 = arith.constant 0 : index
    %c0_4 = arith.constant 0 : index
    %c0_5 = arith.constant 0 : index
    %c0_6 = arith.constant 0 : index
    %1 = vector.load %arg3[%c0_3, %c0_4, %c0_5, %c0_6] : memref<1x3x3x128xbf16, #tpu.memory_space<vmem>>, vector<1x3x3x128xbf16>
    %c0_7 = arith.constant 0 : index
    %c0_8 = arith.constant 0 : index
    %c0_9 = arith.constant 0 : index
    %c0_10 = arith.constant 0 : index
    %2 = vector.load %arg4[%c0_7, %c0_8, %c0_9, %c0_10] : memref<1x3x3x128xbf16, #tpu.memory_space<vmem>>, vector<1x3x3x128xbf16>
    %c0_11 = arith.constant 0 : index
    %c0_12 = arith.constant 0 : index
    %c0_13 = arith.constant 0 : index
    %c0_14 = arith.constant 0 : index
    %3 = vector.load %arg5[%c0_11, %c0_12, %c0_13, %c0_14] : memref<1x3x3x128xbf16, #tpu.memory_space<vmem>>, vector<1x3x3x128xbf16>
    %cst = arith.constant 0.000000e+00 : f32
    %4 = vector.broadcast %cst : f32 to vector<1x2x2x128xf32>
    %5 = vector.extract_strided_slice %0 {offsets = [0, 0, 0, 0], sizes = [1, 2, 2, 128], strides = [1, 1, 1, 1]} : vector<1x3x3x128xbf16> to vector<1x2x2x128xbf16>
    %6 = arith.extf %5 : vector<1x2x2x128xbf16> to vector<1x2x2x128xf32>
    %c0_15 = arith.constant 0 : index
    %c0_16 = arith.constant 0 : index
    %c0_17 = arith.constant 0 : index
    %7 = vector.load %arg6[%c0_15, %c0_16, %c0_17] : memref<3x3x128xf32, #tpu.memory_space<vmem>>, vector<1x1x128xf32>
    %8 = vector.shape_cast %7 : vector<1x1x128xf32> to vector<128xf32>
    %9 = vector.shape_cast %8 : vector<128xf32> to vector<1x1x1x128xf32>
    %10 = vector.broadcast %9 : vector<1x1x1x128xf32> to vector<1x2x2x128xf32>
    %11 = arith.mulf %6, %10 : vector<1x2x2x128xf32>
    %12 = arith.addf %4, %11 : vector<1x2x2x128xf32>
    %13 = vector.extract_strided_slice %1 {offsets = [0, 0, 0, 0], sizes = [1, 2, 2, 128], strides = [1, 1, 1, 1]} : vector<1x3x3x128xbf16> to vector<1x2x2x128xbf16>
    %14 = arith.extf %13 : vector<1x2x2x128xbf16> to vector<1x2x2x128xf32>
    %c0_18 = arith.constant 0 : index
    %c1 = arith.constant 1 : index
    %c0_19 = arith.constant 0 : index
    %15 = vector.load %arg6[%c0_18, %c1, %c0_19] : memref<3x3x128xf32, #tpu.memory_space<vmem>>, vector<1x1x128xf32>
    %16 = vector.shape_cast %15 : vector<1x1x128xf32> to vector<128xf32>
    %17 = vector.shape_cast %16 : vector<128xf32> to vector<1x1x1x128xf32>
    %18 = vector.broadcast %17 : vector<1x1x1x128xf32> to vector<1x2x2x128xf32>
    %19 = arith.mulf %14, %18 : vector<1x2x2x128xf32>
    %20 = arith.addf %12, %19 : vector<1x2x2x128xf32>
    %21 = vector.extract_strided_slice %0 {offsets = [0, 0, 1, 0], sizes = [1, 2, 2, 128], strides = [1, 1, 1, 1]} : vector<1x3x3x128xbf16> to vector<1x2x2x128xbf16>
    %22 = arith.extf %21 : vector<1x2x2x128xbf16> to vector<1x2x2x128xf32>
    %c0_20 = arith.constant 0 : index
    %c2 = arith.constant 2 : index
    %c0_21 = arith.constant 0 : index
    %23 = vector.load %arg6[%c0_20, %c2, %c0_21] : memref<3x3x128xf32, #tpu.memory_space<vmem>>, vector<1x1x128xf32>
    %24 = vector.shape_cast %23 : vector<1x1x128xf32> to vector<128xf32>
    %25 = vector.shape_cast %24 : vector<128xf32> to vector<1x1x1x128xf32>
    %26 = vector.broadcast %25 : vector<1x1x1x128xf32> to vector<1x2x2x128xf32>
    %27 = arith.mulf %22, %26 : vector<1x2x2x128xf32>
    %28 = arith.addf %20, %27 : vector<1x2x2x128xf32>
    %29 = vector.extract_strided_slice %2 {offsets = [0, 0, 0, 0], sizes = [1, 2, 2, 128], strides = [1, 1, 1, 1]} : vector<1x3x3x128xbf16> to vector<1x2x2x128xbf16>
    %30 = arith.extf %29 : vector<1x2x2x128xbf16> to vector<1x2x2x128xf32>
    %c1_22 = arith.constant 1 : index
    %c0_23 = arith.constant 0 : index
    %c0_24 = arith.constant 0 : index
    %31 = vector.load %arg6[%c1_22, %c0_23, %c0_24] : memref<3x3x128xf32, #tpu.memory_space<vmem>>, vector<1x1x128xf32>
    %32 = vector.shape_cast %31 : vector<1x1x128xf32> to vector<128xf32>
    %33 = vector.shape_cast %32 : vector<128xf32> to vector<1x1x1x128xf32>
    %34 = vector.broadcast %33 : vector<1x1x1x128xf32> to vector<1x2x2x128xf32>
    %35 = arith.mulf %30, %34 : vector<1x2x2x128xf32>
    %36 = arith.addf %28, %35 : vector<1x2x2x128xf32>
    %37 = vector.extract_strided_slice %3 {offsets = [0, 0, 0, 0], sizes = [1, 2, 2, 128], strides = [1, 1, 1, 1]} : vector<1x3x3x128xbf16> to vector<1x2x2x128xbf16>
    %38 = arith.extf %37 : vector<1x2x2x128xbf16> to vector<1x2x2x128xf32>
    %c1_25 = arith.constant 1 : index
    %c1_26 = arith.constant 1 : index
    %c0_27 = arith.constant 0 : index
    %39 = vector.load %arg6[%c1_25, %c1_26, %c0_27] : memref<3x3x128xf32, #tpu.memory_space<vmem>>, vector<1x1x128xf32>
    %40 = vector.shape_cast %39 : vector<1x1x128xf32> to vector<128xf32>
    %41 = vector.shape_cast %40 : vector<128xf32> to vector<1x1x1x128xf32>
    %42 = vector.broadcast %41 : vector<1x1x1x128xf32> to vector<1x2x2x128xf32>
    %43 = arith.mulf %38, %42 : vector<1x2x2x128xf32>
    %44 = arith.addf %36, %43 : vector<1x2x2x128xf32>
    %45 = vector.extract_strided_slice %2 {offsets = [0, 0, 1, 0], sizes = [1, 2, 2, 128], strides = [1, 1, 1, 1]} : vector<1x3x3x128xbf16> to vector<1x2x2x128xbf16>
    %46 = arith.extf %45 : vector<1x2x2x128xbf16> to vector<1x2x2x128xf32>
    %c1_28 = arith.constant 1 : index
    %c2_29 = arith.constant 2 : index
    %c0_30 = arith.constant 0 : index
    %47 = vector.load %arg6[%c1_28, %c2_29, %c0_30] : memref<3x3x128xf32, #tpu.memory_space<vmem>>, vector<1x1x128xf32>
    %48 = vector.shape_cast %47 : vector<1x1x128xf32> to vector<128xf32>
    %49 = vector.shape_cast %48 : vector<128xf32> to vector<1x1x1x128xf32>
    %50 = vector.broadcast %49 : vector<1x1x1x128xf32> to vector<1x2x2x128xf32>
    %51 = arith.mulf %46, %50 : vector<1x2x2x128xf32>
    %52 = arith.addf %44, %51 : vector<1x2x2x128xf32>
    %53 = vector.extract_strided_slice %0 {offsets = [0, 1, 0, 0], sizes = [1, 2, 2, 128], strides = [1, 1, 1, 1]} : vector<1x3x3x128xbf16> to vector<1x2x2x128xbf16>
    %54 = arith.extf %53 : vector<1x2x2x128xbf16> to vector<1x2x2x128xf32>
    %c2_31 = arith.constant 2 : index
    %c0_32 = arith.constant 0 : index
    %c0_33 = arith.constant 0 : index
    %55 = vector.load %arg6[%c2_31, %c0_32, %c0_33] : memref<3x3x128xf32, #tpu.memory_space<vmem>>, vector<1x1x128xf32>
    %56 = vector.shape_cast %55 : vector<1x1x128xf32> to vector<128xf32>
    %57 = vector.shape_cast %56 : vector<128xf32> to vector<1x1x1x128xf32>
    %58 = vector.broadcast %57 : vector<1x1x1x128xf32> to vector<1x2x2x128xf32>
    %59 = arith.mulf %54, %58 : vector<1x2x2x128xf32>
    %60 = arith.addf %52, %59 : vector<1x2x2x128xf32>
    %61 = vector.extract_strided_slice %1 {offsets = [0, 1, 0, 0], sizes = [1, 2, 2, 128], strides = [1, 1, 1, 1]} : vector<1x3x3x128xbf16> to vector<1x2x2x128xbf16>
    %62 = arith.extf %61 : vector<1x2x2x128xbf16> to vector<1x2x2x128xf32>
    %c2_34 = arith.constant 2 : index
    %c1_35 = arith.constant 1 : index
    %c0_36 = arith.constant 0 : index
    %63 = vector.load %arg6[%c2_34, %c1_35, %c0_36] : memref<3x3x128xf32, #tpu.memory_space<vmem>>, vector<1x1x128xf32>
    %64 = vector.shape_cast %63 : vector<1x1x128xf32> to vector<128xf32>
    %65 = vector.shape_cast %64 : vector<128xf32> to vector<1x1x1x128xf32>
    %66 = vector.broadcast %65 : vector<1x1x1x128xf32> to vector<1x2x2x128xf32>
    %67 = arith.mulf %62, %66 : vector<1x2x2x128xf32>
    %68 = arith.addf %60, %67 : vector<1x2x2x128xf32>
    %69 = vector.extract_strided_slice %0 {offsets = [0, 1, 1, 0], sizes = [1, 2, 2, 128], strides = [1, 1, 1, 1]} : vector<1x3x3x128xbf16> to vector<1x2x2x128xbf16>
    %70 = arith.extf %69 : vector<1x2x2x128xbf16> to vector<1x2x2x128xf32>
    %c2_37 = arith.constant 2 : index
    %c2_38 = arith.constant 2 : index
    %c0_39 = arith.constant 0 : index
    %71 = vector.load %arg6[%c2_37, %c2_38, %c0_39] : memref<3x3x128xf32, #tpu.memory_space<vmem>>, vector<1x1x128xf32>
    %72 = vector.shape_cast %71 : vector<1x1x128xf32> to vector<128xf32>
    %73 = vector.shape_cast %72 : vector<128xf32> to vector<1x1x1x128xf32>
    %74 = vector.broadcast %73 : vector<1x1x1x128xf32> to vector<1x2x2x128xf32>
    %75 = arith.mulf %70, %74 : vector<1x2x2x128xf32>
    %76 = arith.addf %68, %75 : vector<1x2x2x128xf32>
    %c0_40 = arith.constant 0 : index
    %c0_41 = arith.constant 0 : index
    %77 = vector.load %arg7[%c0_40, %c0_41] : memref<1x128xf32, #tpu.memory_space<vmem>>, vector<1x128xf32>
    %78 = vector.shape_cast %77 : vector<1x128xf32> to vector<128xf32>
    %79 = vector.shape_cast %78 : vector<128xf32> to vector<1x1x1x128xf32>
    %80 = vector.broadcast %79 : vector<1x1x1x128xf32> to vector<1x2x2x128xf32>
    %81 = arith.addf %76, %80 : vector<1x2x2x128xf32>
    %82 = arith.truncf %81 : vector<1x2x2x128xf32> to vector<1x2x2x128xbf16>
    %c0_42 = arith.constant 0 : index
    %c0_43 = arith.constant 0 : index
    %c0_44 = arith.constant 0 : index
    %c0_45 = arith.constant 0 : index
    %83 = vector.load %arg8[%c0_42, %c0_43, %c0_44, %c0_45] : memref<1x2x2x128xbf16, #tpu.memory_space<vmem>>, vector<1x2x2x128xbf16>
    tpu.vector_store %arg8[%c0_42, %c0_43, %c0_44, %c0_45], %82 {strides = array<i32>} : memref<1x2x2x128xbf16, #tpu.memory_space<vmem>>, vector<1x2x2x128xbf16>,
    return
  }
  func.func @transform_0(%arg0: i32, %arg1: i32) -> (i32, i32, i32, i32) {
    %c0_i32 = arith.constant 0 : i32
    %c0_i32_0 = arith.constant 0 : i32
    %c0_i32_1 = arith.constant 0 : i32
    return %arg0, %c0_i32, %c0_i32_0, %arg1 : i32, i32, i32, i32
  }
  func.func @transform_1(%arg0: i32, %arg1: i32) -> (i32, i32, i32, i32) {
    %c0_i32 = arith.constant 0 : i32
    %c0_i32_0 = arith.constant 0 : i32
    %c0_i32_1 = arith.constant 0 : i32
    return %arg0, %c0_i32, %c0_i32_0, %arg1 : i32, i32, i32, i32
  }
  func.func @transform_2(%arg0: i32, %arg1: i32) -> (i32, i32, i32, i32) {
    %c0_i32 = arith.constant 0 : i32
    %c0_i32_0 = arith.constant 0 : i32
    %c0_i32_1 = arith.constant 0 : i32
    return %arg0, %c0_i32, %c0_i32_0, %arg1 : i32, i32, i32, i32
  }
  func.func @transform_3(%arg0: i32, %arg1: i32) -> (i32, i32, i32, i32) {
    %c0_i32 = arith.constant 0 : i32
    %c0_i32_0 = arith.constant 0 : i32
    %c0_i32_1 = arith.constant 0 : i32
    return %arg0, %c0_i32, %c0_i32_0, %arg1 : i32, i32, i32, i32
  }
  func.func @transform_4(%arg0: i32, %arg1: i32) -> (i32, i32, i32) {
    %c0_i32 = arith.constant 0 : i32
    %c0_i32_0 = arith.constant 0 : i32
    %c0_i32_1 = arith.constant 0 : i32
    return %c0_i32, %c0_i32_0, %arg1 : i32, i32, i32
  }
  func.func @transform_5(%arg0: i32, %arg1: i32) -> (i32, i32) {
    %c0_i32 = arith.constant 0 : i32
    %c0_i32_0 = arith.constant 0 : i32
    return %c0_i32, %arg1 : i32, i32
  }
  func.func @transform_6(%arg0: i32, %arg1: i32) -> (i32, i32, i32, i32) {
    %c0_i32 = arith.constant 0 : i32
    %c0_i32_0 = arith.constant 0 : i32
    %c0_i32_1 = arith.constant 0 : i32
    return %arg0, %c0_i32, %c0_i32_0, %arg1 : i32, i32, i32, i32
  }
}

module attributes {stable_mosaic.version = 11 : i64} {
  func.func @_pw_mixer_kernel(%arg0: i32, %arg1: memref<8x128xbf16, #tpu.memory_space<vmem>>, %arg2: memref<128x128xbf16, #tpu.memory_space<vmem>>, %arg3: memref<1x128xf32, #tpu.memory_space<vmem>>, %arg4: memref<128x128xbf16, #tpu.memory_space<vmem>>, %arg5: memref<1x128xf32, #tpu.memory_space<vmem>>, %arg6: memref<128x128xbf16, #tpu.memory_space<vmem>>, %arg7: memref<1x128xf32, #tpu.memory_space<vmem>>, %arg8: memref<8x128xbf16, #tpu.memory_space<vmem>>) attributes {dimension_semantics = [#tpu.dimension_semantics<parallel>], iteration_bounds = array<i64: 1>, scalar_prefetch = 0 : i64, scratch_operands = 0 : i64, tpu.core_type = #tpu.core_type<tc>, window_params = [{transform_indices = @transform_0, window_bounds = array<i64: 8, 128>}, {pipeline_mode = #tpu.pipeline_mode<synchronous>, transform_indices = @transform_1, window_bounds = array<i64: 128, 128>}, {pipeline_mode = #tpu.pipeline_mode<synchronous>, transform_indices = @transform_2, window_bounds = array<i64: 1, 128>}, {pipeline_mode = #tpu.pipeline_mode<synchronous>, transform_indices = @transform_3, window_bounds = array<i64: 128, 128>}, {pipeline_mode = #tpu.pipeline_mode<synchronous>, transform_indices = @transform_4, window_bounds = array<i64: 1, 128>}, {pipeline_mode = #tpu.pipeline_mode<synchronous>, transform_indices = @transform_5, window_bounds = array<i64: 128, 128>}, {pipeline_mode = #tpu.pipeline_mode<synchronous>, transform_indices = @transform_6, window_bounds = array<i64: 1, 128>}, {transform_indices = @transform_7, window_bounds = array<i64: 8, 128>}]} {
    %c0 = arith.constant 0 : index
    %c0_0 = arith.constant 0 : index
    %0 = vector.load %arg1[%c0, %c0_0] : memref<8x128xbf16, #tpu.memory_space<vmem>>, vector<8x128xbf16>
    %c0_1 = arith.constant 0 : index
    %c0_2 = arith.constant 0 : index
    %1 = vector.load %arg2[%c0_1, %c0_2] : memref<128x128xbf16, #tpu.memory_space<vmem>>, vector<128x128xbf16>
    %cst = arith.constant dense<0.000000e+00> : vector<8x128xf32>
    %2 = tpu.matmul %0, %1, %cst {dimension_numbers = #tpu.dot_dimension_numbers<[1], [0], [0], [1], [0, 0, 1, 1], [], []>} : vector<8x128xbf16>, vector<128x128xbf16>, vector<8x128xf32> -> vector<8x128xf32>
    %c0_3 = arith.constant 0 : index
    %c0_4 = arith.constant 0 : index
    %3 = vector.load %arg3[%c0_3, %c0_4] : memref<1x128xf32, #tpu.memory_space<vmem>>, vector<1x128xf32>
    %4 = vector.broadcast %3 : vector<1x128xf32> to vector<8x128xf32>
    %5 = arith.addf %2, %4 : vector<8x128xf32>
    %6 = arith.truncf %5 : vector<8x128xf32> to vector<8x128xbf16>
    %c0_5 = arith.constant 0 : index
    %c0_6 = arith.constant 0 : index
    %7 = vector.load %arg4[%c0_5, %c0_6] : memref<128x128xbf16, #tpu.memory_space<vmem>>, vector<128x128xbf16>
    %cst_7 = arith.constant dense<0.000000e+00> : vector<8x128xf32>
    %8 = tpu.matmul %6, %7, %cst_7 {dimension_numbers = #tpu.dot_dimension_numbers<[1], [0], [0], [1], [0, 0, 1, 1], [], []>} : vector<8x128xbf16>, vector<128x128xbf16>, vector<8x128xf32> -> vector<8x128xf32>
    %c0_8 = arith.constant 0 : index
    %c0_9 = arith.constant 0 : index
    %9 = vector.load %arg5[%c0_8, %c0_9] : memref<1x128xf32, #tpu.memory_space<vmem>>, vector<1x128xf32>
    %10 = vector.broadcast %9 : vector<1x128xf32> to vector<8x128xf32>
    %11 = arith.addf %8, %10 : vector<8x128xf32>
    %cst_10 = arith.constant 5.000000e-01 : f32
    %12 = vector.broadcast %cst_10 : f32 to vector<8x128xf32>
    %13 = arith.mulf %12, %11 : vector<8x128xf32>
    %cst_11 = arith.constant 0.707106769 : f32
    %14 = vector.broadcast %cst_11 : f32 to vector<8x128xf32>
    %15 = arith.mulf %11, %14 : vector<8x128xf32>
    %cst_12 = arith.constant 0.000000e+00 : f32
    %16 = vector.broadcast %cst_12 : f32 to vector<8x128xf32>
    %17 = arith.cmpf oge, %15, %16 : vector<8x128xf32>
    %cst_13 = arith.constant 1.000000e+00 : f32
    %cst_14 = arith.constant -1.000000e+00 : f32
    %18 = vector.broadcast %cst_13 : f32 to vector<8x128xf32>
    %19 = vector.broadcast %cst_14 : f32 to vector<8x128xf32>
    %20 = arith.select %17, %18, %19 : vector<8x128xi1>, vector<8x128xf32>
    %21 = math.absf %15 : vector<8x128xf32>
    %cst_15 = arith.constant 0.327591091 : f32
    %22 = vector.broadcast %cst_15 : f32 to vector<8x128xf32>
    %23 = arith.mulf %22, %21 : vector<8x128xf32>
    %cst_16 = arith.constant 1.000000e+00 : f32
    %24 = vector.broadcast %cst_16 : f32 to vector<8x128xf32>
    %25 = arith.addf %24, %23 : vector<8x128xf32>
    %26 = tpu.reciprocal %25 {approx = true} : vector<8x128xf32> -> vector<8x128xf32>
    %cst_17 = arith.constant 1.06140542 : f32
    %27 = vector.broadcast %cst_17 : f32 to vector<8x128xf32>
    %28 = arith.mulf %27, %26 : vector<8x128xf32>
    %cst_18 = arith.constant -1.45315206 : f32
    %29 = vector.broadcast %cst_18 : f32 to vector<8x128xf32>
    %30 = arith.addf %28, %29 : vector<8x128xf32>
    %31 = arith.mulf %30, %26 : vector<8x128xf32>
    %cst_19 = arith.constant 1.42141378 : f32
    %32 = vector.broadcast %cst_19 : f32 to vector<8x128xf32>
    %33 = arith.addf %31, %32 : vector<8x128xf32>
    %34 = arith.mulf %33, %26 : vector<8x128xf32>
    %cst_20 = arith.constant -0.284496725 : f32
    %35 = vector.broadcast %cst_20 : f32 to vector<8x128xf32>
    %36 = arith.addf %34, %35 : vector<8x128xf32>
    %37 = arith.mulf %36, %26 : vector<8x128xf32>
    %cst_21 = arith.constant 0.254829586 : f32
    %38 = vector.broadcast %cst_21 : f32 to vector<8x128xf32>
    %39 = arith.addf %37, %38 : vector<8x128xf32>
    %40 = arith.mulf %39, %26 : vector<8x128xf32>
    %cst_22 = arith.constant 0.000000e+00 : f32
    %41 = vector.broadcast %cst_22 : f32 to vector<8x128xf32>
    %42 = arith.subf %41, %21 : vector<8x128xf32>
    %43 = arith.mulf %42, %21 : vector<8x128xf32>
    %44 = math.exp %43 : vector<8x128xf32>
    %45 = arith.mulf %40, %44 : vector<8x128xf32>
    %cst_23 = arith.constant 1.000000e+00 : f32
    %46 = vector.broadcast %cst_23 : f32 to vector<8x128xf32>
    %47 = arith.subf %46, %45 : vector<8x128xf32>
    %48 = arith.mulf %20, %47 : vector<8x128xf32>
    %cst_24 = arith.constant 1.000000e+00 : f32
    %49 = vector.broadcast %cst_24 : f32 to vector<8x128xf32>
    %50 = arith.addf %49, %48 : vector<8x128xf32>
    %51 = arith.mulf %13, %50 : vector<8x128xf32>
    %52 = arith.truncf %51 : vector<8x128xf32> to vector<8x128xbf16>
    %c0_25 = arith.constant 0 : index
    %c0_26 = arith.constant 0 : index
    %53 = vector.load %arg6[%c0_25, %c0_26] : memref<128x128xbf16, #tpu.memory_space<vmem>>, vector<128x128xbf16>
    %cst_27 = arith.constant dense<0.000000e+00> : vector<8x128xf32>
    %54 = tpu.matmul %52, %53, %cst_27 {dimension_numbers = #tpu.dot_dimension_numbers<[1], [0], [0], [1], [0, 0, 1, 1], [], []>} : vector<8x128xbf16>, vector<128x128xbf16>, vector<8x128xf32> -> vector<8x128xf32>
    %c0_28 = arith.constant 0 : index
    %c0_29 = arith.constant 0 : index
    %55 = vector.load %arg7[%c0_28, %c0_29] : memref<1x128xf32, #tpu.memory_space<vmem>>, vector<1x128xf32>
    %56 = vector.broadcast %55 : vector<1x128xf32> to vector<8x128xf32>
    %57 = arith.addf %54, %56 : vector<8x128xf32>
    %58 = arith.addf %5, %57 : vector<8x128xf32>
    %59 = arith.truncf %58 : vector<8x128xf32> to vector<8x128xbf16>
    %c0_30 = arith.constant 0 : index
    %c0_31 = arith.constant 0 : index
    %60 = vector.load %arg8[%c0_30, %c0_31] : memref<8x128xbf16, #tpu.memory_space<vmem>>, vector<8x128xbf16>
    tpu.vector_store %arg8[%c0_30, %c0_31], %59 {strides = array<i32>} : memref<8x128xbf16, #tpu.memory_space<vmem>>, vector<8x128xbf16>,
    return
  }
  func.func @transform_0(%arg0: i32) -> (i32, i32) {
    %c0_i32 = arith.constant 0 : i32
    %c0_i32_0 = arith.constant 0 : i32
    return %arg0, %c0_i32 : i32, i32
  }
  func.func @transform_1(%arg0: i32) -> (i32, i32) {
    %c0_i32 = arith.constant 0 : i32
    %c0_i32_0 = arith.constant 0 : i32
    %c0_i32_1 = arith.constant 0 : i32
    return %c0_i32, %c0_i32_0 : i32, i32
  }
  func.func @transform_2(%arg0: i32) -> (i32, i32) {
    %c0_i32 = arith.constant 0 : i32
    %c0_i32_0 = arith.constant 0 : i32
    %c0_i32_1 = arith.constant 0 : i32
    return %c0_i32, %c0_i32_0 : i32, i32
  }
  func.func @transform_3(%arg0: i32) -> (i32, i32) {
    %c0_i32 = arith.constant 0 : i32
    %c0_i32_0 = arith.constant 0 : i32
    %c0_i32_1 = arith.constant 0 : i32
    return %c0_i32, %c0_i32_0 : i32, i32
  }
  func.func @transform_4(%arg0: i32) -> (i32, i32) {
    %c0_i32 = arith.constant 0 : i32
    %c0_i32_0 = arith.constant 0 : i32
    %c0_i32_1 = arith.constant 0 : i32
    return %c0_i32, %c0_i32_0 : i32, i32
  }
  func.func @transform_5(%arg0: i32) -> (i32, i32) {
    %c0_i32 = arith.constant 0 : i32
    %c0_i32_0 = arith.constant 0 : i32
    %c0_i32_1 = arith.constant 0 : i32
    return %c0_i32, %c0_i32_0 : i32, i32
  }
  func.func @transform_6(%arg0: i32) -> (i32, i32) {
    %c0_i32 = arith.constant 0 : i32
    %c0_i32_0 = arith.constant 0 : i32
    %c0_i32_1 = arith.constant 0 : i32
    return %c0_i32, %c0_i32_0 : i32, i32
  }
  func.func @transform_7(%arg0: i32) -> (i32, i32) {
    %c0_i32 = arith.constant 0 : i32
    %c0_i32_0 = arith.constant 0 : i32
    return %arg0, %c0_i32 : i32, i32
  }
}

module attributes {stable_mosaic.version = 11 : i64} {
  func.func @_pool_fc_kernel(%arg0: memref<2x4x128xbf16, #tpu.memory_space<vmem>>, %arg1: memref<128x128xbf16, #tpu.memory_space<vmem>>, %arg2: memref<1x128xf32, #tpu.memory_space<vmem>>, %arg3: memref<2x128xf32, #tpu.memory_space<vmem>>) attributes {dimension_semantics = [], scalar_prefetch = 0 : i64, scratch_operands = 0 : i64, tpu.core_type = #tpu.core_type<tc>} {
    %c0 = arith.constant 0 : index
    %c0_0 = arith.constant 0 : index
    %c0_1 = arith.constant 0 : index
    %0 = vector.load %arg0[%c0, %c0_0, %c0_1] : memref<2x4x128xbf16, #tpu.memory_space<vmem>>, vector<2x4x128xbf16>
    %1 = arith.extf %0 : vector<2x4x128xbf16> to vector<2x4x128xf32>
    %cst = arith.constant dense<0.000000e+00> : vector<2x128xf32>
    %2 = vector.multi_reduction <add>, %1, %cst [1] : vector<2x4x128xf32> to vector<2x128xf32>
    %cst_2 = arith.constant 4.000000e+00 : f32
    %3 = vector.broadcast %cst_2 : f32 to vector<2x128xf32>
    %4 = arith.divf %2, %3 : vector<2x128xf32>
    %5 = arith.truncf %4 : vector<2x128xf32> to vector<2x128xbf16>
    %c0_3 = arith.constant 0 : index
    %c0_4 = arith.constant 0 : index
    %6 = vector.load %arg1[%c0_3, %c0_4] : memref<128x128xbf16, #tpu.memory_space<vmem>>, vector<128x128xbf16>
    %cst_5 = arith.constant dense<0.000000e+00> : vector<2x128xf32>
    %7 = tpu.matmul %5, %6, %cst_5 {dimension_numbers = #tpu.dot_dimension_numbers<[1], [0], [0], [1], [0, 0, 1, 1], [], []>} : vector<2x128xbf16>, vector<128x128xbf16>, vector<2x128xf32> -> vector<2x128xf32>
    %c0_6 = arith.constant 0 : index
    %c0_7 = arith.constant 0 : index
    %8 = vector.load %arg2[%c0_6, %c0_7] : memref<1x128xf32, #tpu.memory_space<vmem>>, vector<1x128xf32>
    %9 = vector.broadcast %8 : vector<1x128xf32> to vector<2x128xf32>
    %10 = arith.addf %7, %9 : vector<2x128xf32>
    %c0_8 = arith.constant 0 : index
    %c0_9 = arith.constant 0 : index
    %11 = vector.load %arg3[%c0_8, %c0_9] : memref<2x128xf32, #tpu.memory_space<vmem>>, vector<2x128xf32>
    tpu.vector_store %arg3[%c0_8, %c0_9], %10 {strides = array<i32>} : memref<2x128xf32, #tpu.memory_space<vmem>>, vector<2x128xf32>,
    return
  }
}

</mosaic_0001>

<llo_original>
// kernel: _lambda_.7
$region0: #{_lambda_.7}
  #allocation0 [shape = 'u32[]', space=smem, size = 0x4, offset = 0x4, fixed_abs, tag = 'smem constant byte address 0x4 - core index']
  #allocation1 [shape = 'u32[144,128]{1,0:T(1,128)}', space=vmem, size = 0x12000, scoped, tag = 'internal scratch']
  %s0 = inlined_call_operand.vmem [shape: bf16[128,128], index: 0, kind: input, shape index: {}]
  %s1 = inlined_call_operand.vmem [shape: bf16[128,128], index: 1, kind: input, shape index: {}]
  %s2 = inlined_call_operand.vmem [shape: f32[1,128], index: 2, kind: input, shape index: {}]
  %s3 = inlined_call_operand.vmem [shape: bf16[128,128], index: 3, kind: output, shape index: {}]
  %s4 = sld [smem:[#allocation0]]
  $region22: #{_lambda_.7} parent=0
    _
  %s6 = ssub.s32 1, %s4
  %s7 = scalar_select 0, %s6, %s4
  // Predicated region
  $region2: #{_lambda_.7} parent=0 // pred_check
    _
  $region3: #{_lambda_.7} parent=0 // pred_check_branch
    %9 = sbr.rel (0) target = $region5
  $region4: #{_lambda_.7} parent=0 // pred_region
    _
  $region5: #{_lambda_.7} parent=0 // pred_fallthru
    _
  // Predicated region
  $region6: #{_lambda_.7} parent=0 // pred_check
    _
  $region7: #{_lambda_.7} parent=0 // pred_check_branch
    %11 = sbr.rel (0) target = $region9
  $region8: #{_lambda_.7} parent=0 // pred_region
    _
  $region9: #{_lambda_.7} parent=0 // pred_fallthru
    _
  // Predicated region
  $region10: #{_lambda_.7} parent=0 // pred_check
    _
  $region11: #{_lambda_.7} parent=0 // pred_check_branch
    %13 = sbr.rel (0) target = $region13
  $region12: #{_lambda_.7} parent=0 // pred_region
    _
  $region13: #{_lambda_.7} parent=0 // pred_fallthru
    _
  %v15 = vld [vmem:[%s0] sm:$0xf]
  %v16 = vld [vmem:[%s0 + $0x4] sm:$0xf]
  %v17 = vld [vmem:[%s0 + $0x8] sm:$0xf]
  %v18 = vld [vmem:[%s0 + $0xc] sm:$0xf]
  %v19 = vld [vmem:[%s0 + $0x10] sm:$0xf]
  %v20 = vld [vmem:[%s0 + $0x14] sm:$0xf]
  %v21 = vld [vmem:[%s0 + $0x18] sm:$0xf]
  %v22 = vld [vmem:[%s0 + $0x1c] sm:$0xf]
  %v23 = vld [vmem:[%s0 + $0x20] sm:$0xf]
  %v24 = vld [vmem:[%s0 + $0x24] sm:$0xf]
  %v25 = vld [vmem:[%s0 + $0x28] sm:$0xf]
  %v26 = vld [vmem:[%s0 + $0x2c] sm:$0xf]
  %v27 = vld [vmem:[%s0 + $0x30] sm:$0xf]
  %v28 = vld [vmem:[%s0 + $0x34] sm:$0xf]
  %v29 = vld [vmem:[%s0 + $0x38] sm:$0xf]
  %v30 = vld [vmem:[%s0 + $0x3c] sm:$0xf]
  %v31 = vld [vmem:[%s1] sm:$0xf]
  %v32 = vld [vmem:[%s1 + $0x4] sm:$0xf]
  %v33 = vld [vmem:[%s1 + $0x8] sm:$0xf]
  %v34 = vld [vmem:[%s1 + $0xc] sm:$0xf]
  %v35 = vld [vmem:[%s1 + $0x10] sm:$0xf]
  %v36 = vld [vmem:[%s1 + $0x14] sm:$0xf]
  %v37 = vld [vmem:[%s1 + $0x18] sm:$0xf]
  %v38 = vld [vmem:[%s1 + $0x1c] sm:$0xf]
  %v39 = vld [vmem:[%s1 + $0x20] sm:$0xf]
  %v40 = vld [vmem:[%s1 + $0x24] sm:$0xf]
  %v41 = vld [vmem:[%s1 + $0x28] sm:$0xf]
  %v42 = vld [vmem:[%s1 + $0x2c] sm:$0xf]
  %v43 = vld [vmem:[%s1 + $0x30] sm:$0xf]
  %v44 = vld [vmem:[%s1 + $0x34] sm:$0xf]
  %v45 = vld [vmem:[%s1 + $0x38] sm:$0xf]
  %v46 = vld [vmem:[%s1 + $0x3c] sm:$0xf]
  %v47 = vld [vmem:[%s2] sm:$0x1]
  %v49 = vlaneseq
  %v50 = vshrl.u32 %v49, 7
  %v51 = vsub.s32 0, %v50
  %v52 = vrot.slane %v47, %v51
  %v70 = vunpack.c.l.b16 %v15
  %v71 = vunpack.c.l.b16 %v16
  %v72 = vunpack.c.l.b16 %v17
  %v73 = vunpack.c.l.b16 %v18
  %v74 = vunpack.c.l.b16 %v19
  %v75 = vunpack.c.l.b16 %v20
  %v76 = vunpack.c.l.b16 %v21
  %v77 = vunpack.c.l.b16 %v22
  %v78 = vunpack.c.l.b16 %v23
  %v79 = vunpack.c.l.b16 %v24
  %v80 = vunpack.c.l.b16 %v25
  %v81 = vunpack.c.l.b16 %v26
  %v82 = vunpack.c.l.b16 %v27
  %v83 = vunpack.c.l.b16 %v28
  %v84 = vunpack.c.l.b16 %v29
  %v85 = vunpack.c.l.b16 %v30
  %v86 = vpack.c.b16 %v71, %v70
  %v87 = vpack.c.b16 %v73, %v72
  %v88 = vpack.c.b16 %v75, %v74
  %v89 = vpack.c.b16 %v77, %v76
  %v90 = vpack.c.b16 %v79, %v78
  %v91 = vpack.c.b16 %v81, %v80
  %v92 = vpack.c.b16 %v83, %v82
  %v93 = vpack.c.b16 %v85, %v84
  %v118 = vunpack.c.l.b16 %v31
  %v119 = vunpack.c.l.b16 %v32
  %v120 = vunpack.c.l.b16 %v33
  %v121 = vunpack.c.l.b16 %v34
  %v122 = vunpack.c.l.b16 %v35
  %v123 = vunpack.c.l.b16 %v36
  %v124 = vunpack.c.l.b16 %v37
  %v125 = vunpack.c.l.b16 %v38
  %v126 = vunpack.c.l.b16 %v39
  %v127 = vunpack.c.l.b16 %v40
  %v128 = vunpack.c.l.b16 %v41
  %v129 = vunpack.c.l.b16 %v42
  %v130 = vunpack.c.l.b16 %v43
  %v131 = vunpack.c.l.b16 %v44
  %v132 = vunpack.c.l.b16 %v45
  %v133 = vunpack.c.l.b16 %v46
  %v134 = vpack.c.b16 %v119, %v118
  %v135 = vpack.c.b16 %v121, %v120
  %v136 = vpack.c.b16 %v123, %v122
  %v137 = vpack.c.b16 %v125, %v124
  %v138 = vpack.c.b16 %v127, %v126
  %v139 = vpack.c.b16 %v129, %v128
  %v140 = vpack.c.b16 %v131, %v130
  %v141 = vpack.c.b16 %v133, %v132
  %150 = vmatprep.subr.bf16.mxu0 0
  %151 = vmatpush1.bf16.msra.mxu0 %v141
  %152 = vmatprep.subr.bf16.mxu0 0
  %153 = vmatpush1.bf16.msra.mxu0 %v140
  %154 = vmatprep.subr.bf16.mxu0 0
  %155 = vmatpush1.bf16.msra.mxu0 %v139
  %156 = vmatprep.subr.bf16.mxu0 0
  %157 = vmatpush1.bf16.msra.mxu0 %v138
  %158 = vmatprep.subr.bf16.mxu0 0
  %159 = vmatpush1.bf16.msra.mxu0 %v137
  %160 = vmatprep.subr.bf16.mxu0 0
  %161 = vmatpush1.bf16.msra.mxu0 %v136
  %162 = vmatprep.subr.bf16.mxu0 0
  %163 = vmatpush1.bf16.msra.mxu0 %v135
  %164 = vmatprep.subr.bf16.mxu0 0
  %165 = vmatpush1.bf16.msra.mxu0 %v134
  %166 = vmatprep.subr.bf16.mxu0 0
  %167 = vmatpush2.bf16.msra.mxu0 0
  %168 = vmatprep.subr.bf16.mxu0 0
  %169 = vmatpush2.bf16.msra.mxu0 0
  %170 = vmatprep.subr.bf16.mxu0 0
  %171 = vmatpush2.bf16.msra.mxu0 0
  %172 = vmatprep.subr.bf16.mxu0 0
  %173 = vmatpush2.bf16.msra.mxu0 0
  %174 = vmatprep.subr.bf16.mxu0 0
  %175 = vmatpush2.bf16.msra.mxu0 0
  %176 = vmatprep.subr.bf16.mxu0 0
  %177 = vmatpush2.bf16.msra.mxu0 0
  %178 = vmatprep.subr.bf16.mxu0 0
  %179 = vmatpush2.bf16.msra.mxu0 0
  %180 = vmatprep.subr.bf16.mxu0 0
  %181 = vmatpush2.bf16.msra.mxu0 0
  %182 = vmatprep.mubr.bf16.mxu0 0
  %183 = vmatmul.mubr.bf16.gmra.mxu0 %v86
  %v184 = vpop.f32.mrf.mxu0
  %v185 = vadd.f32 %v52, %v184
  %v186 = vpop.f32.mrf.mxu0
  %v187 = vpop.f32.mrf.mxu0
  %v188 = vadd.f32 %v52, %v187
  %v189 = vpop.f32.mrf.mxu0
  %190 = vmatprep.mubr.bf16.mxu0 0
  %191 = vmatmul.mubr.bf16.gmra.mxu0 %v87
  %v192 = vpop.f32.mrf.mxu0
  %v193 = vadd.f32 %v52, %v192
  %v194 = vpop.f32.mrf.mxu0
  %v195 = vpop.f32.mrf.mxu0
  %v196 = vadd.f32 %v52, %v195
  %v197 = vpop.f32.mrf.mxu0
  %198 = vmatprep.mubr.bf16.mxu0 0
  %199 = vmatmul.mubr.bf16.gmra.mxu0 %v88
  %v200 = vpop.f32.mrf.mxu0
  %v201 = vadd.f32 %v52, %v200
  %v202 = vpop.f32.mrf.mxu0
  %v203 = vpop.f32.mrf.mxu0
  %v204 = vadd.f32 %v52, %v203
  %v205 = vpop.f32.mrf.mxu0
  %206 = vmatprep.mubr.bf16.mxu0 0
  %207 = vmatmul.mubr.bf16.gmra.mxu0 %v89
  %v208 = vpop.f32.mrf.mxu0
  %v209 = vadd.f32 %v52, %v208
  %v210 = vpop.f32.mrf.mxu0
  %v211 = vpop.f32.mrf.mxu0
  %v212 = vadd.f32 %v52, %v211
  %v213 = vpop.f32.mrf.mxu0
  %214 = vmatprep.mubr.bf16.mxu0 0
  %215 = vmatmul.mubr.bf16.gmra.mxu0 %v90
  %v216 = vpop.f32.mrf.mxu0
  %v217 = vadd.f32 %v52, %v216
  %v218 = vpop.f32.mrf.mxu0
  %v219 = vpop.f32.mrf.mxu0
  %v220 = vadd.f32 %v52, %v219
  %v221 = vpop.f32.mrf.mxu0
  %222 = vmatprep.mubr.bf16.mxu0 0
  %223 = vmatmul.mubr.bf16.gmra.mxu0 %v91
  %v224 = vpop.f32.mrf.mxu0
  %v225 = vadd.f32 %v52, %v224
  %v226 = vpop.f32.mrf.mxu0
  %v227 = vpop.f32.mrf.mxu0
  %v228 = vadd.f32 %v52, %v227
  %v229 = vpop.f32.mrf.mxu0
  %230 = vmatprep.mubr.bf16.mxu0 0
  %231 = vmatmul.mubr.bf16.gmra.mxu0 %v92
  %v232 = vpop.f32.mrf.mxu0
  %v233 = vadd.f32 %v52, %v232
  %v234 = vpop.f32.mrf.mxu0
  %v235 = vpop.f32.mrf.mxu0
  %v236 = vadd.f32 %v52, %v235
  %v237 = vpop.f32.mrf.mxu0
  %238 = vmatprep.mubr.bf16.mxu0 0
  %239 = vmatmul.mubr.bf16.gmra.mxu0 %v93
  %v240 = vpop.f32.mrf.mxu0
  %v241 = vadd.f32 %v52, %v240
  %v242 = vpop.f32.mrf.mxu0
  %v243 = vpop.f32.mrf.mxu0
  %v244 = vadd.f32 %v52, %v243
  %v245 = vpop.f32.mrf.mxu0
  %246 = vdwg.mxu0
  %v247 = vmul.f32 %v185, 0.5
  %v248 = vmul.f32 %v188, 0.5
  %v249 = vmul.f32 %v193, 0.5
  %v250 = vmul.f32 %v196, 0.5
  %v251 = vmul.f32 %v201, 0.5
  %v252 = vmul.f32 %v204, 0.5
  %v253 = vmul.f32 %v209, 0.5
  %v254 = vmul.f32 %v212, 0.5
  %v255 = vmul.f32 %v217, 0.5
  %v256 = vmul.f32 %v220, 0.5
  %v257 = vmul.f32 %v225, 0.5
  %v258 = vmul.f32 %v228, 0.5
  %v259 = vmul.f32 %v233, 0.5
  %v260 = vmul.f32 %v236, 0.5
  %v261 = vmul.f32 %v241, 0.5
  %v262 = vmul.f32 %v244, 0.5
  %v263 = vmul.f32 %v185, 0.70710677
  %v264 = vmul.f32 %v188, 0.70710677
  %v265 = vmul.f32 %v193, 0.70710677
  %v266 = vmul.f32 %v196, 0.70710677
  %v267 = vmul.f32 %v201, 0.70710677
  %v268 = vmul.f32 %v204, 0.70710677
  %v269 = vmul.f32 %v209, 0.70710677
  %v270 = vmul.f32 %v212, 0.70710677
  %v271 = vmul.f32 %v217, 0.70710677
  %v272 = vmul.f32 %v220, 0.70710677
  %v273 = vmul.f32 %v225, 0.70710677
  %v274 = vmul.f32 %v228, 0.70710677
  %v275 = vmul.f32 %v233, 0.70710677
  %v276 = vmul.f32 %v236, 0.70710677
  %v277 = vmul.f32 %v241, 0.70710677
  %v278 = vmul.f32 %v244, 0.70710677
  %vm279 = vcmp.ge.f32.partialorder %v263, 0.0
  %vm280 = vcmp.ge.f32.partialorder %v264, 0.0
  %vm281 = vcmp.ge.f32.partialorder %v265, 0.0
  %vm282 = vcmp.ge.f32.partialorder %v266, 0.0
  %vm283 = vcmp.ge.f32.partialorder %v267, 0.0
  %vm284 = vcmp.ge.f32.partialorder %v268, 0.0
  %vm285 = vcmp.ge.f32.partialorder %v269, 0.0
  %vm286 = vcmp.ge.f32.partialorder %v270, 0.0
  %vm287 = vcmp.ge.f32.partialorder %v271, 0.0
  %vm288 = vcmp.ge.f32.partialorder %v272, 0.0
  %vm289 = vcmp.ge.f32.partialorder %v273, 0.0
  %vm290 = vcmp.ge.f32.partialorder %v274, 0.0
  %vm291 = vcmp.ge.f32.partialorder %v275, 0.0
  %vm292 = vcmp.ge.f32.partialorder %v276, 0.0
  %vm293 = vcmp.ge.f32.partialorder %v277, 0.0
  %vm294 = vcmp.ge.f32.partialorder %v278, 0.0
  %v295 = vsel %vm279, 1.0, -1.0
  %v296 = vsel %vm280, 1.0, -1.0
  %v297 = vsel %vm281, 1.0, -1.0
  %v298 = vsel %vm282, 1.0, -1.0
  %v299 = vsel %vm283, 1.0, -1.0
  %v300 = vsel %vm284, 1.0, -1.0
  %v301 = vsel %vm285, 1.0, -1.0
  %v302 = vsel %vm286, 1.0, -1.0
  %v303 = vsel %vm287, 1.0, -1.0
  %v304 = vsel %vm288, 1.0, -1.0
  %v305 = vsel %vm289, 1.0, -1.0
  %v306 = vsel %vm290, 1.0, -1.0
  %v307 = vsel %vm291, 1.0, -1.0
  %v308 = vsel %vm292, 1.0, -1.0
  %v309 = vsel %vm293, 1.0, -1.0
  %v310 = vsel %vm294, 1.0, -1.0
  %v311 = vand.u32 2147483647, %v263
  %v312 = vand.u32 2147483647, %v264
  %v313 = vand.u32 2147483647, %v265
  %v314 = vand.u32 2147483647, %v266
  %v315 = vand.u32 2147483647, %v267
  %v316 = vand.u32 2147483647, %v268
  %v317 = vand.u32 2147483647, %v269
  %v318 = vand.u32 2147483647, %v270
  %v319 = vand.u32 2147483647, %v271
  %v320 = vand.u32 2147483647, %v272
  %v321 = vand.u32 2147483647, %v273
  %v322 = vand.u32 2147483647, %v274
  %v323 = vand.u32 2147483647, %v275
  %v324 = vand.u32 2147483647, %v276
  %v325 = vand.u32 2147483647, %v277
  %v326 = vand.u32 2147483647, %v278
  %v327 = vmul.f32 %v311, 0.3275911
  %v328 = vmul.f32 %v312, 0.3275911
  %v329 = vmul.f32 %v313, 0.3275911
  %v330 = vmul.f32 %v314, 0.3275911
  %v331 = vmul.f32 %v315, 0.3275911
  %v332 = vmul.f32 %v316, 0.3275911
  %v333 = vmul.f32 %v317, 0.3275911
  %v334 = vmul.f32 %v318, 0.3275911
  %v335 = vmul.f32 %v319, 0.3275911
  %v336 = vmul.f32 %v320, 0.3275911
  %v337 = vmul.f32 %v321, 0.3275911
  %v338 = vmul.f32 %v322, 0.3275911
  %v339 = vmul.f32 %v323, 0.3275911
  %v340 = vmul.f32 %v324, 0.3275911
  %v341 = vmul.f32 %v325, 0.3275911
  %v342 = vmul.f32 %v326, 0.3275911
  %v343 = vadd.f32 %v327, 1.0
  %v344 = vadd.f32 %v328, 1.0
  %v345 = vadd.f32 %v329, 1.0
  %v346 = vadd.f32 %v330, 1.0
  %v347 = vadd.f32 %v331, 1.0
  %v348 = vadd.f32 %v332, 1.0
  %v349 = vadd.f32 %v333, 1.0
  %v350 = vadd.f32 %v334, 1.0
  %v351 = vadd.f32 %v335, 1.0
  %v352 = vadd.f32 %v336, 1.0
  %v353 = vadd.f32 %v337, 1.0
  %v354 = vadd.f32 %v338, 1.0
  %v355 = vadd.f32 %v339, 1.0
  %v356 = vadd.f32 %v340, 1.0
  %v357 = vadd.f32 %v341, 1.0
  %v358 = vadd.f32 %v342, 1.0
  %v359 = vrcp.pop %v343
  %v360 = vrcp.pop %v344
  %v361 = vrcp.pop %v345
  %v362 = vrcp.pop %v346
  %v363 = vrcp.pop %v347
  %v364 = vrcp.pop %v348
  %v365 = vrcp.pop %v349
  %v366 = vrcp.pop %v350
  %v367 = vrcp.pop %v351
  %v368 = vrcp.pop %v352
  %v369 = vrcp.pop %v353
  %v370 = vrcp.pop %v354
  %v371 = vrcp.pop %v355
  %v372 = vrcp.pop %v356
  %v373 = vrcp.pop %v357
  %v374 = vrcp.pop %v358
  %v375 = vmul.f32 %v359, 1.0614054
  %v376 = vmul.f32 %v360, 1.0614054
  %v377 = vmul.f32 %v361, 1.0614054
  %v378 = vmul.f32 %v362, 1.0614054
  %v379 = vmul.f32 %v363, 1.0614054
  %v380 = vmul.f32 %v364, 1.0614054
  %v381 = vmul.f32 %v365, 1.0614054
  %v382 = vmul.f32 %v366, 1.0614054
  %v383 = vmul.f32 %v367, 1.0614054
  %v384 = vmul.f32 %v368, 1.0614054
  %v385 = vmul.f32 %v369, 1.0614054
  %v386 = vmul.f32 %v370, 1.0614054
  %v387 = vmul.f32 %v371, 1.0614054
  %v388 = vmul.f32 %v372, 1.0614054
  %v389 = vmul.f32 %v373, 1.0614054
  %v390 = vmul.f32 %v374, 1.0614054
  %v391 = vadd.f32 %v375, -1.4531521
  %v392 = vadd.f32 %v376, -1.4531521
  %v393 = vadd.f32 %v377, -1.4531521
  %v394 = vadd.f32 %v378, -1.4531521
  %v395 = vadd.f32 %v379, -1.4531521
  %v396 = vadd.f32 %v380, -1.4531521
  %v397 = vadd.f32 %v381, -1.4531521
  %v398 = vadd.f32 %v382, -1.4531521
  %v399 = vadd.f32 %v383, -1.4531521
  %v400 = vadd.f32 %v384, -1.4531521
  %v401 = vadd.f32 %v385, -1.4531521
  %v402 = vadd.f32 %v386, -1.4531521
  %v403 = vadd.f32 %v387, -1.4531521
  %v404 = vadd.f32 %v388, -1.4531521
  %v405 = vadd.f32 %v389, -1.4531521
  %v406 = vadd.f32 %v390, -1.4531521
  %v407 = vmul.f32 %v391, %v359
  %v408 = vmul.f32 %v392, %v360
  %v409 = vmul.f32 %v393, %v361
  %v410 = vmul.f32 %v394, %v362
  %v411 = vmul.f32 %v395, %v363
  %v412 = vmul.f32 %v396, %v364
  %v413 = vmul.f32 %v397, %v365
  %v414 = vmul.f32 %v398, %v366
  %v415 = vmul.f32 %v399, %v367
  %v416 = vmul.f32 %v400, %v368
  %v417 = vmul.f32 %v401, %v369
  %v418 = vmul.f32 %v402, %v370
  %v419 = vmul.f32 %v403, %v371
  %v420 = vmul.f32 %v404, %v372
  %v421 = vmul.f32 %v405, %v373
  %v422 = vmul.f32 %v406, %v374
  %v423 = vadd.f32 %v407, 1.4214138
  %v424 = vadd.f32 %v408, 1.4214138
  %v425 = vadd.f32 %v409, 1.4214138
  %v426 = vadd.f32 %v410, 1.4214138
  %v427 = vadd.f32 %v411, 1.4214138
  %v428 = vadd.f32 %v412, 1.4214138
  %v429 = vadd.f32 %v413, 1.4214138
  %v430 = vadd.f32 %v414, 1.4214138
  %v431 = vadd.f32 %v415, 1.4214138
  %v432 = vadd.f32 %v416, 1.4214138
  %v433 = vadd.f32 %v417, 1.4214138
  %v434 = vadd.f32 %v418, 1.4214138
  %v435 = vadd.f32 %v419, 1.4214138
  %v436 = vadd.f32 %v420, 1.4214138
  %v437 = vadd.f32 %v421, 1.4214138
  %v438 = vadd.f32 %v422, 1.4214138
  %v439 = vmul.f32 %v423, %v359
  %v440 = vmul.f32 %v424, %v360
  %v441 = vmul.f32 %v425, %v361
  %v442 = vmul.f32 %v426, %v362
  %v443 = vmul.f32 %v427, %v363
  %v444 = vmul.f32 %v428, %v364
  %v445 = vmul.f32 %v429, %v365
  %v446 = vmul.f32 %v430, %v366
  %v447 = vmul.f32 %v431, %v367
  %v448 = vmul.f32 %v432, %v368
  %v449 = vmul.f32 %v433, %v369
  %v450 = vmul.f32 %v434, %v370
  %v451 = vmul.f32 %v435, %v371
  %v452 = vmul.f32 %v436, %v372
  %v453 = vmul.f32 %v437, %v373
  %v454 = vmul.f32 %v438, %v374
  %v455 = vadd.f32 %v439, -0.28449672
  %v456 = vadd.f32 %v440, -0.28449672
  %v457 = vadd.f32 %v441, -0.28449672
  %v458 = vadd.f32 %v442, -0.28449672
  %v459 = vadd.f32 %v443, -0.28449672
  %v460 = vadd.f32 %v444, -0.28449672
  %v461 = vadd.f32 %v445, -0.28449672
  %v462 = vadd.f32 %v446, -0.28449672
  %v463 = vadd.f32 %v447, -0.28449672
  %v464 = vadd.f32 %v448, -0.28449672
  %v465 = vadd.f32 %v449, -0.28449672
  %v466 = vadd.f32 %v450, -0.28449672
  %v467 = vadd.f32 %v451, -0.28449672
  %v468 = vadd.f32 %v452, -0.28449672
  %v469 = vadd.f32 %v453, -0.28449672
  %v470 = vadd.f32 %v454, -0.28449672
  %v471 = vmul.f32 %v455, %v359
  %v472 = vmul.f32 %v456, %v360
  %v473 = vmul.f32 %v457, %v361
  %v474 = vmul.f32 %v458, %v362
  %v475 = vmul.f32 %v459, %v363
  %v476 = vmul.f32 %v460, %v364
  %v477 = vmul.f32 %v461, %v365
  %v478 = vmul.f32 %v462, %v366
  %v479 = vmul.f32 %v463, %v367
  %v480 = vmul.f32 %v464, %v368
  %v481 = vmul.f32 %v465, %v369
  %v482 = vmul.f32 %v466, %v370
  %v483 = vmul.f32 %v467, %v371
  %v484 = vmul.f32 %v468, %v372
  %v485 = vmul.f32 %v469, %v373
  %v486 = vmul.f32 %v470, %v374
  %v487 = vadd.f32 %v471, 0.2548296
  %v488 = vadd.f32 %v472, 0.2548296
  %v489 = vadd.f32 %v473, 0.2548296
  %v490 = vadd.f32 %v474, 0.2548296
  %v491 = vadd.f32 %v475, 0.2548296
  %v492 = vadd.f32 %v476, 0.2548296
  %v493 = vadd.f32 %v477, 0.2548296
  %v494 = vadd.f32 %v478, 0.2548296
  %v495 = vadd.f32 %v479, 0.2548296
  %v496 = vadd.f32 %v480, 0.2548296
  %v497 = vadd.f32 %v481, 0.2548296
  %v498 = vadd.f32 %v482, 0.2548296
  %v499 = vadd.f32 %v483, 0.2548296
  %v500 = vadd.f32 %v484, 0.2548296
  %v501 = vadd.f32 %v485, 0.2548296
  %v502 = vadd.f32 %v486, 0.2548296
  %v503 = vmul.f32 %v487, %v359
  %v504 = vmul.f32 %v488, %v360
  %v505 = vmul.f32 %v489, %v361
  %v506 = vmul.f32 %v490, %v362
  %v507 = vmul.f32 %v491, %v363
  %v508 = vmul.f32 %v492, %v364
  %v509 = vmul.f32 %v493, %v365
  %v510 = vmul.f32 %v494, %v366
  %v511 = vmul.f32 %v495, %v367
  %v512 = vmul.f32 %v496, %v368
  %v513 = vmul.f32 %v497, %v369
  %v514 = vmul.f32 %v498, %v370
  %v515 = vmul.f32 %v499, %v371
  %v516 = vmul.f32 %v500, %v372
  %v517 = vmul.f32 %v501, %v373
  %v518 = vmul.f32 %v502, %v374
  %v519 = vsub.f32 0.0, %v311
  %v520 = vsub.f32 0.0, %v312
  %v521 = vsub.f32 0.0, %v313
  %v522 = vsub.f32 0.0, %v314
  %v523 = vsub.f32 0.0, %v315
  %v524 = vsub.f32 0.0, %v316
  %v525 = vsub.f32 0.0, %v317
  %v526 = vsub.f32 0.0, %v318
  %v527 = vsub.f32 0.0, %v319
  %v528 = vsub.f32 0.0, %v320
  %v529 = vsub.f32 0.0, %v321
  %v530 = vsub.f32 0.0, %v322
  %v531 = vsub.f32 0.0, %v323
  %v532 = vsub.f32 0.0, %v324
  %v533 = vsub.f32 0.0, %v325
  %v534 = vsub.f32 0.0, %v326
  %v535 = vmul.f32 %v519, %v311
  %v536 = vmul.f32 %v520, %v312
  %v537 = vmul.f32 %v521, %v313
  %v538 = vmul.f32 %v522, %v314
  %v539 = vmul.f32 %v523, %v315
  %v540 = vmul.f32 %v524, %v316
  %v541 = vmul.f32 %v525, %v317
  %v542 = vmul.f32 %v526, %v318
  %v543 = vmul.f32 %v527, %v319
  %v544 = vmul.f32 %v528, %v320
  %v545 = vmul.f32 %v529, %v321
  %v546 = vmul.f32 %v530, %v322
  %v547 = vmul.f32 %v531, %v323
  %v548 = vmul.f32 %v532, %v324
  %v549 = vmul.f32 %v533, %v325
  %v550 = vmul.f32 %v534, %v326
  %v551 = vmul.f32 %v535, 1.442695
  %v552 = vpow.pop %v551
  %v553 = vmul.f32 %v536, 1.442695
  %v554 = vpow.pop %v553
  %v555 = vmul.f32 %v537, 1.442695
  %v556 = vpow.pop %v555
  %v557 = vmul.f32 %v538, 1.442695
  %v558 = vpow.pop %v557
  %v559 = vmul.f32 %v539, 1.442695
  %v560 = vpow.pop %v559
  %v561 = vmul.f32 %v540, 1.442695
  %v562 = vpow.pop %v561
  %v563 = vmul.f32 %v541, 1.442695
  %v564 = vpow.pop %v563
  %v565 = vmul.f32 %v542, 1.442695
  %v566 = vpow.pop %v565
  %v567 = vmul.f32 %v543, 1.442695
  %v568 = vpow.pop %v567
  %v569 = vmul.f32 %v544, 1.442695
  %v570 = vpow.pop %v569
  %v571 = vmul.f32 %v545, 1.442695
  %v572 = vpow.pop %v571
  %v573 = vmul.f32 %v546, 1.442695
  %v574 = vpow.pop %v573
  %v575 = vmul.f32 %v547, 1.442695
  %v576 = vpow.pop %v575
  %v577 = vmul.f32 %v548, 1.442695
  %v578 = vpow.pop %v577
  %v579 = vmul.f32 %v549, 1.442695
  %v580 = vpow.pop %v579
  %v581 = vmul.f32 %v550, 1.442695
  %v582 = vpow.pop %v581
  %v583 = vmul.f32 %v503, %v552
  %v584 = vmul.f32 %v504, %v554
  %v585 = vmul.f32 %v505, %v556
  %v586 = vmul.f32 %v506, %v558
  %v587 = vmul.f32 %v507, %v560
  %v588 = vmul.f32 %v508, %v562
  %v589 = vmul.f32 %v509, %v564
  %v590 = vmul.f32 %v510, %v566
  %v591 = vmul.f32 %v511, %v568
  %v592 = vmul.f32 %v512, %v570
  %v593 = vmul.f32 %v513, %v572
  %v594 = vmul.f32 %v514, %v574
  %v595 = vmul.f32 %v515, %v576
  %v596 = vmul.f32 %v516, %v578
  %v597 = vmul.f32 %v517, %v580
  %v598 = vmul.f32 %v518, %v582
  %v599 = vsub.f32 1.0, %v583
  %v600 = vsub.f32 1.0, %v584
  %v601 = vsub.f32 1.0, %v585
  %v602 = vsub.f32 1.0, %v586
  %v603 = vsub.f32 1.0, %v587
  %v604 = vsub.f32 1.0, %v588
  %v605 = vsub.f32 1.0, %v589
  %v606 = vsub.f32 1.0, %v590
  %v607 = vsub.f32 1.0, %v591
  %v608 = vsub.f32 1.0, %v592
  %v609 = vsub.f32 1.0, %v593
  %v610 = vsub.f32 1.0, %v594
  %v611 = vsub.f32 1.0, %v595
  %v612 = vsub.f32 1.0, %v596
  %v613 = vsub.f32 1.0, %v597
  %v614 = vsub.f32 1.0, %v598
  %v615 = vmul.f32 %v295, %v599
  %v616 = vmul.f32 %v296, %v600
  %v617 = vmul.f32 %v297, %v601
  %v618 = vmul.f32 %v298, %v602
  %v619 = vmul.f32 %v299, %v603
  %v620 = vmul.f32 %v300, %v604
  %v621 = vmul.f32 %v301, %v605
  %v622 = vmul.f32 %v302, %v606
  %v623 = vmul.f32 %v303, %v607
  %v624 = vmul.f32 %v304, %v608
  %v625 = vmul.f32 %v305, %v609
  %v626 = vmul.f32 %v306, %v610
  %v627 = vmul.f32 %v307, %v611
  %v628 = vmul.f32 %v308, %v612
  %v629 = vmul.f32 %v309, %v613
  %v630 = vmul.f32 %v310, %v614
  %v631 = vadd.f32 %v615, 1.0
  %v632 = vadd.f32 %v616, 1.0
  %v633 = vadd.f32 %v617, 1.0
  %v634 = vadd.f32 %v618, 1.0
  %v635 = vadd.f32 %v619, 1.0
  %v636 = vadd.f32 %v620, 1.0
  %v637 = vadd.f32 %v621, 1.0
  %v638 = vadd.f32 %v622, 1.0
  %v639 = vadd.f32 %v623, 1.0
  %v640 = vadd.f32 %v624, 1.0
  %v641 = vadd.f32 %v625, 1.0
  %v642 = vadd.f32 %v626, 1.0
  %v643 = vadd.f32 %v627, 1.0
  %v644 = vadd.f32 %v628, 1.0
  %v645 = vadd.f32 %v629, 1.0
  %v646 = vadd.f32 %v630, 1.0
  %v647 = vmul.f32 %v247, %v631
  %v648 = vmul.f32 %v248, %v632
  %v649 = vmul.f32 %v249, %v633
  %v650 = vmul.f32 %v250, %v634
  %v651 = vmul.f32 %v251, %v635
  %v652 = vmul.f32 %v252, %v636
  %v653 = vmul.f32 %v253, %v637
  %v654 = vmul.f32 %v254, %v638
  %v655 = vmul.f32 %v255, %v639
  %v656 = vmul.f32 %v256, %v640
  %v657 = vmul.f32 %v257, %v641
  %v658 = vmul.f32 %v258, %v642
  %v659 = vmul.f32 %v259, %v643
  %v660 = vmul.f32 %v260, %v644
  %v661 = vmul.f32 %v261, %v645
  %v662 = vmul.f32 %v262, %v646
  %v663 = vpack.c.bf16 %v648, %v647
  %v664 = vpack.c.bf16 %v650, %v649
  %v665 = vpack.c.bf16 %v652, %v651
  %v666 = vpack.c.bf16 %v654, %v653
  %v667 = vpack.c.bf16 %v656, %v655
  %v668 = vpack.c.bf16 %v658, %v657
  %v669 = vpack.c.bf16 %v660, %v659
  %v670 = vpack.c.bf16 %v662, %v661
  %v679 = vunpack.c.l.b16 %v663
  %v680 = vunpack.c.h.b16 %v663
  %v681 = vunpack.c.l.b16 %v664
  %v682 = vunpack.c.h.b16 %v664
  %v683 = vunpack.c.l.b16 %v665
  %v684 = vunpack.c.h.b16 %v665
  %v685 = vunpack.c.l.b16 %v666
  %v686 = vunpack.c.h.b16 %v666
  %v687 = vunpack.c.l.b16 %v667
  %v688 = vunpack.c.h.b16 %v667
  %v689 = vunpack.c.l.b16 %v668
  %v690 = vunpack.c.h.b16 %v668
  %v691 = vunpack.c.l.b16 %v669
  %v692 = vunpack.c.h.b16 %v669
  %v693 = vunpack.c.l.b16 %v670
  %v694 = vunpack.c.h.b16 %v670
  %v695 = vpack.c.b16 %v679, %v679
  %v696 = vpack.c.b16 %v680, %v680
  %v697 = vpack.c.b16 %v681, %v681
  %v698 = vpack.c.b16 %v682, %v682
  %v699 = vpack.c.b16 %v683, %v683
  %v700 = vpack.c.b16 %v684, %v684
  %v701 = vpack.c.b16 %v685, %v685
  %v702 = vpack.c.b16 %v686, %v686
  %v703 = vpack.c.b16 %v687, %v687
  %v704 = vpack.c.b16 %v688, %v688
  %v705 = vpack.c.b16 %v689, %v689
  %v706 = vpack.c.b16 %v690, %v690
  %v707 = vpack.c.b16 %v691, %v691
  %v708 = vpack.c.b16 %v692, %v692
  %v709 = vpack.c.b16 %v693, %v693
  %v710 = vpack.c.b16 %v694, %v694
  %727 = vst [vmem:[%s3] sm:$0xf] %v695
  %728 = vst [vmem:[%s3 + $0x4] sm:$0xf] %v696
  %729 = vst [vmem:[%s3 + $0x8] sm:$0xf] %v697
  %730 = vst [vmem:[%s3 + $0xc] sm:$0xf] %v698
  %731 = vst [vmem:[%s3 + $0x10] sm:$0xf] %v699
  %732 = vst [vmem:[%s3 + $0x14] sm:$0xf] %v700
  %733 = vst [vmem:[%s3 + $0x18] sm:$0xf] %v701
  %734 = vst [vmem:[%s3 + $0x1c] sm:$0xf] %v702
  %735 = vst [vmem:[%s3 + $0x20] sm:$0xf] %v703
  %736 = vst [vmem:[%s3 + $0x24] sm:$0xf] %v704
  %737 = vst [vmem:[%s3 + $0x28] sm:$0xf] %v705
  %738 = vst [vmem:[%s3 + $0x2c] sm:$0xf] %v706
  %739 = vst [vmem:[%s3 + $0x30] sm:$0xf] %v707
  %740 = vst [vmem:[%s3 + $0x34] sm:$0xf] %v708
  %741 = vst [vmem:[%s3 + $0x38] sm:$0xf] %v709
  %742 = vst [vmem:[%s3 + $0x3c] sm:$0xf] %v710
  // Predicated region
  $region14: #{_lambda_.7} parent=0 // pred_check
    _
  $region15: #{_lambda_.7} parent=0 // pred_check_branch
    %744 = sbr.rel (0) target = $region17
  $region16: #{_lambda_.7} parent=0 // pred_region
    _
  $region17: #{_lambda_.7} parent=0 // pred_fallthru
    _
  // Predicated region
  $region18: #{_lambda_.7} parent=0 // pred_check
    _
  $region19: #{_lambda_.7} parent=0 // pred_check_branch
    %746 = sbr.rel (0) target = $region21
  $region20: #{_lambda_.7} parent=0 // pred_region
    _
  $region21: #{_lambda_.7} parent=0 // pred_fallthru
    _

// kernel: _lambda_.9
$region0: #{_lambda_.9}
  #allocation0 [shape = 'u32[]', space=smem, size = 0x4, offset = 0x4, fixed_abs, tag = 'smem constant byte address 0x4 - core index']
  #allocation1 [shape = 'u32[144,128]{1,0:T(1,128)}', space=vmem, size = 0x12000, scoped, tag = 'internal scratch']
  %s0 = inlined_call_operand.vmem [shape: bf16[2,6,6,128], index: 0, kind: input, shape index: {}]
  %s1 = inlined_call_operand.vmem [shape: f32[3,3,128], index: 1, kind: input, shape index: {}]
  %s2 = inlined_call_operand.vmem [shape: f32[1,128], index: 2, kind: input, shape index: {}]
  %s3 = inlined_call_operand.vmem [shape: bf16[2,4,4,128], index: 3, kind: output, shape index: {}]
  %s4 = sld [smem:[#allocation0]]
  $region45: #{_lambda_.9} parent=0
    _
  %s6 = ssub.s32 1, %s4
  %s7 = scalar_select 0, %s6, %s4
  loop: start=0, step=1, limit=4
  $region2: #{_lambda_.9} parent=0 // loop_pre_header
    _
  $region3: #{_lambda_.9} parent=0 // loop_header
    %s9 = sphi 0, %s13
    %p10 = scmp.ge.s32.totalorder %s9, 4
    %s16 = sphi 0, %s28
    %s17 = sphi 0, %s24
    %s18 = sphi 0, %s16
    %s19 = sphi 0, %s17
    %s20 = sphi 0, %s18
    %s21 = sphi 0, %s19
    %s33 = sphi 0, %s35
    %s36 = sphi 0, %s33
    %s37 = sphi 0, %s36
    %s53 = sphi 0, %s37
    %s59 = sphi 0, %s61
    %s62 = sphi 0, %s59
    %s63 = sphi 0, %s62
    %s79 = sphi 0, %s63
    %s85 = sphi 0, %s87
    %s88 = sphi 0, %s85
    %s89 = sphi 0, %s88
    %s105 = sphi 0, %s89
    %s113 = sphi 0, %s115
    %s116 = sphi 0, %s113
    %s117 = sphi 0, %s116
    %s133 = sphi 0, %s117
  $region4: #{_lambda_.9} parent=0 // loop_header_branch
    %12 = sbr.rel (%p10) target = $region8
  $region5: #{_lambda_.9} parent=0 // loop_body
    %s14 = ssub.s32 %s9, 1
    %s15 = ssub.s32 %s9, 2
    %s22 = sadd.s32 1, %s17
    %p23 = scmp.ge.s32.totalorder %s22, 1
    %s24 = scalar_select %p23, 0, %s22
    %s25 = sadd.s32 1, %s16
    %s26 = scalar_select %p23, %s25, %s16
    %p27 = scmp.ge.s32.totalorder %s26, 2
    %s28 = scalar_select %p27, 0, %s26
    %s29 = ssub.s32 %s16, %s28
    %s30 = ssub.s32 %s17, %s24
    %s31 = sor.u32 %s29, %s30
    %p32 = scmp.eq.s32.totalorder %s31, 0
    %s34 = sadd.s32 %s33, 1
    %s35 = scalar_select %p32, %s33, %s34
    %p38 = pneg %p32
    %p39 = scmp.eq.s32.totalorder %s9, 1
    %p40 = por %p38, %p39
    %p41 = scmp.ne.s32.totalorder %s33, %s36
    %p42 = scmp.eq.s32.totalorder %s9, 0
    %p43 = por %p41, %p42
    %p44 = scmp.ne.s32.totalorder %s33, %s36
    %p45 = scmp.eq.s32.totalorder %s14, 1
    %p46 = por %p44, %p45
    %p47 = scmp.ne.s32.totalorder %s36, %s37
    %p48 = scmp.eq.s32.totalorder %s14, 0
    %p49 = por %p47, %p48
    %p50 = scmp.ne.s32.totalorder %s36, %s37
    %p51 = scmp.eq.s32.totalorder %s15, 1
    %p52 = por %p50, %p51
    %p54 = scmp.ne.s32.totalorder %s37, %s53
    %p55 = scmp.eq.s32.totalorder %s15, 0
    %p56 = por %p54, %p55
    %s57 = ssub.s32 %s17, %s24
    %p58 = scmp.eq.s32.totalorder %s57, 0
    %s60 = sadd.s32 %s59, 1
    %s61 = scalar_select %p58, %s59, %s60
    %p64 = pneg %p58
    %p65 = scmp.eq.s32.totalorder %s9, 1
    %p66 = por %p64, %p65
    %p67 = scmp.ne.s32.totalorder %s59, %s62
    %p68 = scmp.eq.s32.totalorder %s9, 0
    %p69 = por %p67, %p68
    %p70 = scmp.ne.s32.totalorder %s59, %s62
    %p71 = scmp.eq.s32.totalorder %s14, 1
    %p72 = por %p70, %p71
    %p73 = scmp.ne.s32.totalorder %s62, %s63
    %p74 = scmp.eq.s32.totalorder %s14, 0
    %p75 = por %p73, %p74
    %p76 = scmp.ne.s32.totalorder %s62, %s63
    %p77 = scmp.eq.s32.totalorder %s15, 1
    %p78 = por %p76, %p77
    %p80 = scmp.ne.s32.totalorder %s63, %s79
    %p81 = scmp.eq.s32.totalorder %s15, 0
    %p82 = por %p80, %p81
    %s83 = ssub.s32 %s17, %s24
    %p84 = scmp.eq.s32.totalorder %s83, 0
    %s86 = sadd.s32 %s85, 1
    %s87 = scalar_select %p84, %s85, %s86
    %p90 = pneg %p84
    %p91 = scmp.eq.s32.totalorder %s9, 1
    %p92 = por %p90, %p91
    %p93 = scmp.ne.s32.totalorder %s85, %s88
    %p94 = scmp.eq.s32.totalorder %s9, 0
    %p95 = por %p93, %p94
    %p96 = scmp.ne.s32.totalorder %s85, %s88
    %p97 = scmp.eq.s32.totalorder %s14, 1
    %p98 = por %p96, %p97
    %p99 = scmp.ne.s32.totalorder %s88, %s89
    %p100 = scmp.eq.s32.totalorder %s14, 0
    %p101 = por %p99, %p100
    %p102 = scmp.ne.s32.totalorder %s88, %s89
    %p103 = scmp.eq.s32.totalorder %s15, 1
    %p104 = por %p102, %p103
    %p106 = scmp.ne.s32.totalorder %s89, %s105
    %p107 = scmp.eq.s32.totalorder %s15, 0
    %p108 = por %p106, %p107
    %s109 = ssub.s32 %s16, %s28
    %s110 = ssub.s32 %s17, %s24
    %s111 = sor.u32 %s109, %s110
    %p112 = scmp.eq.s32.totalorder %s111, 0
    %s114 = sadd.s32 %s113, 1
    %s115 = scalar_select %p112, %s113, %s114
    %p118 = pneg %p112
    %p119 = scmp.eq.s32.totalorder %s9, 1
    %p120 = por %p118, %p119
    %p121 = scmp.ne.s32.totalorder %s113, %s116
    %p122 = scmp.eq.s32.totalorder %s9, 0
    %p123 = por %p121, %p122
    %p124 = scmp.ne.s32.totalorder %s113, %s116
    %p125 = scmp.eq.s32.totalorder %s14, 1
    %p126 = por %p124, %p125
    %p127 = scmp.ne.s32.totalorder %s116, %s117
    %p128 = scmp.eq.s32.totalorder %s14, 0
    %p129 = por %p127, %p128
    %p130 = scmp.ne.s32.totalorder %s116, %s117
    %p131 = scmp.eq.s32.totalorder %s15, 1
    %p132 = por %p130, %p131
    %p134 = scmp.ne.s32.totalorder %s117, %s133
    %p135 = scmp.eq.s32.totalorder %s15, 0
    %p136 = por %p134, %p135
    %p137 = scmp.le.s32.totalorder 1, %s9
    %p138 = scmp.lt.s32.totalorder %s9, 3
    %p139 = pnand %p137, %p138
    %p140 = pneg %p139
    // Predicated region
    $region9: #{_lambda_.9} parent=5 // pred_check
      _
    $region10: #{_lambda_.9} parent=5 // pred_check_branch
      %142 = sbr.rel (%p139) target = $region12
    $region11: #{_lambda_.9} parent=5 // pred_region
      %s143 = ssub.s32 %s9, 1
      // Predicated region
      $region13: #{_lambda_.9} parent=11 // pred_check
        %p144 = pneg %p75
      $region14: #{_lambda_.9} parent=11 // pred_check_branch
        %146 = sbr.rel (%p144) target = $region16
      $region15: #{_lambda_.9} parent=11 // pred_region
        %p147 = scmp.lt.s32.totalorder %s19, 0
        %s148 = scalar_select %p147, %s19, 0
        %s149 = smul.addr %s148, 4
        %s150 = scalar_lea.vmem %s1, %s149
      $region16: #{_lambda_.9} parent=11 // pred_fallthru
        _
      // Predicated region
      $region17: #{_lambda_.9} parent=11 // pred_check
        %p151 = pneg %p101
      $region18: #{_lambda_.9} parent=11 // pred_check_branch
        %153 = sbr.rel (%p151) target = $region20
      $region19: #{_lambda_.9} parent=11 // pred_region
        %p154 = scmp.lt.s32.totalorder %s19, 0
        %s155 = scalar_select %p154, %s19, 0
        %s156 = scalar_lea.vmem %s2, %s155
      $region20: #{_lambda_.9} parent=11 // pred_fallthru
        _
    $region12: #{_lambda_.9} parent=5 // pred_fallthru
      _
    %p157 = scmp.lt.s32.totalorder %s9, 2
    // Predicated region
    $region21: #{_lambda_.9} parent=5 // pred_check
      %p158 = pneg %p157
    $region22: #{_lambda_.9} parent=5 // pred_check_branch
      %160 = sbr.rel (%p158) target = $region24
    $region23: #{_lambda_.9} parent=5 // pred_region
      // Predicated region
      $region25: #{_lambda_.9} parent=23 // pred_check
        %p161 = pneg %p43
      $region26: #{_lambda_.9} parent=23 // pred_check_branch
        %163 = sbr.rel (%p161) target = $region28
      $region27: #{_lambda_.9} parent=23 // pred_region
        %p164 = scmp.lt.s32.totalorder %s16, 1
        %s165 = scalar_select %p164, %s16, 1
        %p166 = scmp.lt.s32.totalorder %s17, 0
        %s167 = scalar_select %p166, %s17, 0
        %s168 = smul.addr %s165, 6
        %s169 = sadd.s32 %s167, %s168
        %s170 = smul.addr %s169, 4
        %s171 = scalar_lea.vmem %s0, %s170
      $region28: #{_lambda_.9} parent=23 // pred_fallthru
        _
    $region24: #{_lambda_.9} parent=5 // pred_fallthru
      _
    %p172 = scmp.le.s32.totalorder 1, %s9
    %p173 = scmp.lt.s32.totalorder %s9, 3
    %p174 = pnand %p172, %p173
    %p175 = pneg %p174
    // Predicated region
    $region29: #{_lambda_.9} parent=5 // pred_check
      _
    $region30: #{_lambda_.9} parent=5 // pred_check_branch
      %177 = sbr.rel (%p174) target = $region32
    $region31: #{_lambda_.9} parent=5 // pred_region
      %s178 = ssub.s32 %s9, 1
      %p179 = scmp.lt.s32.totalorder %s18, 1
      %s180 = scalar_select %p179, %s18, 1
      %p181 = scmp.lt.s32.totalorder %s19, 0
      %s182 = scalar_select %p181, %s19, 0
      %s183 = smul.addr %s180, 6
      %s184 = sadd.s32 %s182, %s183
      %s185 = smul.addr %s184, 4
      %s186 = scalar_lea.vmem %s0, %s185
      %p187 = pneg %p49
      %p188 = pneg %p46
      %p189 = scmp.lt.s32.totalorder %s19, 0
      %s190 = scalar_select %p189, %s19, 0
      %s191 = smul.addr %s190, 4
      %s192 = scalar_lea.vmem %s1, %s191
      %p193 = pneg %p75
      %p194 = pneg %p72
      %p195 = scmp.lt.s32.totalorder %s19, 0
      %s196 = scalar_select %p195, %s19, 0
      %s197 = scalar_lea.vmem %s2, %s196
      %p198 = pneg %p101
      %p199 = pneg %p98
      %p200 = pneg %p129
      %p201 = pneg %p126
      %p202 = scmp.lt.s32.totalorder %s18, 1
      %s203 = scalar_select %p202, %s18, 1
      %p204 = scmp.lt.s32.totalorder %s19, 0
      %s205 = scalar_select %p204, %s19, 0
      %s206 = smul.addr %s203, 4
      %s207 = sadd.s32 %s205, %s206
      %s208 = smul.addr %s207, 2
      %s209 = scalar_lea.vmem %s3, %s208
      %p210 = scmp.lt.s32.totalorder %s18, 1
      %s211 = scalar_select %p210, %s18, 1
      %p212 = scmp.lt.s32.totalorder %s19, 0
      %s213 = scalar_select %p212, %s19, 0
      %s214 = smul.addr %s211, 6
      %s215 = sadd.s32 %s213, %s214
      %s216 = smul.addr %s215, 4
      %s217 = scalar_lea.vmem %s0, %s216
      %p218 = scmp.lt.s32.totalorder %s19, 0
      %s219 = scalar_select %p218, %s19, 0
      %s220 = smul.addr %s219, 4
      %s221 = scalar_lea.vmem %s1, %s220
      %p222 = scmp.lt.s32.totalorder %s19, 0
      %s223 = scalar_select %p222, %s19, 0
      %s224 = scalar_lea.vmem %s2, %s223
      %p225 = scmp.lt.s32.totalorder %s18, 1
      %s226 = scalar_select %p225, %s18, 1
      %p227 = scmp.lt.s32.totalorder %s19, 0
      %s228 = scalar_select %p227, %s19, 0
      %s229 = smul.addr %s226, 4
      %s230 = sadd.s32 %s228, %s229
      %s231 = smul.addr %s230, 2
      %s232 = scalar_lea.vmem %s3, %s231
      %v233 = vld [vmem:[%s217] sm:$0x7]
      %v234 = vld [vmem:[%s217 + $0x4] sm:$0x7]
      %v235 = vld [vmem:[%s217 + $0x8] sm:$0x7]
      %v236 = vld [vmem:[%s217 + $0xc] sm:$0x7]
      %v237 = vld [vmem:[%s217 + $0x10] sm:$0x7]
      %v238 = vld [vmem:[%s217 + $0x14] sm:$0x7]
      %v239 = vunpack.c.l.bf16 %v233
      %v240 = vunpack.c.l.bf16 %v234
      %v241 = vunpack.c.l.bf16 %v235
      %v242 = vunpack.c.l.bf16 %v236
      %v243 = vld [vmem:[%s221] sm:$0x1]
      %v244 = vlaneseq
      %v245 = vshrl.u32 %v244, 7
      %v246 = vsub.s32 0, %v245
      %v247 = vrot.slane %v243, %v246
      %v248 = vmul.f32 %v239, %v247
      %v249 = vmul.f32 %v240, %v247
      %v250 = vmul.f32 %v241, %v247
      %v251 = vmul.f32 %v242, %v247
      %v252 = vadd.f32 %v248, 0.0
      %v253 = vadd.f32 %v249, 0.0
      %v254 = vadd.f32 %v250, 0.0
      %v255 = vadd.f32 %v251, 0.0
      %v256 = vld [vmem:[%s221 + $0x1] sm:$0x1]
      %v257 = vlaneseq
      %v258 = vshrl.u32 %v257, 7
      %v259 = vsub.s32 0, %v258
      %v260 = vrot.slane %v256, %v259
      %v261 = vmul.f32 %v239, %v260
      %v262 = vmul.f32 %v240, %v260
      %v263 = vmul.f32 %v241, %v260
      %v264 = vmul.f32 %v242, %v260
      %v269 = vrot.slane %v261, 1
      %v270 = vrot.slane %v262, 1
      %v271 = vrot.slane %v263, 1
      %v272 = vrot.slane %v264, 1
      %v277 = vadd.f32 %v252, %v269
      %v278 = vadd.f32 %v253, %v270
      %v279 = vadd.f32 %v254, %v271
      %v280 = vadd.f32 %v255, %v272
      %v281 = vld [vmem:[%s221 + $0x2] sm:$0x1]
      %v282 = vlaneseq
      %v283 = vshrl.u32 %v282, 7
      %v284 = vsub.s32 0, %v283
      %v285 = vrot.slane %v281, %v284
      %v286 = vmul.f32 %v239, %v285
      %v287 = vmul.f32 %v240, %v285
      %v288 = vmul.f32 %v241, %v285
      %v289 = vmul.f32 %v242, %v285
      %v294 = vrot.slane %v286, 2
      %v295 = vrot.slane %v287, 2
      %v296 = vrot.slane %v288, 2
      %v297 = vrot.slane %v289, 2
      %v302 = vadd.f32 %v277, %v294
      %v303 = vadd.f32 %v278, %v295
      %v304 = vadd.f32 %v279, %v296
      %v305 = vadd.f32 %v280, %v297
      %v306 = vunpack.c.l.bf16 %v237
      %s307 = scalar_lea.vmem %s221, 4
      %v308 = vld [vmem:[%s307] sm:$0x1]
      %v309 = vlaneseq
      %v310 = vshrl.u32 %v309, 7
      %v311 = vsub.s32 0, %v310
      %v312 = vrot.slane %v308, %v311
      %v313 = vmul.f32 %v240, %v312
      %v314 = vmul.f32 %v241, %v312
      %v315 = vmul.f32 %v242, %v312
      %v316 = vmul.f32 %v306, %v312
      %v317 = vadd.f32 %v302, %v313
      %v318 = vadd.f32 %v303, %v314
      %v319 = vadd.f32 %v304, %v315
      %v320 = vadd.f32 %v305, %v316
      %v321 = vld [vmem:[%s307 + $0x1] sm:$0x1]
      %v322 = vlaneseq
      %v323 = vshrl.u32 %v322, 7
      %v324 = vsub.s32 0, %v323
      %v325 = vrot.slane %v321, %v324
      %v326 = vmul.f32 %v240, %v325
      %v327 = vmul.f32 %v241, %v325
      %v328 = vmul.f32 %v242, %v325
      %v329 = vmul.f32 %v306, %v325
      %v334 = vrot.slane %v326, 1
      %v335 = vrot.slane %v327, 1
      %v336 = vrot.slane %v328, 1
      %v337 = vrot.slane %v329, 1
      %v342 = vadd.f32 %v317, %v334
      %v343 = vadd.f32 %v318, %v335
      %v344 = vadd.f32 %v319, %v336
      %v345 = vadd.f32 %v320, %v337
      %v346 = vld [vmem:[%s307 + $0x2] sm:$0x1]
      %v347 = vlaneseq
      %v348 = vshrl.u32 %v347, 7
      %v349 = vsub.s32 0, %v348
      %v350 = vrot.slane %v346, %v349
      %v351 = vmul.f32 %v240, %v350
      %v352 = vmul.f32 %v241, %v350
      %v353 = vmul.f32 %v242, %v350
      %v354 = vmul.f32 %v306, %v350
      %v359 = vrot.slane %v351, 2
      %v360 = vrot.slane %v352, 2
      %v361 = vrot.slane %v353, 2
      %v362 = vrot.slane %v354, 2
      %v367 = vadd.f32 %v342, %v359
      %v368 = vadd.f32 %v343, %v360
      %v369 = vadd.f32 %v344, %v361
      %v370 = vadd.f32 %v345, %v362
      %v371 = vunpack.c.l.bf16 %v238
      %s372 = scalar_lea.vmem %s221, 8
      %v373 = vld [vmem:[%s372] sm:$0x1]
      %v374 = vlaneseq
      %v375 = vshrl.u32 %v374, 7
      %v376 = vsub.s32 0, %v375
      %v377 = vrot.slane %v373, %v376
      %v378 = vmul.f32 %v241, %v377
      %v379 = vmul.f32 %v242, %v377
      %v380 = vmul.f32 %v306, %v377
      %v381 = vmul.f32 %v371, %v377
      %v382 = vadd.f32 %v367, %v378
      %v383 = vadd.f32 %v368, %v379
      %v384 = vadd.f32 %v369, %v380
      %v385 = vadd.f32 %v370, %v381
      %v386 = vld [vmem:[%s372 + $0x1] sm:$0x1]
      %v387 = vlaneseq
      %v388 = vshrl.u32 %v387, 7
      %v389 = vsub.s32 0, %v388
      %v390 = vrot.slane %v386, %v389
      %v391 = vmul.f32 %v241, %v390
      %v392 = vmul.f32 %v242, %v390
      %v393 = vmul.f32 %v306, %v390
      %v394 = vmul.f32 %v371, %v390
      %v399 = vrot.slane %v391, 1
      %v400 = vrot.slane %v392, 1
      %v401 = vrot.slane %v393, 1
      %v402 = vrot.slane %v394, 1
      %v407 = vadd.f32 %v382, %v399
      %v408 = vadd.f32 %v383, %v400
      %v409 = vadd.f32 %v384, %v401
      %v410 = vadd.f32 %v385, %v402
      %v411 = vld [vmem:[%s372 + $0x2] sm:$0x1]
      %v412 = vlaneseq
      %v413 = vshrl.u32 %v412, 7
      %v414 = vsub.s32 0, %v413
      %v415 = vrot.slane %v411, %v414
      %v416 = vmul.f32 %v241, %v415
      %v417 = vmul.f32 %v242, %v415
      %v418 = vmul.f32 %v306, %v415
      %v419 = vmul.f32 %v371, %v415
      %v424 = vrot.slane %v416, 2
      %v425 = vrot.slane %v417, 2
      %v426 = vrot.slane %v418, 2
      %v427 = vrot.slane %v419, 2
      %v432 = vadd.f32 %v407, %v424
      %v433 = vadd.f32 %v408, %v425
      %v434 = vadd.f32 %v409, %v426
      %v435 = vadd.f32 %v410, %v427
      %v436 = vld [vmem:[%s224] sm:$0x1]
      %v438 = vlaneseq
      %v439 = vshrl.u32 %v438, 7
      %v440 = vsub.s32 0, %v439
      %v441 = vrot.slane %v436, %v440
      %v443 = vadd.f32 %v432, %v441
      %v444 = vadd.f32 %v433, %v441
      %v445 = vadd.f32 %v434, %v441
      %v446 = vadd.f32 %v435, %v441
      %v447 = vpack.c.bf16 %v443, %v443
      %v448 = vpack.c.bf16 %v444, %v444
      %v449 = vpack.c.bf16 %v445, %v445
      %v450 = vpack.c.bf16 %v446, %v446
      %451 = vst [vmem:[%s232] sm:$0x3] %v447
      %452 = vst [vmem:[%s232 + $0x2] sm:$0x3] %v448
      %453 = vst [vmem:[%s232 + $0x4] sm:$0x3] %v449
      %454 = vst [vmem:[%s232 + $0x6] sm:$0x3] %v450
      %p455 = scmp.lt.s32.totalorder %s18, 1
      %s456 = scalar_select %p455, %s18, 1
      %p457 = scmp.lt.s32.totalorder %s19, 0
      %s458 = scalar_select %p457, %s19, 0
      %s459 = smul.addr %s456, 4
      %s460 = sadd.s32 %s458, %s459
      %s461 = smul.addr %s460, 2
      %s462 = scalar_lea.vmem %s3, %s461
      // Predicated region
      $region33: #{_lambda_.9} parent=31 // pred_check
        %p463 = pneg %p126
      $region34: #{_lambda_.9} parent=31 // pred_check_branch
        %465 = sbr.rel (%p463) target = $region36
      $region35: #{_lambda_.9} parent=31 // pred_region
        _
      $region36: #{_lambda_.9} parent=31 // pred_fallthru
        _
    $region32: #{_lambda_.9} parent=5 // pred_fallthru
      _
    %p466 = scmp.le.s32.totalorder 2, %s9
    // Predicated region
    $region37: #{_lambda_.9} parent=5 // pred_check
      %p467 = pneg %p466
    $region38: #{_lambda_.9} parent=5 // pred_check_branch
      %469 = sbr.rel (%p467) target = $region40
    $region39: #{_lambda_.9} parent=5 // pred_region
      %s470 = ssub.s32 %s9, 2
      // Predicated region
      $region41: #{_lambda_.9} parent=39 // pred_check
        %p471 = pneg %p132
      $region42: #{_lambda_.9} parent=39 // pred_check_branch
        %473 = sbr.rel (%p471) target = $region44
      $region43: #{_lambda_.9} parent=39 // pred_region
        %p474 = scmp.lt.s32.totalorder %s20, 1
        %s475 = scalar_select %p474, %s20, 1
        %p476 = scmp.lt.s32.totalorder %s21, 0
        %s477 = scalar_select %p476, %s21, 0
        %s478 = smul.addr %s475, 4
        %s479 = sadd.s32 %s477, %s478
        %s480 = smul.addr %s479, 2
        %s481 = scalar_lea.vmem %s3, %s480
      $region44: #{_lambda_.9} parent=39 // pred_fallthru
        _
    $region40: #{_lambda_.9} parent=5 // pred_fallthru
      _
  $region6: #{_lambda_.9} parent=0 // loop_footer
    %s13 = sadd.s32 1, %s9
  $region7: #{_lambda_.9} parent=0 // loop_footer_branch
    %8 = sbr.rel target = $region3
  $region8: #{_lambda_.9} parent=0 // loop_exit
    _

// kernel: _lambda_.10
$region0: #{_lambda_.10}
  #allocation0 [shape = 'u32[]', space=smem, size = 0x4, offset = 0x4, fixed_abs, tag = 'smem constant byte address 0x4 - core index']
  #allocation1 [shape = 'u32[144,128]{1,0:T(1,128)}', space=vmem, size = 0x12000, scoped, tag = 'internal scratch']
  %s0 = inlined_call_operand.vmem [shape: bf16[32,128], index: 0, kind: input, shape index: {}]
  %s1 = inlined_call_operand.vmem [shape: bf16[128,128], index: 1, kind: input, shape index: {}]
  %s2 = inlined_call_operand.vmem [shape: f32[1,128], index: 2, kind: input, shape index: {}, may-alias: {2,4}]
  %s3 = inlined_call_operand.vmem [shape: bf16[128,128], index: 3, kind: input, shape index: {}]
  %s4 = inlined_call_operand.vmem [shape: f32[1,128], index: 4, kind: input, shape index: {}, may-alias: {2,4}]
  %s5 = inlined_call_operand.vmem [shape: bf16[32,128], index: 5, kind: output, shape index: {}]
  %s6 = sld [smem:[#allocation0]]
  $region30: #{_lambda_.10} parent=0
    _
  %s8 = ssub.s32 1, %s6
  %s9 = scalar_select 0, %s8, %s6
  // Predicated region
  $region2: #{_lambda_.10} parent=0 // pred_check
    _
  $region3: #{_lambda_.10} parent=0 // pred_check_branch
    %11 = sbr.rel (0) target = $region5
  $region4: #{_lambda_.10} parent=0 // pred_region
    _
  $region5: #{_lambda_.10} parent=0 // pred_fallthru
    _
  // Predicated region
  $region6: #{_lambda_.10} parent=0 // pred_check
    _
  $region7: #{_lambda_.10} parent=0 // pred_check_branch
    %13 = sbr.rel (0) target = $region9
  $region8: #{_lambda_.10} parent=0 // pred_region
    _
  $region9: #{_lambda_.10} parent=0 // pred_fallthru
    _
  // Predicated region
  $region10: #{_lambda_.10} parent=0 // pred_check
    _
  $region11: #{_lambda_.10} parent=0 // pred_check_branch
    %15 = sbr.rel (0) target = $region13
  $region12: #{_lambda_.10} parent=0 // pred_region
    _
  $region13: #{_lambda_.10} parent=0 // pred_fallthru
    _
  // Predicated region
  $region14: #{_lambda_.10} parent=0 // pred_check
    _
  $region15: #{_lambda_.10} parent=0 // pred_check_branch
    %17 = sbr.rel (0) target = $region17
  $region16: #{_lambda_.10} parent=0 // pred_region
    _
  $region17: #{_lambda_.10} parent=0 // pred_fallthru
    _
  // Predicated region
  $region18: #{_lambda_.10} parent=0 // pred_check
    _
  $region19: #{_lambda_.10} parent=0 // pred_check_branch
    %19 = sbr.rel (0) target = $region21
  $region20: #{_lambda_.10} parent=0 // pred_region
    _
  $region21: #{_lambda_.10} parent=0 // pred_fallthru
    _
  %v21 = vld [vmem:[%s0] sm:$0xf]
  %v22 = vld [vmem:[%s0 + $0x4] sm:$0xf]
  %v23 = vld [vmem:[%s0 + $0x8] sm:$0xf]
  %v24 = vld [vmem:[%s0 + $0xc] sm:$0xf]
  %v25 = vld [vmem:[%s1] sm:$0xf]
  %v26 = vld [vmem:[%s1 + $0x4] sm:$0xf]
  %v27 = vld [vmem:[%s1 + $0x8] sm:$0xf]
  %v28 = vld [vmem:[%s1 + $0xc] sm:$0xf]
  %v29 = vld [vmem:[%s1 + $0x10] sm:$0xf]
  %v30 = vld [vmem:[%s1 + $0x14] sm:$0xf]
  %v31 = vld [vmem:[%s1 + $0x18] sm:$0xf]
  %v32 = vld [vmem:[%s1 + $0x1c] sm:$0xf]
  %v33 = vld [vmem:[%s1 + $0x20] sm:$0xf]
  %v34 = vld [vmem:[%s1 + $0x24] sm:$0xf]
  %v35 = vld [vmem:[%s1 + $0x28] sm:$0xf]
  %v36 = vld [vmem:[%s1 + $0x2c] sm:$0xf]
  %v37 = vld [vmem:[%s1 + $0x30] sm:$0xf]
  %v38 = vld [vmem:[%s1 + $0x34] sm:$0xf]
  %v39 = vld [vmem:[%s1 + $0x38] sm:$0xf]
  %v40 = vld [vmem:[%s1 + $0x3c] sm:$0xf]
  %v41 = vld [vmem:[%s2] sm:$0x1]
  %v43 = vlaneseq
  %v44 = vshrl.u32 %v43, 7
  %v45 = vsub.s32 0, %v44
  %v46 = vrot.slane %v41, %v45
  %v52 = vunpack.c.l.b16 %v21
  %v53 = vunpack.c.l.b16 %v22
  %v54 = vunpack.c.l.b16 %v23
  %v55 = vunpack.c.l.b16 %v24
  %v56 = vpack.c.b16 %v53, %v52
  %v57 = vpack.c.b16 %v55, %v54
  %v76 = vunpack.c.l.b16 %v25
  %v77 = vunpack.c.l.b16 %v26
  %v78 = vunpack.c.l.b16 %v27
  %v79 = vunpack.c.l.b16 %v28
  %v80 = vunpack.c.l.b16 %v29
  %v81 = vunpack.c.l.b16 %v30
  %v82 = vunpack.c.l.b16 %v31
  %v83 = vunpack.c.l.b16 %v32
  %v84 = vunpack.c.l.b16 %v33
  %v85 = vunpack.c.l.b16 %v34
  %v86 = vunpack.c.l.b16 %v35
  %v87 = vunpack.c.l.b16 %v36
  %v88 = vunpack.c.l.b16 %v37
  %v89 = vunpack.c.l.b16 %v38
  %v90 = vunpack.c.l.b16 %v39
  %v91 = vunpack.c.l.b16 %v40
  %v92 = vpack.c.b16 %v77, %v76
  %v93 = vpack.c.b16 %v79, %v78
  %v94 = vpack.c.b16 %v81, %v80
  %v95 = vpack.c.b16 %v83, %v82
  %v96 = vpack.c.b16 %v85, %v84
  %v97 = vpack.c.b16 %v87, %v86
  %v98 = vpack.c.b16 %v89, %v88
  %v99 = vpack.c.b16 %v91, %v90
  %108 = vmatprep.subr.bf16.mxu0 0
  %109 = vmatpush1.bf16.msra.mxu0 %v99
  %110 = vmatprep.subr.bf16.mxu0 0
  %111 = vmatpush1.bf16.msra.mxu0 %v98
  %112 = vmatprep.subr.bf16.mxu0 0
  %113 = vmatpush1.bf16.msra.mxu0 %v97
  %114 = vmatprep.subr.bf16.mxu0 0
  %115 = vmatpush1.bf16.msra.mxu0 %v96
  %116 = vmatprep.subr.bf16.mxu0 0
  %117 = vmatpush1.bf16.msra.mxu0 %v95
  %118 = vmatprep.subr.bf16.mxu0 0
  %119 = vmatpush1.bf16.msra.mxu0 %v94
  %120 = vmatprep.subr.bf16.mxu0 0
  %121 = vmatpush1.bf16.msra.mxu0 %v93
  %122 = vmatprep.subr.bf16.mxu0 0
  %123 = vmatpush1.bf16.msra.mxu0 %v92
  %124 = vmatprep.subr.bf16.mxu0 0
  %125 = vmatpush2.bf16.msra.mxu0 0
  %126 = vmatprep.subr.bf16.mxu0 0
  %127 = vmatpush2.bf16.msra.mxu0 0
  %128 = vmatprep.subr.bf16.mxu0 0
  %129 = vmatpush2.bf16.msra.mxu0 0
  %130 = vmatprep.subr.bf16.mxu0 0
  %131 = vmatpush2.bf16.msra.mxu0 0
  %132 = vmatprep.subr.bf16.mxu0 0
  %133 = vmatpush2.bf16.msra.mxu0 0
  %134 = vmatprep.subr.bf16.mxu0 0
  %135 = vmatpush2.bf16.msra.mxu0 0
  %136 = vmatprep.subr.bf16.mxu0 0
  %137 = vmatpush2.bf16.msra.mxu0 0
  %138 = vmatprep.subr.bf16.mxu0 0
  %139 = vmatpush2.bf16.msra.mxu0 0
  %140 = vmatprep.mubr.bf16.mxu0 0
  %141 = vmatmul.mubr.bf16.gmra.mxu0 %v56
  %v142 = vpop.f32.mrf.mxu0
  %v143 = vadd.f32 %v46, %v142
  %v144 = vpop.f32.mrf.mxu0
  %v145 = vpop.f32.mrf.mxu0
  %v146 = vadd.f32 %v46, %v145
  %v147 = vpop.f32.mrf.mxu0
  %148 = vmatprep.mubr.bf16.mxu0 0
  %149 = vmatmul.mubr.bf16.gmra.mxu0 %v57
  %v150 = vpop.f32.mrf.mxu0
  %v151 = vadd.f32 %v46, %v150
  %v152 = vpop.f32.mrf.mxu0
  %v153 = vpop.f32.mrf.mxu0
  %v154 = vadd.f32 %v46, %v153
  %v155 = vpop.f32.mrf.mxu0
  %156 = vdwg.mxu0
  %v157 = vmul.f32 %v143, 0.5
  %v158 = vmul.f32 %v146, 0.5
  %v159 = vmul.f32 %v151, 0.5
  %v160 = vmul.f32 %v154, 0.5
  %v161 = vmul.f32 %v143, 0.70710677
  %v162 = vmul.f32 %v146, 0.70710677
  %v163 = vmul.f32 %v151, 0.70710677
  %v164 = vmul.f32 %v154, 0.70710677
  %vm165 = vcmp.ge.f32.partialorder %v161, 0.0
  %vm166 = vcmp.ge.f32.partialorder %v162, 0.0
  %vm167 = vcmp.ge.f32.partialorder %v163, 0.0
  %vm168 = vcmp.ge.f32.partialorder %v164, 0.0
  %v169 = vsel %vm165, 1.0, -1.0
  %v170 = vsel %vm166, 1.0, -1.0
  %v171 = vsel %vm167, 1.0, -1.0
  %v172 = vsel %vm168, 1.0, -1.0
  %v173 = vand.u32 2147483647, %v161
  %v174 = vand.u32 2147483647, %v162
  %v175 = vand.u32 2147483647, %v163
  %v176 = vand.u32 2147483647, %v164
  %v177 = vmul.f32 %v173, 0.3275911
  %v178 = vmul.f32 %v174, 0.3275911
  %v179 = vmul.f32 %v175, 0.3275911
  %v180 = vmul.f32 %v176, 0.3275911
  %v181 = vadd.f32 %v177, 1.0
  %v182 = vadd.f32 %v178, 1.0
  %v183 = vadd.f32 %v179, 1.0
  %v184 = vadd.f32 %v180, 1.0
  %v185 = vrcp.pop %v181
  %v186 = vrcp.pop %v182
  %v187 = vrcp.pop %v183
  %v188 = vrcp.pop %v184
  %v189 = vmul.f32 %v185, 1.0614054
  %v190 = vmul.f32 %v186, 1.0614054
  %v191 = vmul.f32 %v187, 1.0614054
  %v192 = vmul.f32 %v188, 1.0614054
  %v193 = vadd.f32 %v189, -1.4531521
  %v194 = vadd.f32 %v190, -1.4531521
  %v195 = vadd.f32 %v191, -1.4531521
  %v196 = vadd.f32 %v192, -1.4531521
  %v197 = vmul.f32 %v193, %v185
  %v198 = vmul.f32 %v194, %v186
  %v199 = vmul.f32 %v195, %v187
  %v200 = vmul.f32 %v196, %v188
  %v201 = vadd.f32 %v197, 1.4214138
  %v202 = vadd.f32 %v198, 1.4214138
  %v203 = vadd.f32 %v199, 1.4214138
  %v204 = vadd.f32 %v200, 1.4214138
  %v205 = vmul.f32 %v201, %v185
  %v206 = vmul.f32 %v202, %v186
  %v207 = vmul.f32 %v203, %v187
  %v208 = vmul.f32 %v204, %v188
  %v209 = vadd.f32 %v205, -0.28449672
  %v210 = vadd.f32 %v206, -0.28449672
  %v211 = vadd.f32 %v207, -0.28449672
  %v212 = vadd.f32 %v208, -0.28449672
  %v213 = vmul.f32 %v209, %v185
  %v214 = vmul.f32 %v210, %v186
  %v215 = vmul.f32 %v211, %v187
  %v216 = vmul.f32 %v212, %v188
  %v217 = vadd.f32 %v213, 0.2548296
  %v218 = vadd.f32 %v214, 0.2548296
  %v219 = vadd.f32 %v215, 0.2548296
  %v220 = vadd.f32 %v216, 0.2548296
  %v221 = vmul.f32 %v217, %v185
  %v222 = vmul.f32 %v218, %v186
  %v223 = vmul.f32 %v219, %v187
  %v224 = vmul.f32 %v220, %v188
  %v225 = vsub.f32 0.0, %v173
  %v226 = vsub.f32 0.0, %v174
  %v227 = vsub.f32 0.0, %v175
  %v228 = vsub.f32 0.0, %v176
  %v229 = vmul.f32 %v225, %v173
  %v230 = vmul.f32 %v226, %v174
  %v231 = vmul.f32 %v227, %v175
  %v232 = vmul.f32 %v228, %v176
  %v233 = vmul.f32 %v229, 1.442695
  %v234 = vpow.pop %v233
  %v235 = vmul.f32 %v230, 1.442695
  %v236 = vpow.pop %v235
  %v237 = vmul.f32 %v231, 1.442695
  %v238 = vpow.pop %v237
  %v239 = vmul.f32 %v232, 1.442695
  %v240 = vpow.pop %v239
  %v241 = vmul.f32 %v221, %v234
  %v242 = vmul.f32 %v222, %v236
  %v243 = vmul.f32 %v223, %v238
  %v244 = vmul.f32 %v224, %v240
  %v245 = vsub.f32 1.0, %v241
  %v246 = vsub.f32 1.0, %v242
  %v247 = vsub.f32 1.0, %v243
  %v248 = vsub.f32 1.0, %v244
  %v249 = vmul.f32 %v169, %v245
  %v250 = vmul.f32 %v170, %v246
  %v251 = vmul.f32 %v171, %v247
  %v252 = vmul.f32 %v172, %v248
  %v253 = vadd.f32 %v249, 1.0
  %v254 = vadd.f32 %v250, 1.0
  %v255 = vadd.f32 %v251, 1.0
  %v256 = vadd.f32 %v252, 1.0
  %v257 = vmul.f32 %v157, %v253
  %v258 = vmul.f32 %v158, %v254
  %v259 = vmul.f32 %v159, %v255
  %v260 = vmul.f32 %v160, %v256
  %v261 = vpack.c.bf16 %v258, %v257
  %v262 = vpack.c.bf16 %v260, %v259
  %v263 = vld [vmem:[%s3] sm:$0xf]
  %v264 = vld [vmem:[%s3 + $0x4] sm:$0xf]
  %v265 = vld [vmem:[%s3 + $0x8] sm:$0xf]
  %v266 = vld [vmem:[%s3 + $0xc] sm:$0xf]
  %v267 = vld [vmem:[%s3 + $0x10] sm:$0xf]
  %v268 = vld [vmem:[%s3 + $0x14] sm:$0xf]
  %v269 = vld [vmem:[%s3 + $0x18] sm:$0xf]
  %v270 = vld [vmem:[%s3 + $0x1c] sm:$0xf]
  %v271 = vld [vmem:[%s3 + $0x20] sm:$0xf]
  %v272 = vld [vmem:[%s3 + $0x24] sm:$0xf]
  %v273 = vld [vmem:[%s3 + $0x28] sm:$0xf]
  %v274 = vld [vmem:[%s3 + $0x2c] sm:$0xf]
  %v275 = vld [vmem:[%s3 + $0x30] sm:$0xf]
  %v276 = vld [vmem:[%s3 + $0x34] sm:$0xf]
  %v277 = vld [vmem:[%s3 + $0x38] sm:$0xf]
  %v278 = vld [vmem:[%s3 + $0x3c] sm:$0xf]
  %v279 = vld [vmem:[%s4] sm:$0x1]
  %v281 = vlaneseq
  %v282 = vshrl.u32 %v281, 7
  %v283 = vsub.s32 0, %v282
  %v284 = vrot.slane %v279, %v283
  %v302 = vunpack.c.l.b16 %v263
  %v303 = vunpack.c.l.b16 %v264
  %v304 = vunpack.c.l.b16 %v265
  %v305 = vunpack.c.l.b16 %v266
  %v306 = vunpack.c.l.b16 %v267
  %v307 = vunpack.c.l.b16 %v268
  %v308 = vunpack.c.l.b16 %v269
  %v309 = vunpack.c.l.b16 %v270
  %v310 = vunpack.c.l.b16 %v271
  %v311 = vunpack.c.l.b16 %v272
  %v312 = vunpack.c.l.b16 %v273
  %v313 = vunpack.c.l.b16 %v274
  %v314 = vunpack.c.l.b16 %v275
  %v315 = vunpack.c.l.b16 %v276
  %v316 = vunpack.c.l.b16 %v277
  %v317 = vunpack.c.l.b16 %v278
  %v318 = vpack.c.b16 %v303, %v302
  %v319 = vpack.c.b16 %v305, %v304
  %v320 = vpack.c.b16 %v307, %v306
  %v321 = vpack.c.b16 %v309, %v308
  %v322 = vpack.c.b16 %v311, %v310
  %v323 = vpack.c.b16 %v313, %v312
  %v324 = vpack.c.b16 %v315, %v314
  %v325 = vpack.c.b16 %v317, %v316
  %334 = vmatprep.subr.bf16.mxu0 0
  %335 = vmatpush1.bf16.msra.mxu0 %v325
  %336 = vmatprep.subr.bf16.mxu0 0
  %337 = vmatpush1.bf16.msra.mxu0 %v324
  %338 = vmatprep.subr.bf16.mxu0 0
  %339 = vmatpush1.bf16.msra.mxu0 %v323
  %340 = vmatprep.subr.bf16.mxu0 0
  %341 = vmatpush1.bf16.msra.mxu0 %v322
  %342 = vmatprep.subr.bf16.mxu0 0
  %343 = vmatpush1.bf16.msra.mxu0 %v321
  %344 = vmatprep.subr.bf16.mxu0 0
  %345 = vmatpush1.bf16.msra.mxu0 %v320
  %346 = vmatprep.subr.bf16.mxu0 0
  %347 = vmatpush1.bf16.msra.mxu0 %v319
  %348 = vmatprep.subr.bf16.mxu0 0
  %349 = vmatpush1.bf16.msra.mxu0 %v318
  %350 = vmatprep.subr.bf16.mxu0 0
  %351 = vmatpush2.bf16.msra.mxu0 0
  %352 = vmatprep.subr.bf16.mxu0 0
  %353 = vmatpush2.bf16.msra.mxu0 0
  %354 = vmatprep.subr.bf16.mxu0 0
  %355 = vmatpush2.bf16.msra.mxu0 0
  %356 = vmatprep.subr.bf16.mxu0 0
  %357 = vmatpush2.bf16.msra.mxu0 0
  %358 = vmatprep.subr.bf16.mxu0 0
  %359 = vmatpush2.bf16.msra.mxu0 0
  %360 = vmatprep.subr.bf16.mxu0 0
  %361 = vmatpush2.bf16.msra.mxu0 0
  %362 = vmatprep.subr.bf16.mxu0 0
  %363 = vmatpush2.bf16.msra.mxu0 0
  %364 = vmatprep.subr.bf16.mxu0 0
  %365 = vmatpush2.bf16.msra.mxu0 0
  %366 = vmatprep.mubr.bf16.mxu0 0
  %367 = vmatmul.mubr.bf16.gmra.mxu0 %v261
  %v368 = vpop.f32.mrf.mxu0
  %v369 = vadd.f32 %v284, %v368
  %v370 = vpop.f32.mrf.mxu0
  %v371 = vpop.f32.mrf.mxu0
  %v372 = vadd.f32 %v284, %v371
  %v373 = vpop.f32.mrf.mxu0
  %374 = vmatprep.mubr.bf16.mxu0 0
  %375 = vmatmul.mubr.bf16.gmra.mxu0 %v262
  %v376 = vpop.f32.mrf.mxu0
  %v377 = vadd.f32 %v284, %v376
  %v378 = vpop.f32.mrf.mxu0
  %v379 = vpop.f32.mrf.mxu0
  %v380 = vadd.f32 %v284, %v379
  %v381 = vpop.f32.mrf.mxu0
  %382 = vdwg.mxu0
  %v383 = vunpack.c.l.bf16 %v21
  %v384 = vunpack.c.l.bf16 %v22
  %v385 = vunpack.c.l.bf16 %v23
  %v386 = vunpack.c.l.bf16 %v24
  %v387 = vadd.f32 %v383, %v369
  %v388 = vadd.f32 %v384, %v372
  %v389 = vadd.f32 %v385, %v377
  %v390 = vadd.f32 %v386, %v380
  %v391 = vpack.c.bf16 %v388, %v387
  %v392 = vpack.c.bf16 %v390, %v389
  %v395 = vunpack.c.l.b16 %v391
  %v396 = vunpack.c.h.b16 %v391
  %v397 = vunpack.c.l.b16 %v392
  %v398 = vunpack.c.h.b16 %v392
  %v399 = vpack.c.b16 %v395, %v395
  %v400 = vpack.c.b16 %v396, %v396
  %v401 = vpack.c.b16 %v397, %v397
  %v402 = vpack.c.b16 %v398, %v398
  %407 = vst [vmem:[%s5] sm:$0xf] %v399
  %408 = vst [vmem:[%s5 + $0x4] sm:$0xf] %v400
  %409 = vst [vmem:[%s5 + $0x8] sm:$0xf] %v401
  %410 = vst [vmem:[%s5 + $0xc] sm:$0xf] %v402
  // Predicated region
  $region22: #{_lambda_.10} parent=0 // pred_check
    _
  $region23: #{_lambda_.10} parent=0 // pred_check_branch
    %412 = sbr.rel (0) target = $region25
  $region24: #{_lambda_.10} parent=0 // pred_region
    _
  $region25: #{_lambda_.10} parent=0 // pred_fallthru
    _
  // Predicated region
  $region26: #{_lambda_.10} parent=0 // pred_check
    _
  $region27: #{_lambda_.10} parent=0 // pred_check_branch
    %414 = sbr.rel (0) target = $region29
  $region28: #{_lambda_.10} parent=0 // pred_region
    _
  $region29: #{_lambda_.10} parent=0 // pred_fallthru
    _

// kernel: _lambda_.8
$region0: #{_lambda_.8}
  #allocation0 [shape = 'u32[]', space=smem, size = 0x4, offset = 0x4, fixed_abs, tag = 'smem constant byte address 0x4 - core index']
  #allocation1 [shape = 'u32[144,128]{1,0:T(1,128)}', space=vmem, size = 0x12000, scoped, tag = 'internal scratch']
  %s0 = inlined_call_operand.vmem [shape: bf16[32,1152], index: 0, kind: input, shape index: {}]
  %s1 = inlined_call_operand.vmem [shape: bf16[1152,128], index: 1, kind: input, shape index: {}]
  %s2 = inlined_call_operand.vmem [shape: f32[1,128], index: 2, kind: input, shape index: {}]
  %s3 = inlined_call_operand.vmem [shape: bf16[32,128], index: 3, kind: output, shape index: {}]
  %s4 = sld [smem:[#allocation0]]
  $region22: #{_lambda_.8} parent=0
    _
  %s6 = ssub.s32 1, %s4
  %s7 = scalar_select 0, %s6, %s4
  // Predicated region
  $region2: #{_lambda_.8} parent=0 // pred_check
    _
  $region3: #{_lambda_.8} parent=0 // pred_check_branch
    %9 = sbr.rel (0) target = $region5
  $region4: #{_lambda_.8} parent=0 // pred_region
    _
  $region5: #{_lambda_.8} parent=0 // pred_fallthru
    _
  // Predicated region
  $region6: #{_lambda_.8} parent=0 // pred_check
    _
  $region7: #{_lambda_.8} parent=0 // pred_check_branch
    %11 = sbr.rel (0) target = $region9
  $region8: #{_lambda_.8} parent=0 // pred_region
    _
  $region9: #{_lambda_.8} parent=0 // pred_fallthru
    _
  // Predicated region
  $region10: #{_lambda_.8} parent=0 // pred_check
    _
  $region11: #{_lambda_.8} parent=0 // pred_check_branch
    %13 = sbr.rel (0) target = $region13
  $region12: #{_lambda_.8} parent=0 // pred_region
    _
  $region13: #{_lambda_.8} parent=0 // pred_fallthru
    _
  %v15 = vld [vmem:[%s0] sm:$0xff]
  %v16 = vld [vmem:[%s0 + $0x8] sm:$0xff]
  %v17 = vld [vmem:[%s0 + $0x10] sm:$0xff]
  %v18 = vld [vmem:[%s0 + $0x18] sm:$0xff]
  %v19 = vld [vmem:[%s0 + $0x20] sm:$0xf]
  %v20 = vld [vmem:[%s0 + $0x24] sm:$0xff]
  %v21 = vld [vmem:[%s0 + $0x2c] sm:$0xff]
  %v22 = vld [vmem:[%s0 + $0x34] sm:$0xff]
  %v23 = vld [vmem:[%s0 + $0x3c] sm:$0xff]
  %v24 = vld [vmem:[%s0 + $0x44] sm:$0xf]
  %v25 = vld [vmem:[%s0 + $0x48] sm:$0xff]
  %v26 = vld [vmem:[%s0 + $0x50] sm:$0xff]
  %v27 = vld [vmem:[%s0 + $0x58] sm:$0xff]
  %v28 = vld [vmem:[%s0 + $0x60] sm:$0xff]
  %v29 = vld [vmem:[%s0 + $0x68] sm:$0xf]
  %v30 = vld [vmem:[%s0 + $0x6c] sm:$0xff]
  %v31 = vld [vmem:[%s0 + $0x74] sm:$0xff]
  %v32 = vld [vmem:[%s0 + $0x7c] sm:$0xff]
  %v33 = vld [vmem:[%s0 + $0x84] sm:$0xff]
  %v34 = vld [vmem:[%s0 + $0x8c] sm:$0xf]
  %v35 = vld [vmem:[%s1] sm:$0xf]
  %v36 = vld [vmem:[%s1 + $0x4] sm:$0xf]
  %v37 = vld [vmem:[%s1 + $0x8] sm:$0xf]
  %v38 = vld [vmem:[%s1 + $0xc] sm:$0xf]
  %v39 = vld [vmem:[%s1 + $0x10] sm:$0xf]
  %v40 = vld [vmem:[%s1 + $0x14] sm:$0xf]
  %v41 = vld [vmem:[%s1 + $0x18] sm:$0xf]
  %v42 = vld [vmem:[%s1 + $0x1c] sm:$0xf]
  %v43 = vld [vmem:[%s1 + $0x20] sm:$0xf]
  %v44 = vld [vmem:[%s1 + $0x24] sm:$0xf]
  %v45 = vld [vmem:[%s1 + $0x28] sm:$0xf]
  %v46 = vld [vmem:[%s1 + $0x2c] sm:$0xf]
  %v47 = vld [vmem:[%s1 + $0x30] sm:$0xf]
  %v48 = vld [vmem:[%s1 + $0x34] sm:$0xf]
  %v49 = vld [vmem:[%s1 + $0x38] sm:$0xf]
  %v50 = vld [vmem:[%s1 + $0x3c] sm:$0xf]
  %v51 = vld [vmem:[%s1 + $0x40] sm:$0xf]
  %v52 = vld [vmem:[%s1 + $0x44] sm:$0xf]
  %v53 = vld [vmem:[%s1 + $0x48] sm:$0xf]
  %v54 = vld [vmem:[%s1 + $0x4c] sm:$0xf]
  %v55 = vld [vmem:[%s1 + $0x50] sm:$0xf]
  %v56 = vld [vmem:[%s1 + $0x54] sm:$0xf]
  %v57 = vld [vmem:[%s1 + $0x58] sm:$0xf]
  %v58 = vld [vmem:[%s1 + $0x5c] sm:$0xf]
  %v59 = vld [vmem:[%s1 + $0x60] sm:$0xf]
  %v60 = vld [vmem:[%s1 + $0x64] sm:$0xf]
  %v61 = vld [vmem:[%s1 + $0x68] sm:$0xf]
  %v62 = vld [vmem:[%s1 + $0x6c] sm:$0xf]
  %v63 = vld [vmem:[%s1 + $0x70] sm:$0xf]
  %v64 = vld [vmem:[%s1 + $0x74] sm:$0xf]
  %v65 = vld [vmem:[%s1 + $0x78] sm:$0xf]
  %v66 = vld [vmem:[%s1 + $0x7c] sm:$0xf]
  %v67 = vld [vmem:[%s1 + $0x80] sm:$0xf]
  %v68 = vld [vmem:[%s1 + $0x84] sm:$0xf]
  %v69 = vld [vmem:[%s1 + $0x88] sm:$0xf]
  %v70 = vld [vmem:[%s1 + $0x8c] sm:$0xf]
  %v71 = vld [vmem:[%s1 + $0x90] sm:$0xf]
  %v72 = vld [vmem:[%s1 + $0x94] sm:$0xf]
  %v73 = vld [vmem:[%s1 + $0x98] sm:$0xf]
  %v74 = vld [vmem:[%s1 + $0x9c] sm:$0xf]
  %v75 = vld [vmem:[%s1 + $0xa0] sm:$0xf]
  %v76 = vld [vmem:[%s1 + $0xa4] sm:$0xf]
  %v77 = vld [vmem:[%s1 + $0xa8] sm:$0xf]
  %v78 = vld [vmem:[%s1 + $0xac] sm:$0xf]
  %v79 = vld [vmem:[%s1 + $0xb0] sm:$0xf]
  %v80 = vld [vmem:[%s1 + $0xb4] sm:$0xf]
  %v81 = vld [vmem:[%s1 + $0xb8] sm:$0xf]
  %v82 = vld [vmem:[%s1 + $0xbc] sm:$0xf]
  %v83 = vld [vmem:[%s1 + $0xc0] sm:$0xf]
  %v84 = vld [vmem:[%s1 + $0xc4] sm:$0xf]
  %v85 = vld [vmem:[%s1 + $0xc8] sm:$0xf]
  %v86 = vld [vmem:[%s1 + $0xcc] sm:$0xf]
  %v87 = vld [vmem:[%s1 + $0xd0] sm:$0xf]
  %v88 = vld [vmem:[%s1 + $0xd4] sm:$0xf]
  %v89 = vld [vmem:[%s1 + $0xd8] sm:$0xf]
  %v90 = vld [vmem:[%s1 + $0xdc] sm:$0xf]
  %v91 = vld [vmem:[%s1 + $0xe0] sm:$0xf]
  %v92 = vld [vmem:[%s1 + $0xe4] sm:$0xf]
  %v93 = vld [vmem:[%s1 + $0xe8] sm:$0xf]
  %v94 = vld [vmem:[%s1 + $0xec] sm:$0xf]
  %v95 = vld [vmem:[%s1 + $0xf0] sm:$0xf]
  %v96 = vld [vmem:[%s1 + $0xf4] sm:$0xf]
  %v97 = vld [vmem:[%s1 + $0xf8] sm:$0xf]
  %v98 = vld [vmem:[%s1 + $0xfc] sm:$0xf]
  %v99 = vld [vmem:[%s1 + $0x100] sm:$0xf]
  %v100 = vld [vmem:[%s1 + $0x104] sm:$0xf]
  %v101 = vld [vmem:[%s1 + $0x108] sm:$0xf]
  %v102 = vld [vmem:[%s1 + $0x10c] sm:$0xf]
  %v103 = vld [vmem:[%s1 + $0x110] sm:$0xf]
  %v104 = vld [vmem:[%s1 + $0x114] sm:$0xf]
  %v105 = vld [vmem:[%s1 + $0x118] sm:$0xf]
  %v106 = vld [vmem:[%s1 + $0x11c] sm:$0xf]
  %v107 = vld [vmem:[%s1 + $0x120] sm:$0xf]
  %v108 = vld [vmem:[%s1 + $0x124] sm:$0xf]
  %v109 = vld [vmem:[%s1 + $0x128] sm:$0xf]
  %v110 = vld [vmem:[%s1 + $0x12c] sm:$0xf]
  %v111 = vld [vmem:[%s1 + $0x130] sm:$0xf]
  %v112 = vld [vmem:[%s1 + $0x134] sm:$0xf]
  %v113 = vld [vmem:[%s1 + $0x138] sm:$0xf]
  %v114 = vld [vmem:[%s1 + $0x13c] sm:$0xf]
  %v115 = vld [vmem:[%s1 + $0x140] sm:$0xf]
  %v116 = vld [vmem:[%s1 + $0x144] sm:$0xf]
  %v117 = vld [vmem:[%s1 + $0x148] sm:$0xf]
  %v118 = vld [vmem:[%s1 + $0x14c] sm:$0xf]
  %v119 = vld [vmem:[%s1 + $0x150] sm:$0xf]
  %v120 = vld [vmem:[%s1 + $0x154] sm:$0xf]
  %v121 = vld [vmem:[%s1 + $0x158] sm:$0xf]
  %v122 = vld [vmem:[%s1 + $0x15c] sm:$0xf]
  %v123 = vld [vmem:[%s1 + $0x160] sm:$0xf]
  %v124 = vld [vmem:[%s1 + $0x164] sm:$0xf]
  %v125 = vld [vmem:[%s1 + $0x168] sm:$0xf]
  %v126 = vld [vmem:[%s1 + $0x16c] sm:$0xf]
  %v127 = vld [vmem:[%s1 + $0x170] sm:$0xf]
  %v128 = vld [vmem:[%s1 + $0x174] sm:$0xf]
  %v129 = vld [vmem:[%s1 + $0x178] sm:$0xf]
  %v130 = vld [vmem:[%s1 + $0x17c] sm:$0xf]
  %v131 = vld [vmem:[%s1 + $0x180] sm:$0xf]
  %v132 = vld [vmem:[%s1 + $0x184] sm:$0xf]
  %v133 = vld [vmem:[%s1 + $0x188] sm:$0xf]
  %v134 = vld [vmem:[%s1 + $0x18c] sm:$0xf]
  %v135 = vld [vmem:[%s1 + $0x190] sm:$0xf]
  %v136 = vld [vmem:[%s1 + $0x194] sm:$0xf]
  %v137 = vld [vmem:[%s1 + $0x198] sm:$0xf]
  %v138 = vld [vmem:[%s1 + $0x19c] sm:$0xf]
  %v139 = vld [vmem:[%s1 + $0x1a0] sm:$0xf]
  %v140 = vld [vmem:[%s1 + $0x1a4] sm:$0xf]
  %v141 = vld [vmem:[%s1 + $0x1a8] sm:$0xf]
  %v142 = vld [vmem:[%s1 + $0x1ac] sm:$0xf]
  %v143 = vld [vmem:[%s1 + $0x1b0] sm:$0xf]
  %v144 = vld [vmem:[%s1 + $0x1b4] sm:$0xf]
  %v145 = vld [vmem:[%s1 + $0x1b8] sm:$0xf]
  %v146 = vld [vmem:[%s1 + $0x1bc] sm:$0xf]
  %v147 = vld [vmem:[%s1 + $0x1c0] sm:$0xf]
  %v148 = vld [vmem:[%s1 + $0x1c4] sm:$0xf]
  %v149 = vld [vmem:[%s1 + $0x1c8] sm:$0xf]
  %v150 = vld [vmem:[%s1 + $0x1cc] sm:$0xf]
  %v151 = vld [vmem:[%s1 + $0x1d0] sm:$0xf]
  %v152 = vld [vmem:[%s1 + $0x1d4] sm:$0xf]
  %v153 = vld [vmem:[%s1 + $0x1d8] sm:$0xf]
  %v154 = vld [vmem:[%s1 + $0x1dc] sm:$0xf]
  %v155 = vld [vmem:[%s1 + $0x1e0] sm:$0xf]
  %v156 = vld [vmem:[%s1 + $0x1e4] sm:$0xf]
  %v157 = vld [vmem:[%s1 + $0x1e8] sm:$0xf]
  %v158 = vld [vmem:[%s1 + $0x1ec] sm:$0xf]
  %v159 = vld [vmem:[%s1 + $0x1f0] sm:$0xf]
  %v160 = vld [vmem:[%s1 + $0x1f4] sm:$0xf]
  %v161 = vld [vmem:[%s1 + $0x1f8] sm:$0xf]
  %v162 = vld [vmem:[%s1 + $0x1fc] sm:$0xf]
  %v163 = vld [vmem:[%s1 + $0x200] sm:$0xf]
  %v164 = vld [vmem:[%s1 + $0x204] sm:$0xf]
  %v165 = vld [vmem:[%s1 + $0x208] sm:$0xf]
  %v166 = vld [vmem:[%s1 + $0x20c] sm:$0xf]
  %v167 = vld [vmem:[%s1 + $0x210] sm:$0xf]
  %v168 = vld [vmem:[%s1 + $0x214] sm:$0xf]
  %v169 = vld [vmem:[%s1 + $0x218] sm:$0xf]
  %v170 = vld [vmem:[%s1 + $0x21c] sm:$0xf]
  %v171 = vld [vmem:[%s1 + $0x220] sm:$0xf]
  %v172 = vld [vmem:[%s1 + $0x224] sm:$0xf]
  %v173 = vld [vmem:[%s1 + $0x228] sm:$0xf]
  %v174 = vld [vmem:[%s1 + $0x22c] sm:$0xf]
  %v175 = vld [vmem:[%s1 + $0x230] sm:$0xf]
  %v176 = vld [vmem:[%s1 + $0x234] sm:$0xf]
  %v177 = vld [vmem:[%s1 + $0x238] sm:$0xf]
  %v178 = vld [vmem:[%s1 + $0x23c] sm:$0xf]
  %v179 = vld [vmem:[%s2] sm:$0x1]
  %v181 = vlaneseq
  %v182 = vshrl.u32 %v181, 7
  %v183 = vsub.s32 0, %v182
  %v184 = vrot.slane %v179, %v183
  %v206 = vunpack.c.l.b16 %v15
  %v207 = vunpack.c.h.b16 %v15
  %v208 = vunpack.c.l.b16 %v16
  %v209 = vunpack.c.h.b16 %v16
  %v210 = vunpack.c.l.b16 %v17
  %v211 = vunpack.c.h.b16 %v17
  %v212 = vunpack.c.l.b16 %v18
  %v213 = vunpack.c.h.b16 %v18
  %v214 = vunpack.c.l.b16 %v19
  %v215 = vunpack.c.l.b16 %v20
  %v216 = vunpack.c.h.b16 %v20
  %v217 = vunpack.c.l.b16 %v21
  %v218 = vunpack.c.h.b16 %v21
  %v219 = vunpack.c.l.b16 %v22
  %v220 = vunpack.c.h.b16 %v22
  %v221 = vunpack.c.l.b16 %v23
  %v222 = vunpack.c.h.b16 %v23
  %v223 = vunpack.c.l.b16 %v24
  %v224 = vunpack.c.l.b16 %v25
  %v225 = vunpack.c.h.b16 %v25
  %v226 = vunpack.c.l.b16 %v26
  %v227 = vunpack.c.h.b16 %v26
  %v228 = vunpack.c.l.b16 %v27
  %v229 = vunpack.c.h.b16 %v27
  %v230 = vunpack.c.l.b16 %v28
  %v231 = vunpack.c.h.b16 %v28
  %v232 = vunpack.c.l.b16 %v29
  %v233 = vunpack.c.l.b16 %v30
  %v234 = vunpack.c.h.b16 %v30
  %v235 = vunpack.c.l.b16 %v31
  %v236 = vunpack.c.h.b16 %v31
  %v237 = vunpack.c.l.b16 %v32
  %v238 = vunpack.c.h.b16 %v32
  %v239 = vunpack.c.l.b16 %v33
  %v240 = vunpack.c.h.b16 %v33
  %v241 = vunpack.c.l.b16 %v34
  %v242 = vpack.c.b16 %v215, %v206
  %v243 = vpack.c.b16 %v216, %v207
  %v244 = vpack.c.b16 %v217, %v208
  %v245 = vpack.c.b16 %v218, %v209
  %v246 = vpack.c.b16 %v219, %v210
  %v247 = vpack.c.b16 %v220, %v211
  %v248 = vpack.c.b16 %v221, %v212
  %v249 = vpack.c.b16 %v222, %v213
  %v250 = vpack.c.b16 %v223, %v214
  %v251 = vpack.c.b16 %v233, %v224
  %v252 = vpack.c.b16 %v234, %v225
  %v253 = vpack.c.b16 %v235, %v226
  %v254 = vpack.c.b16 %v236, %v227
  %v255 = vpack.c.b16 %v237, %v228
  %v256 = vpack.c.b16 %v238, %v229
  %v257 = vpack.c.b16 %v239, %v230
  %v258 = vpack.c.b16 %v240, %v231
  %v259 = vpack.c.b16 %v241, %v232
  %v422 = vunpack.c.l.b16 %v35
  %v423 = vunpack.c.l.b16 %v36
  %v424 = vunpack.c.l.b16 %v37
  %v425 = vunpack.c.l.b16 %v38
  %v426 = vunpack.c.l.b16 %v39
  %v427 = vunpack.c.l.b16 %v40
  %v428 = vunpack.c.l.b16 %v41
  %v429 = vunpack.c.l.b16 %v42
  %v430 = vunpack.c.l.b16 %v43
  %v431 = vunpack.c.l.b16 %v44
  %v432 = vunpack.c.l.b16 %v45
  %v433 = vunpack.c.l.b16 %v46
  %v434 = vunpack.c.l.b16 %v47
  %v435 = vunpack.c.l.b16 %v48
  %v436 = vunpack.c.l.b16 %v49
  %v437 = vunpack.c.l.b16 %v50
  %v438 = vunpack.c.l.b16 %v51
  %v439 = vunpack.c.l.b16 %v52
  %v440 = vunpack.c.l.b16 %v53
  %v441 = vunpack.c.l.b16 %v54
  %v442 = vunpack.c.l.b16 %v55
  %v443 = vunpack.c.l.b16 %v56
  %v444 = vunpack.c.l.b16 %v57
  %v445 = vunpack.c.l.b16 %v58
  %v446 = vunpack.c.l.b16 %v59
  %v447 = vunpack.c.l.b16 %v60
  %v448 = vunpack.c.l.b16 %v61
  %v449 = vunpack.c.l.b16 %v62
  %v450 = vunpack.c.l.b16 %v63
  %v451 = vunpack.c.l.b16 %v64
  %v452 = vunpack.c.l.b16 %v65
  %v453 = vunpack.c.l.b16 %v66
  %v454 = vunpack.c.l.b16 %v67
  %v455 = vunpack.c.l.b16 %v68
  %v456 = vunpack.c.l.b16 %v69
  %v457 = vunpack.c.l.b16 %v70
  %v458 = vunpack.c.l.b16 %v71
  %v459 = vunpack.c.l.b16 %v72
  %v460 = vunpack.c.l.b16 %v73
  %v461 = vunpack.c.l.b16 %v74
  %v462 = vunpack.c.l.b16 %v75
  %v463 = vunpack.c.l.b16 %v76
  %v464 = vunpack.c.l.b16 %v77
  %v465 = vunpack.c.l.b16 %v78
  %v466 = vunpack.c.l.b16 %v79
  %v467 = vunpack.c.l.b16 %v80
  %v468 = vunpack.c.l.b16 %v81
  %v469 = vunpack.c.l.b16 %v82
  %v470 = vunpack.c.l.b16 %v83
  %v471 = vunpack.c.l.b16 %v84
  %v472 = vunpack.c.l.b16 %v85
  %v473 = vunpack.c.l.b16 %v86
  %v474 = vunpack.c.l.b16 %v87
  %v475 = vunpack.c.l.b16 %v88
  %v476 = vunpack.c.l.b16 %v89
  %v477 = vunpack.c.l.b16 %v90
  %v478 = vunpack.c.l.b16 %v91
  %v479 = vunpack.c.l.b16 %v92
  %v480 = vunpack.c.l.b16 %v93
  %v481 = vunpack.c.l.b16 %v94
  %v482 = vunpack.c.l.b16 %v95
  %v483 = vunpack.c.l.b16 %v96
  %v484 = vunpack.c.l.b16 %v97
  %v485 = vunpack.c.l.b16 %v98
  %v486 = vunpack.c.l.b16 %v99
  %v487 = vunpack.c.l.b16 %v100
  %v488 = vunpack.c.l.b16 %v101
  %v489 = vunpack.c.l.b16 %v102
  %v490 = vunpack.c.l.b16 %v103
  %v491 = vunpack.c.l.b16 %v104
  %v492 = vunpack.c.l.b16 %v105
  %v493 = vunpack.c.l.b16 %v106
  %v494 = vunpack.c.l.b16 %v107
  %v495 = vunpack.c.l.b16 %v108
  %v496 = vunpack.c.l.b16 %v109
  %v497 = vunpack.c.l.b16 %v110
  %v498 = vunpack.c.l.b16 %v111
  %v499 = vunpack.c.l.b16 %v112
  %v500 = vunpack.c.l.b16 %v113
  %v501 = vunpack.c.l.b16 %v114
  %v502 = vunpack.c.l.b16 %v115
  %v503 = vunpack.c.l.b16 %v116
  %v504 = vunpack.c.l.b16 %v117
  %v505 = vunpack.c.l.b16 %v118
  %v506 = vunpack.c.l.b16 %v119
  %v507 = vunpack.c.l.b16 %v120
  %v508 = vunpack.c.l.b16 %v121
  %v509 = vunpack.c.l.b16 %v122
  %v510 = vunpack.c.l.b16 %v123
  %v511 = vunpack.c.l.b16 %v124
  %v512 = vunpack.c.l.b16 %v125
  %v513 = vunpack.c.l.b16 %v126
  %v514 = vunpack.c.l.b16 %v127
  %v515 = vunpack.c.l.b16 %v128
  %v516 = vunpack.c.l.b16 %v129
  %v517 = vunpack.c.l.b16 %v130
  %v518 = vunpack.c.l.b16 %v131
  %v519 = vunpack.c.l.b16 %v132
  %v520 = vunpack.c.l.b16 %v133
  %v521 = vunpack.c.l.b16 %v134
  %v522 = vunpack.c.l.b16 %v135
  %v523 = vunpack.c.l.b16 %v136
  %v524 = vunpack.c.l.b16 %v137
  %v525 = vunpack.c.l.b16 %v138
  %v526 = vunpack.c.l.b16 %v139
  %v527 = vunpack.c.l.b16 %v140
  %v528 = vunpack.c.l.b16 %v141
  %v529 = vunpack.c.l.b16 %v142
  %v530 = vunpack.c.l.b16 %v143
  %v531 = vunpack.c.l.b16 %v144
  %v532 = vunpack.c.l.b16 %v145
  %v533 = vunpack.c.l.b16 %v146
  %v534 = vunpack.c.l.b16 %v147
  %v535 = vunpack.c.l.b16 %v148
  %v536 = vunpack.c.l.b16 %v149
  %v537 = vunpack.c.l.b16 %v150
  %v538 = vunpack.c.l.b16 %v151
  %v539 = vunpack.c.l.b16 %v152
  %v540 = vunpack.c.l.b16 %v153
  %v541 = vunpack.c.l.b16 %v154
  %v542 = vunpack.c.l.b16 %v155
  %v543 = vunpack.c.l.b16 %v156
  %v544 = vunpack.c.l.b16 %v157
  %v545 = vunpack.c.l.b16 %v158
  %v546 = vunpack.c.l.b16 %v159
  %v547 = vunpack.c.l.b16 %v160
  %v548 = vunpack.c.l.b16 %v161
  %v549 = vunpack.c.l.b16 %v162
  %v550 = vunpack.c.l.b16 %v163
  %v551 = vunpack.c.l.b16 %v164
  %v552 = vunpack.c.l.b16 %v165
  %v553 = vunpack.c.l.b16 %v166
  %v554 = vunpack.c.l.b16 %v167
  %v555 = vunpack.c.l.b16 %v168
  %v556 = vunpack.c.l.b16 %v169
  %v557 = vunpack.c.l.b16 %v170
  %v558 = vunpack.c.l.b16 %v171
  %v559 = vunpack.c.l.b16 %v172
  %v560 = vunpack.c.l.b16 %v173
  %v561 = vunpack.c.l.b16 %v174
  %v562 = vunpack.c.l.b16 %v175
  %v563 = vunpack.c.l.b16 %v176
  %v564 = vunpack.c.l.b16 %v177
  %v565 = vunpack.c.l.b16 %v178
  %v566 = vpack.c.b16 %v423, %v422
  %v567 = vpack.c.b16 %v425, %v424
  %v568 = vpack.c.b16 %v427, %v426
  %v569 = vpack.c.b16 %v429, %v428
  %v570 = vpack.c.b16 %v431, %v430
  %v571 = vpack.c.b16 %v433, %v432
  %v572 = vpack.c.b16 %v435, %v434
  %v573 = vpack.c.b16 %v437, %v436
  %v574 = vpack.c.b16 %v439, %v438
  %v575 = vpack.c.b16 %v441, %v440
  %v576 = vpack.c.b16 %v443, %v442
  %v577 = vpack.c.b16 %v445, %v444
  %v578 = vpack.c.b16 %v447, %v446
  %v579 = vpack.c.b16 %v449, %v448
  %v580 = vpack.c.b16 %v451, %v450
  %v581 = vpack.c.b16 %v453, %v452
  %v582 = vpack.c.b16 %v455, %v454
  %v583 = vpack.c.b16 %v457, %v456
  %v584 = vpack.c.b16 %v459, %v458
  %v585 = vpack.c.b16 %v461, %v460
  %v586 = vpack.c.b16 %v463, %v462
  %v587 = vpack.c.b16 %v465, %v464
  %v588 = vpack.c.b16 %v467, %v466
  %v589 = vpack.c.b16 %v469, %v468
  %v590 = vpack.c.b16 %v471, %v470
  %v591 = vpack.c.b16 %v473, %v472
  %v592 = vpack.c.b16 %v475, %v474
  %v593 = vpack.c.b16 %v477, %v476
  %v594 = vpack.c.b16 %v479, %v478
  %v595 = vpack.c.b16 %v481, %v480
  %v596 = vpack.c.b16 %v483, %v482
  %v597 = vpack.c.b16 %v485, %v484
  %v598 = vpack.c.b16 %v487, %v486
  %v599 = vpack.c.b16 %v489, %v488
  %v600 = vpack.c.b16 %v491, %v490
  %v601 = vpack.c.b16 %v493, %v492
  %v602 = vpack.c.b16 %v495, %v494
  %v603 = vpack.c.b16 %v497, %v496
  %v604 = vpack.c.b16 %v499, %v498
  %v605 = vpack.c.b16 %v501, %v500
  %v606 = vpack.c.b16 %v503, %v502
  %v607 = vpack.c.b16 %v505, %v504
  %v608 = vpack.c.b16 %v507, %v506
  %v609 = vpack.c.b16 %v509, %v508
  %v610 = vpack.c.b16 %v511, %v510
  %v611 = vpack.c.b16 %v513, %v512
  %v612 = vpack.c.b16 %v515, %v514
  %v613 = vpack.c.b16 %v517, %v516
  %v614 = vpack.c.b16 %v519, %v518
  %v615 = vpack.c.b16 %v521, %v520
  %v616 = vpack.c.b16 %v523, %v522
  %v617 = vpack.c.b16 %v525, %v524
  %v618 = vpack.c.b16 %v527, %v526
  %v619 = vpack.c.b16 %v529, %v528
  %v620 = vpack.c.b16 %v531, %v530
  %v621 = vpack.c.b16 %v533, %v532
  %v622 = vpack.c.b16 %v535, %v534
  %v623 = vpack.c.b16 %v537, %v536
  %v624 = vpack.c.b16 %v539, %v538
  %v625 = vpack.c.b16 %v541, %v540
  %v626 = vpack.c.b16 %v543, %v542
  %v627 = vpack.c.b16 %v545, %v544
  %v628 = vpack.c.b16 %v547, %v546
  %v629 = vpack.c.b16 %v549, %v548
  %v630 = vpack.c.b16 %v551, %v550
  %v631 = vpack.c.b16 %v553, %v552
  %v632 = vpack.c.b16 %v555, %v554
  %v633 = vpack.c.b16 %v557, %v556
  %v634 = vpack.c.b16 %v559, %v558
  %v635 = vpack.c.b16 %v561, %v560
  %v636 = vpack.c.b16 %v563, %v562
  %v637 = vpack.c.b16 %v565, %v564
  %710 = vmatprep.subr.bf16.mxu0 0
  %711 = vmatpush1.bf16.msra.mxu0 %v573
  %712 = vmatprep.subr.bf16.mxu0 0
  %713 = vmatpush1.bf16.msra.mxu0 %v572
  %714 = vmatprep.subr.bf16.mxu0 0
  %715 = vmatpush1.bf16.msra.mxu0 %v571
  %716 = vmatprep.subr.bf16.mxu0 0
  %717 = vmatpush1.bf16.msra.mxu0 %v570
  %718 = vmatprep.subr.bf16.mxu0 0
  %719 = vmatpush1.bf16.msra.mxu0 %v569
  %720 = vmatprep.subr.bf16.mxu0 0
  %721 = vmatpush1.bf16.msra.mxu0 %v568
  %722 = vmatprep.subr.bf16.mxu0 0
  %723 = vmatpush1.bf16.msra.mxu0 %v567
  %724 = vmatprep.subr.bf16.mxu0 0
  %725 = vmatpush1.bf16.msra.mxu0 %v566
  %726 = vmatprep.subr.bf16.mxu0 0
  %727 = vmatpush2.bf16.msra.mxu0 %v581
  %728 = vmatprep.subr.bf16.mxu0 0
  %729 = vmatpush2.bf16.msra.mxu0 %v580
  %730 = vmatprep.subr.bf16.mxu0 0
  %731 = vmatpush2.bf16.msra.mxu0 %v579
  %732 = vmatprep.subr.bf16.mxu0 0
  %733 = vmatpush2.bf16.msra.mxu0 %v578
  %734 = vmatprep.subr.bf16.mxu0 0
  %735 = vmatpush2.bf16.msra.mxu0 %v577
  %736 = vmatprep.subr.bf16.mxu0 0
  %737 = vmatpush2.bf16.msra.mxu0 %v576
  %738 = vmatprep.subr.bf16.mxu0 0
  %739 = vmatpush2.bf16.msra.mxu0 %v575
  %740 = vmatprep.subr.bf16.mxu0 0
  %741 = vmatpush2.bf16.msra.mxu0 %v574
  %742 = vmatprep.mubr.bf16.mxu0 %v243
  %743 = vmatmul.mubr.bf16.gmra.mxu0 %v242
  %v744 = vpop.f32.mrf.mxu0
  %v745 = vadd.f32 %v184, %v744
  %v746 = vpop.f32.mrf.mxu0
  %v747 = vpop.f32.mrf.mxu0
  %v748 = vadd.f32 %v184, %v747
  %v749 = vpop.f32.mrf.mxu0
  %750 = vmatprep.mubr.bf16.mxu0 %v252
  %751 = vmatmul.mubr.bf16.gmra.mxu0 %v251
  %v752 = vpop.f32.mrf.mxu0
  %v753 = vadd.f32 %v184, %v752
  %v754 = vpop.f32.mrf.mxu0
  %v755 = vpop.f32.mrf.mxu0
  %v756 = vadd.f32 %v184, %v755
  %v757 = vpop.f32.mrf.mxu0
  %758 = vdwg.mxu0
  %759 = vmatprep.subr.bf16.mxu0 0
  %760 = vmatpush1.bf16.msra.mxu0 %v589
  %761 = vmatprep.subr.bf16.mxu0 0
  %762 = vmatpush1.bf16.msra.mxu0 %v588
  %763 = vmatprep.subr.bf16.mxu0 0
  %764 = vmatpush1.bf16.msra.mxu0 %v587
  %765 = vmatprep.subr.bf16.mxu0 0
  %766 = vmatpush1.bf16.msra.mxu0 %v586
  %767 = vmatprep.subr.bf16.mxu0 0
  %768 = vmatpush1.bf16.msra.mxu0 %v585
  %769 = vmatprep.subr.bf16.mxu0 0
  %770 = vmatpush1.bf16.msra.mxu0 %v584
  %771 = vmatprep.subr.bf16.mxu0 0
  %772 = vmatpush1.bf16.msra.mxu0 %v583
  %773 = vmatprep.subr.bf16.mxu0 0
  %774 = vmatpush1.bf16.msra.mxu0 %v582
  %775 = vmatprep.subr.bf16.mxu0 0
  %776 = vmatpush2.bf16.msra.mxu0 %v597
  %777 = vmatprep.subr.bf16.mxu0 0
  %778 = vmatpush2.bf16.msra.mxu0 %v596
  %779 = vmatprep.subr.bf16.mxu0 0
  %780 = vmatpush2.bf16.msra.mxu0 %v595
  %781 = vmatprep.subr.bf16.mxu0 0
  %782 = vmatpush2.bf16.msra.mxu0 %v594
  %783 = vmatprep.subr.bf16.mxu0 0
  %784 = vmatpush2.bf16.msra.mxu0 %v593
  %785 = vmatprep.subr.bf16.mxu0 0
  %786 = vmatpush2.bf16.msra.mxu0 %v592
  %787 = vmatprep.subr.bf16.mxu0 0
  %788 = vmatpush2.bf16.msra.mxu0 %v591
  %789 = vmatprep.subr.bf16.mxu0 0
  %790 = vmatpush2.bf16.msra.mxu0 %v590
  %791 = vmatprep.mubr.bf16.mxu0 %v245
  %792 = vmatmul.mubr.bf16.gmra.mxu0 %v244
  %v793 = vpop.f32.mrf.mxu0
  %v794 = vadd.f32 %v745, %v793
  %v795 = vpop.f32.mrf.mxu0
  %v796 = vpop.f32.mrf.mxu0
  %v797 = vadd.f32 %v748, %v796
  %v798 = vpop.f32.mrf.mxu0
  %799 = vmatprep.mubr.bf16.mxu0 %v254
  %800 = vmatmul.mubr.bf16.gmra.mxu0 %v253
  %v801 = vpop.f32.mrf.mxu0
  %v802 = vadd.f32 %v753, %v801
  %v803 = vpop.f32.mrf.mxu0
  %v804 = vpop.f32.mrf.mxu0
  %v805 = vadd.f32 %v756, %v804
  %v806 = vpop.f32.mrf.mxu0
  %807 = vdwg.mxu0
  %808 = vmatprep.subr.bf16.mxu0 0
  %809 = vmatpush1.bf16.msra.mxu0 %v605
  %810 = vmatprep.subr.bf16.mxu0 0
  %811 = vmatpush1.bf16.msra.mxu0 %v604
  %812 = vmatprep.subr.bf16.mxu0 0
  %813 = vmatpush1.bf16.msra.mxu0 %v603
  %814 = vmatprep.subr.bf16.mxu0 0
  %815 = vmatpush1.bf16.msra.mxu0 %v602
  %816 = vmatprep.subr.bf16.mxu0 0
  %817 = vmatpush1.bf16.msra.mxu0 %v601
  %818 = vmatprep.subr.bf16.mxu0 0
  %819 = vmatpush1.bf16.msra.mxu0 %v600
  %820 = vmatprep.subr.bf16.mxu0 0
  %821 = vmatpush1.bf16.msra.mxu0 %v599
  %822 = vmatprep.subr.bf16.mxu0 0
  %823 = vmatpush1.bf16.msra.mxu0 %v598
  %824 = vmatprep.subr.bf16.mxu0 0
  %825 = vmatpush2.bf16.msra.mxu0 %v613
  %826 = vmatprep.subr.bf16.mxu0 0
  %827 = vmatpush2.bf16.msra.mxu0 %v612
  %828 = vmatprep.subr.bf16.mxu0 0
  %829 = vmatpush2.bf16.msra.mxu0 %v611
  %830 = vmatprep.subr.bf16.mxu0 0
  %831 = vmatpush2.bf16.msra.mxu0 %v610
  %832 = vmatprep.subr.bf16.mxu0 0
  %833 = vmatpush2.bf16.msra.mxu0 %v609
  %834 = vmatprep.subr.bf16.mxu0 0
  %835 = vmatpush2.bf16.msra.mxu0 %v608
  %836 = vmatprep.subr.bf16.mxu0 0
  %837 = vmatpush2.bf16.msra.mxu0 %v607
  %838 = vmatprep.subr.bf16.mxu0 0
  %839 = vmatpush2.bf16.msra.mxu0 %v606
  %840 = vmatprep.mubr.bf16.mxu0 %v247
  %841 = vmatmul.mubr.bf16.gmra.mxu0 %v246
  %v842 = vpop.f32.mrf.mxu0
  %v843 = vadd.f32 %v794, %v842
  %v844 = vpop.f32.mrf.mxu0
  %v845 = vpop.f32.mrf.mxu0
  %v846 = vadd.f32 %v797, %v845
  %v847 = vpop.f32.mrf.mxu0
  %848 = vmatprep.mubr.bf16.mxu0 %v256
  %849 = vmatmul.mubr.bf16.gmra.mxu0 %v255
  %v850 = vpop.f32.mrf.mxu0
  %v851 = vadd.f32 %v802, %v850
  %v852 = vpop.f32.mrf.mxu0
  %v853 = vpop.f32.mrf.mxu0
  %v854 = vadd.f32 %v805, %v853
  %v855 = vpop.f32.mrf.mxu0
  %856 = vdwg.mxu0
  %857 = vmatprep.subr.bf16.mxu0 0
  %858 = vmatpush1.bf16.msra.mxu0 %v621
  %859 = vmatprep.subr.bf16.mxu0 0
  %860 = vmatpush1.bf16.msra.mxu0 %v620
  %861 = vmatprep.subr.bf16.mxu0 0
  %862 = vmatpush1.bf16.msra.mxu0 %v619
  %863 = vmatprep.subr.bf16.mxu0 0
  %864 = vmatpush1.bf16.msra.mxu0 %v618
  %865 = vmatprep.subr.bf16.mxu0 0
  %866 = vmatpush1.bf16.msra.mxu0 %v617
  %867 = vmatprep.subr.bf16.mxu0 0
  %868 = vmatpush1.bf16.msra.mxu0 %v616
  %869 = vmatprep.subr.bf16.mxu0 0
  %870 = vmatpush1.bf16.msra.mxu0 %v615
  %871 = vmatprep.subr.bf16.mxu0 0
  %872 = vmatpush1.bf16.msra.mxu0 %v614
  %873 = vmatprep.subr.bf16.mxu0 0
  %874 = vmatpush2.bf16.msra.mxu0 %v629
  %875 = vmatprep.subr.bf16.mxu0 0
  %876 = vmatpush2.bf16.msra.mxu0 %v628
  %877 = vmatprep.subr.bf16.mxu0 0
  %878 = vmatpush2.bf16.msra.mxu0 %v627
  %879 = vmatprep.subr.bf16.mxu0 0
  %880 = vmatpush2.bf16.msra.mxu0 %v626
  %881 = vmatprep.subr.bf16.mxu0 0
  %882 = vmatpush2.bf16.msra.mxu0 %v625
  %883 = vmatprep.subr.bf16.mxu0 0
  %884 = vmatpush2.bf16.msra.mxu0 %v624
  %885 = vmatprep.subr.bf16.mxu0 0
  %886 = vmatpush2.bf16.msra.mxu0 %v623
  %887 = vmatprep.subr.bf16.mxu0 0
  %888 = vmatpush2.bf16.msra.mxu0 %v622
  %889 = vmatprep.mubr.bf16.mxu0 %v249
  %890 = vmatmul.mubr.bf16.gmra.mxu0 %v248
  %v891 = vpop.f32.mrf.mxu0
  %v892 = vadd.f32 %v843, %v891
  %v893 = vpop.f32.mrf.mxu0
  %v894 = vpop.f32.mrf.mxu0
  %v895 = vadd.f32 %v846, %v894
  %v896 = vpop.f32.mrf.mxu0
  %897 = vmatprep.mubr.bf16.mxu0 %v258
  %898 = vmatmul.mubr.bf16.gmra.mxu0 %v257
  %v899 = vpop.f32.mrf.mxu0
  %v900 = vadd.f32 %v851, %v899
  %v901 = vpop.f32.mrf.mxu0
  %v902 = vpop.f32.mrf.mxu0
  %v903 = vadd.f32 %v854, %v902
  %v904 = vpop.f32.mrf.mxu0
  %905 = vdwg.mxu0
  %906 = vmatprep.subr.bf16.mxu0 0
  %907 = vmatpush1.bf16.msra.mxu0 %v637
  %908 = vmatprep.subr.bf16.mxu0 0
  %909 = vmatpush1.bf16.msra.mxu0 %v636
  %910 = vmatprep.subr.bf16.mxu0 0
  %911 = vmatpush1.bf16.msra.mxu0 %v635
  %912 = vmatprep.subr.bf16.mxu0 0
  %913 = vmatpush1.bf16.msra.mxu0 %v634
  %914 = vmatprep.subr.bf16.mxu0 0
  %915 = vmatpush1.bf16.msra.mxu0 %v633
  %916 = vmatprep.subr.bf16.mxu0 0
  %917 = vmatpush1.bf16.msra.mxu0 %v632
  %918 = vmatprep.subr.bf16.mxu0 0
  %919 = vmatpush1.bf16.msra.mxu0 %v631
  %920 = vmatprep.subr.bf16.mxu0 0
  %921 = vmatpush1.bf16.msra.mxu0 %v630
  %922 = vmatprep.subr.bf16.mxu0 0
  %923 = vmatpush2.bf16.msra.mxu0 0
  %924 = vmatprep.subr.bf16.mxu0 0
  %925 = vmatpush2.bf16.msra.mxu0 0
  %926 = vmatprep.subr.bf16.mxu0 0
  %927 = vmatpush2.bf16.msra.mxu0 0
  %928 = vmatprep.subr.bf16.mxu0 0
  %929 = vmatpush2.bf16.msra.mxu0 0
  %930 = vmatprep.subr.bf16.mxu0 0
  %931 = vmatpush2.bf16.msra.mxu0 0
  %932 = vmatprep.subr.bf16.mxu0 0
  %933 = vmatpush2.bf16.msra.mxu0 0
  %934 = vmatprep.subr.bf16.mxu0 0
  %935 = vmatpush2.bf16.msra.mxu0 0
  %936 = vmatprep.subr.bf16.mxu0 0
  %937 = vmatpush2.bf16.msra.mxu0 0
  %938 = vmatprep.mubr.bf16.mxu0 0
  %939 = vmatmul.mubr.bf16.gmra.mxu0 %v250
  %v940 = vpop.f32.mrf.mxu0
  %v941 = vadd.f32 %v892, %v940
  %v942 = vpop.f32.mrf.mxu0
  %v943 = vpop.f32.mrf.mxu0
  %v944 = vadd.f32 %v895, %v943
  %v945 = vpop.f32.mrf.mxu0
  %946 = vmatprep.mubr.bf16.mxu0 0
  %947 = vmatmul.mubr.bf16.gmra.mxu0 %v259
  %v948 = vpop.f32.mrf.mxu0
  %v949 = vadd.f32 %v900, %v948
  %v950 = vpop.f32.mrf.mxu0
  %v951 = vpop.f32.mrf.mxu0
  %v952 = vadd.f32 %v903, %v951
  %v953 = vpop.f32.mrf.mxu0
  %954 = vdwg.mxu0
  %v955 = vpack.c.bf16 %v944, %v941
  %v956 = vpack.c.bf16 %v952, %v949
  %v959 = vunpack.c.l.b16 %v955
  %v960 = vunpack.c.h.b16 %v955
  %v961 = vunpack.c.l.b16 %v956
  %v962 = vunpack.c.h.b16 %v956
  %v963 = vpack.c.b16 %v959, %v959
  %v964 = vpack.c.b16 %v960, %v960
  %v965 = vpack.c.b16 %v961, %v961
  %v966 = vpack.c.b16 %v962, %v962
  %971 = vst [vmem:[%s3] sm:$0xf] %v963
  %972 = vst [vmem:[%s3 + $0x4] sm:$0xf] %v964
  %973 = vst [vmem:[%s3 + $0x8] sm:$0xf] %v965
  %974 = vst [vmem:[%s3 + $0xc] sm:$0xf] %v966
  // Predicated region
  $region14: #{_lambda_.8} parent=0 // pred_check
    _
  $region15: #{_lambda_.8} parent=0 // pred_check_branch
    %976 = sbr.rel (0) target = $region17
  $region16: #{_lambda_.8} parent=0 // pred_region
    _
  $region17: #{_lambda_.8} parent=0 // pred_fallthru
    _
  // Predicated region
  $region18: #{_lambda_.8} parent=0 // pred_check
    _
  $region19: #{_lambda_.8} parent=0 // pred_check_branch
    %978 = sbr.rel (0) target = $region21
  $region20: #{_lambda_.8} parent=0 // pred_region
    _
  $region21: #{_lambda_.8} parent=0 // pred_fallthru
    _

// kernel: _lambda_.11
$region0: #{_lambda_.11}
  #allocation0 [shape = 'u32[]', space=smem, size = 0x4, offset = 0x4, fixed_abs, tag = 'smem constant byte address 0x4 - core index']
  #allocation1 [shape = 'u32[144,128]{1,0:T(1,128)}', space=vmem, size = 0x12000, scoped, tag = 'internal scratch']
  %s0 = inlined_call_operand.vmem [shape: bf16[2,3,3,128], index: 0, kind: input, shape index: {}]
  %s1 = inlined_call_operand.vmem [shape: bf16[2,3,3,128], index: 1, kind: input, shape index: {}]
  %s2 = inlined_call_operand.vmem [shape: bf16[2,3,3,128], index: 2, kind: input, shape index: {}]
  %s3 = inlined_call_operand.vmem [shape: bf16[2,3,3,128], index: 3, kind: input, shape index: {}]
  %s4 = inlined_call_operand.vmem [shape: f32[3,3,128], index: 4, kind: input, shape index: {}]
  %s5 = inlined_call_operand.vmem [shape: f32[1,128], index: 5, kind: input, shape index: {}]
  %s6 = inlined_call_operand.vmem [shape: bf16[2,2,2,128], index: 6, kind: output, shape index: {}]
  %s7 = sld [smem:[#allocation0]]
  $region57: #{_lambda_.11} parent=0
    _
  %s9 = ssub.s32 1, %s7
  %s10 = scalar_select 0, %s9, %s7
  loop: start=0, step=1, limit=4
  $region2: #{_lambda_.11} parent=0 // loop_pre_header
    _
  $region3: #{_lambda_.11} parent=0 // loop_header
    %s12 = sphi 0, %s16
    %p13 = scmp.ge.s32.totalorder %s12, 4
    %s19 = sphi 0, %s31
    %s20 = sphi 0, %s27
    %s21 = sphi 0, %s19
    %s22 = sphi 0, %s20
    %s23 = sphi 0, %s21
    %s24 = sphi 0, %s22
    %s36 = sphi 0, %s38
    %s39 = sphi 0, %s36
    %s40 = sphi 0, %s39
    %s56 = sphi 0, %s40
    %s64 = sphi 0, %s66
    %s67 = sphi 0, %s64
    %s68 = sphi 0, %s67
    %s84 = sphi 0, %s68
    %s92 = sphi 0, %s94
    %s95 = sphi 0, %s92
    %s96 = sphi 0, %s95
    %s112 = sphi 0, %s96
    %s120 = sphi 0, %s122
    %s123 = sphi 0, %s120
    %s124 = sphi 0, %s123
    %s140 = sphi 0, %s124
    %s146 = sphi 0, %s148
    %s149 = sphi 0, %s146
    %s150 = sphi 0, %s149
    %s166 = sphi 0, %s150
    %s172 = sphi 0, %s174
    %s175 = sphi 0, %s172
    %s176 = sphi 0, %s175
    %s192 = sphi 0, %s176
    %s200 = sphi 0, %s202
    %s203 = sphi 0, %s200
    %s204 = sphi 0, %s203
    %s220 = sphi 0, %s204
  $region4: #{_lambda_.11} parent=0 // loop_header_branch
    %15 = sbr.rel (%p13) target = $region8
  $region5: #{_lambda_.11} parent=0 // loop_body
    %s17 = ssub.s32 %s12, 1
    %s18 = ssub.s32 %s12, 2
    %s25 = sadd.s32 1, %s20
    %p26 = scmp.ge.s32.totalorder %s25, 1
    %s27 = scalar_select %p26, 0, %s25
    %s28 = sadd.s32 1, %s19
    %s29 = scalar_select %p26, %s28, %s19
    %p30 = scmp.ge.s32.totalorder %s29, 2
    %s31 = scalar_select %p30, 0, %s29
    %s32 = ssub.s32 %s19, %s31
    %s33 = ssub.s32 %s20, %s27
    %s34 = sor.u32 %s32, %s33
    %p35 = scmp.eq.s32.totalorder %s34, 0
    %s37 = sadd.s32 %s36, 1
    %s38 = scalar_select %p35, %s36, %s37
    %p41 = pneg %p35
    %p42 = scmp.eq.s32.totalorder %s12, 1
    %p43 = por %p41, %p42
    %p44 = scmp.ne.s32.totalorder %s36, %s39
    %p45 = scmp.eq.s32.totalorder %s12, 0
    %p46 = por %p44, %p45
    %p47 = scmp.ne.s32.totalorder %s36, %s39
    %p48 = scmp.eq.s32.totalorder %s17, 1
    %p49 = por %p47, %p48
    %p50 = scmp.ne.s32.totalorder %s39, %s40
    %p51 = scmp.eq.s32.totalorder %s17, 0
    %p52 = por %p50, %p51
    %p53 = scmp.ne.s32.totalorder %s39, %s40
    %p54 = scmp.eq.s32.totalorder %s18, 1
    %p55 = por %p53, %p54
    %p57 = scmp.ne.s32.totalorder %s40, %s56
    %p58 = scmp.eq.s32.totalorder %s18, 0
    %p59 = por %p57, %p58
    %s60 = ssub.s32 %s19, %s31
    %s61 = ssub.s32 %s20, %s27
    %s62 = sor.u32 %s60, %s61
    %p63 = scmp.eq.s32.totalorder %s62, 0
    %s65 = sadd.s32 %s64, 1
    %s66 = scalar_select %p63, %s64, %s65
    %p69 = pneg %p63
    %p70 = scmp.eq.s32.totalorder %s12, 1
    %p71 = por %p69, %p70
    %p72 = scmp.ne.s32.totalorder %s64, %s67
    %p73 = scmp.eq.s32.totalorder %s12, 0
    %p74 = por %p72, %p73
    %p75 = scmp.ne.s32.totalorder %s64, %s67
    %p76 = scmp.eq.s32.totalorder %s17, 1
    %p77 = por %p75, %p76
    %p78 = scmp.ne.s32.totalorder %s67, %s68
    %p79 = scmp.eq.s32.totalorder %s17, 0
    %p80 = por %p78, %p79
    %p81 = scmp.ne.s32.totalorder %s67, %s68
    %p82 = scmp.eq.s32.totalorder %s18, 1
    %p83 = por %p81, %p82
    %p85 = scmp.ne.s32.totalorder %s68, %s84
    %p86 = scmp.eq.s32.totalorder %s18, 0
    %p87 = por %p85, %p86
    %s88 = ssub.s32 %s19, %s31
    %s89 = ssub.s32 %s20, %s27
    %s90 = sor.u32 %s88, %s89
    %p91 = scmp.eq.s32.totalorder %s90, 0
    %s93 = sadd.s32 %s92, 1
    %s94 = scalar_select %p91, %s92, %s93
    %p97 = pneg %p91
    %p98 = scmp.eq.s32.totalorder %s12, 1
    %p99 = por %p97, %p98
    %p100 = scmp.ne.s32.totalorder %s92, %s95
    %p101 = scmp.eq.s32.totalorder %s12, 0
    %p102 = por %p100, %p101
    %p103 = scmp.ne.s32.totalorder %s92, %s95
    %p104 = scmp.eq.s32.totalorder %s17, 1
    %p105 = por %p103, %p104
    %p106 = scmp.ne.s32.totalorder %s95, %s96
    %p107 = scmp.eq.s32.totalorder %s17, 0
    %p108 = por %p106, %p107
    %p109 = scmp.ne.s32.totalorder %s95, %s96
    %p110 = scmp.eq.s32.totalorder %s18, 1
    %p111 = por %p109, %p110
    %p113 = scmp.ne.s32.totalorder %s96, %s112
    %p114 = scmp.eq.s32.totalorder %s18, 0
    %p115 = por %p113, %p114
    %s116 = ssub.s32 %s19, %s31
    %s117 = ssub.s32 %s20, %s27
    %s118 = sor.u32 %s116, %s117
    %p119 = scmp.eq.s32.totalorder %s118, 0
    %s121 = sadd.s32 %s120, 1
    %s122 = scalar_select %p119, %s120, %s121
    %p125 = pneg %p119
    %p126 = scmp.eq.s32.totalorder %s12, 1
    %p127 = por %p125, %p126
    %p128 = scmp.ne.s32.totalorder %s120, %s123
    %p129 = scmp.eq.s32.totalorder %s12, 0
    %p130 = por %p128, %p129
    %p131 = scmp.ne.s32.totalorder %s120, %s123
    %p132 = scmp.eq.s32.totalorder %s17, 1
    %p133 = por %p131, %p132
    %p134 = scmp.ne.s32.totalorder %s123, %s124
    %p135 = scmp.eq.s32.totalorder %s17, 0
    %p136 = por %p134, %p135
    %p137 = scmp.ne.s32.totalorder %s123, %s124
    %p138 = scmp.eq.s32.totalorder %s18, 1
    %p139 = por %p137, %p138
    %p141 = scmp.ne.s32.totalorder %s124, %s140
    %p142 = scmp.eq.s32.totalorder %s18, 0
    %p143 = por %p141, %p142
    %s144 = ssub.s32 %s20, %s27
    %p145 = scmp.eq.s32.totalorder %s144, 0
    %s147 = sadd.s32 %s146, 1
    %s148 = scalar_select %p145, %s146, %s147
    %p151 = pneg %p145
    %p152 = scmp.eq.s32.totalorder %s12, 1
    %p153 = por %p151, %p152
    %p154 = scmp.ne.s32.totalorder %s146, %s149
    %p155 = scmp.eq.s32.totalorder %s12, 0
    %p156 = por %p154, %p155
    %p157 = scmp.ne.s32.totalorder %s146, %s149
    %p158 = scmp.eq.s32.totalorder %s17, 1
    %p159 = por %p157, %p158
    %p160 = scmp.ne.s32.totalorder %s149, %s150
    %p161 = scmp.eq.s32.totalorder %s17, 0
    %p162 = por %p160, %p161
    %p163 = scmp.ne.s32.totalorder %s149, %s150
    %p164 = scmp.eq.s32.totalorder %s18, 1
    %p165 = por %p163, %p164
    %p167 = scmp.ne.s32.totalorder %s150, %s166
    %p168 = scmp.eq.s32.totalorder %s18, 0
    %p169 = por %p167, %p168
    %s170 = ssub.s32 %s20, %s27
    %p171 = scmp.eq.s32.totalorder %s170, 0
    %s173 = sadd.s32 %s172, 1
    %s174 = scalar_select %p171, %s172, %s173
    %p177 = pneg %p171
    %p178 = scmp.eq.s32.totalorder %s12, 1
    %p179 = por %p177, %p178
    %p180 = scmp.ne.s32.totalorder %s172, %s175
    %p181 = scmp.eq.s32.totalorder %s12, 0
    %p182 = por %p180, %p181
    %p183 = scmp.ne.s32.totalorder %s172, %s175
    %p184 = scmp.eq.s32.totalorder %s17, 1
    %p185 = por %p183, %p184
    %p186 = scmp.ne.s32.totalorder %s175, %s176
    %p187 = scmp.eq.s32.totalorder %s17, 0
    %p188 = por %p186, %p187
    %p189 = scmp.ne.s32.totalorder %s175, %s176
    %p190 = scmp.eq.s32.totalorder %s18, 1
    %p191 = por %p189, %p190
    %p193 = scmp.ne.s32.totalorder %s176, %s192
    %p194 = scmp.eq.s32.totalorder %s18, 0
    %p195 = por %p193, %p194
    %s196 = ssub.s32 %s19, %s31
    %s197 = ssub.s32 %s20, %s27
    %s198 = sor.u32 %s196, %s197
    %p199 = scmp.eq.s32.totalorder %s198, 0
    %s201 = sadd.s32 %s200, 1
    %s202 = scalar_select %p199, %s200, %s201
    %p205 = pneg %p199
    %p206 = scmp.eq.s32.totalorder %s12, 1
    %p207 = por %p205, %p206
    %p208 = scmp.ne.s32.totalorder %s200, %s203
    %p209 = scmp.eq.s32.totalorder %s12, 0
    %p210 = por %p208, %p209
    %p211 = scmp.ne.s32.totalorder %s200, %s203
    %p212 = scmp.eq.s32.totalorder %s17, 1
    %p213 = por %p211, %p212
    %p214 = scmp.ne.s32.totalorder %s203, %s204
    %p215 = scmp.eq.s32.totalorder %s17, 0
    %p216 = por %p214, %p215
    %p217 = scmp.ne.s32.totalorder %s203, %s204
    %p218 = scmp.eq.s32.totalorder %s18, 1
    %p219 = por %p217, %p218
    %p221 = scmp.ne.s32.totalorder %s204, %s220
    %p222 = scmp.eq.s32.totalorder %s18, 0
    %p223 = por %p221, %p222
    %p224 = scmp.le.s32.totalorder 1, %s12
    %p225 = scmp.lt.s32.totalorder %s12, 3
    %p226 = pnand %p224, %p225
    %p227 = pneg %p226
    // Predicated region
    $region9: #{_lambda_.11} parent=5 // pred_check
      _
    $region10: #{_lambda_.11} parent=5 // pred_check_branch
      %229 = sbr.rel (%p226) target = $region12
    $region11: #{_lambda_.11} parent=5 // pred_region
      %s230 = ssub.s32 %s12, 1
      // Predicated region
      $region13: #{_lambda_.11} parent=11 // pred_check
        %p231 = pneg %p162
      $region14: #{_lambda_.11} parent=11 // pred_check_branch
        %233 = sbr.rel (%p231) target = $region16
      $region15: #{_lambda_.11} parent=11 // pred_region
        %p234 = scmp.lt.s32.totalorder %s22, 0
        %s235 = scalar_select %p234, %s22, 0
        %s236 = smul.addr %s235, 4
        %s237 = scalar_lea.vmem %s4, %s236
      $region16: #{_lambda_.11} parent=11 // pred_fallthru
        _
      // Predicated region
      $region17: #{_lambda_.11} parent=11 // pred_check
        %p238 = pneg %p188
      $region18: #{_lambda_.11} parent=11 // pred_check_branch
        %240 = sbr.rel (%p238) target = $region20
      $region19: #{_lambda_.11} parent=11 // pred_region
        %p241 = scmp.lt.s32.totalorder %s22, 0
        %s242 = scalar_select %p241, %s22, 0
        %s243 = scalar_lea.vmem %s5, %s242
      $region20: #{_lambda_.11} parent=11 // pred_fallthru
        _
    $region12: #{_lambda_.11} parent=5 // pred_fallthru
      _
    %p244 = scmp.lt.s32.totalorder %s12, 2
    // Predicated region
    $region21: #{_lambda_.11} parent=5 // pred_check
      %p245 = pneg %p244
    $region22: #{_lambda_.11} parent=5 // pred_check_branch
      %247 = sbr.rel (%p245) target = $region24
    $region23: #{_lambda_.11} parent=5 // pred_region
      // Predicated region
      $region25: #{_lambda_.11} parent=23 // pred_check
        %p248 = pneg %p46
      $region26: #{_lambda_.11} parent=23 // pred_check_branch
        %250 = sbr.rel (%p248) target = $region28
      $region27: #{_lambda_.11} parent=23 // pred_region
        %p251 = scmp.lt.s32.totalorder %s19, 1
        %s252 = scalar_select %p251, %s19, 1
        %p253 = scmp.lt.s32.totalorder %s20, 0
        %s254 = scalar_select %p253, %s20, 0
        %s255 = smul.addr %s252, 3
        %s256 = sadd.s32 %s254, %s255
        %s257 = smul.addr %s256, 2
        %s258 = scalar_lea.vmem %s0, %s257
      $region28: #{_lambda_.11} parent=23 // pred_fallthru
        _
      // Predicated region
      $region29: #{_lambda_.11} parent=23 // pred_check
        %p259 = pneg %p74
      $region30: #{_lambda_.11} parent=23 // pred_check_branch
        %261 = sbr.rel (%p259) target = $region32
      $region31: #{_lambda_.11} parent=23 // pred_region
        %p262 = scmp.lt.s32.totalorder %s19, 1
        %s263 = scalar_select %p262, %s19, 1
        %p264 = scmp.lt.s32.totalorder %s20, 0
        %s265 = scalar_select %p264, %s20, 0
        %s266 = smul.addr %s263, 3
        %s267 = sadd.s32 %s265, %s266
        %s268 = smul.addr %s267, 2
        %s269 = scalar_lea.vmem %s1, %s268
      $region32: #{_lambda_.11} parent=23 // pred_fallthru
        _
      // Predicated region
      $region33: #{_lambda_.11} parent=23 // pred_check
        %p270 = pneg %p102
      $region34: #{_lambda_.11} parent=23 // pred_check_branch
        %272 = sbr.rel (%p270) target = $region36
      $region35: #{_lambda_.11} parent=23 // pred_region
        %p273 = scmp.lt.s32.totalorder %s19, 1
        %s274 = scalar_select %p273, %s19, 1
        %p275 = scmp.lt.s32.totalorder %s20, 0
        %s276 = scalar_select %p275, %s20, 0
        %s277 = smul.addr %s274, 3
        %s278 = sadd.s32 %s276, %s277
        %s279 = smul.addr %s278, 2
        %s280 = scalar_lea.vmem %s2, %s279
      $region36: #{_lambda_.11} parent=23 // pred_fallthru
        _
      // Predicated region
      $region37: #{_lambda_.11} parent=23 // pred_check
        %p281 = pneg %p130
      $region38: #{_lambda_.11} parent=23 // pred_check_branch
        %283 = sbr.rel (%p281) target = $region40
      $region39: #{_lambda_.11} parent=23 // pred_region
        %p284 = scmp.lt.s32.totalorder %s19, 1
        %s285 = scalar_select %p284, %s19, 1
        %p286 = scmp.lt.s32.totalorder %s20, 0
        %s287 = scalar_select %p286, %s20, 0
        %s288 = smul.addr %s285, 3
        %s289 = sadd.s32 %s287, %s288
        %s290 = smul.addr %s289, 2
        %s291 = scalar_lea.vmem %s3, %s290
      $region40: #{_lambda_.11} parent=23 // pred_fallthru
        _
    $region24: #{_lambda_.11} parent=5 // pred_fallthru
      _
    %p292 = scmp.le.s32.totalorder 1, %s12
    %p293 = scmp.lt.s32.totalorder %s12, 3
    %p294 = pnand %p292, %p293
    %p295 = pneg %p294
    // Predicated region
    $region41: #{_lambda_.11} parent=5 // pred_check
      _
    $region42: #{_lambda_.11} parent=5 // pred_check_branch
      %297 = sbr.rel (%p294) target = $region44
    $region43: #{_lambda_.11} parent=5 // pred_region
      %s298 = ssub.s32 %s12, 1
      %p299 = scmp.lt.s32.totalorder %s21, 1
      %s300 = scalar_select %p299, %s21, 1
      %p301 = scmp.lt.s32.totalorder %s22, 0
      %s302 = scalar_select %p301, %s22, 0
      %s303 = smul.addr %s300, 3
      %s304 = sadd.s32 %s302, %s303
      %s305 = smul.addr %s304, 2
      %s306 = scalar_lea.vmem %s0, %s305
      %p307 = pneg %p52
      %p308 = pneg %p49
      %p309 = scmp.lt.s32.totalorder %s21, 1
      %s310 = scalar_select %p309, %s21, 1
      %p311 = scmp.lt.s32.totalorder %s22, 0
      %s312 = scalar_select %p311, %s22, 0
      %s313 = smul.addr %s310, 3
      %s314 = sadd.s32 %s312, %s313
      %s315 = smul.addr %s314, 2
      %s316 = scalar_lea.vmem %s1, %s315
      %p317 = pneg %p80
      %p318 = pneg %p77
      %p319 = scmp.lt.s32.totalorder %s21, 1
      %s320 = scalar_select %p319, %s21, 1
      %p321 = scmp.lt.s32.totalorder %s22, 0
      %s322 = scalar_select %p321, %s22, 0
      %s323 = smul.addr %s320, 3
      %s324 = sadd.s32 %s322, %s323
      %s325 = smul.addr %s324, 2
      %s326 = scalar_lea.vmem %s2, %s325
      %p327 = pneg %p108
      %p328 = pneg %p105
      %p329 = scmp.lt.s32.totalorder %s21, 1
      %s330 = scalar_select %p329, %s21, 1
      %p331 = scmp.lt.s32.totalorder %s22, 0
      %s332 = scalar_select %p331, %s22, 0
      %s333 = smul.addr %s330, 3
      %s334 = sadd.s32 %s332, %s333
      %s335 = smul.addr %s334, 2
      %s336 = scalar_lea.vmem %s3, %s335
      %p337 = pneg %p136
      %p338 = pneg %p133
      %p339 = scmp.lt.s32.totalorder %s22, 0
      %s340 = scalar_select %p339, %s22, 0
      %s341 = smul.addr %s340, 4
      %s342 = scalar_lea.vmem %s4, %s341
      %p343 = pneg %p162
      %p344 = pneg %p159
      %p345 = scmp.lt.s32.totalorder %s22, 0
      %s346 = scalar_select %p345, %s22, 0
      %s347 = scalar_lea.vmem %s5, %s346
      %p348 = pneg %p188
      %p349 = pneg %p185
      %p350 = pneg %p216
      %p351 = pneg %p213
      %p352 = scmp.lt.s32.totalorder %s21, 1
      %s353 = scalar_select %p352, %s21, 1
      %p354 = scmp.lt.s32.totalorder %s22, 0
      %s355 = scalar_select %p354, %s22, 0
      %s356 = smul.addr %s353, 2
      %s357 = sadd.s32 %s355, %s356
      %s358 = scalar_lea.vmem %s6, %s357
      %p359 = scmp.lt.s32.totalorder %s21, 1
      %s360 = scalar_select %p359, %s21, 1
      %p361 = scmp.lt.s32.totalorder %s22, 0
      %s362 = scalar_select %p361, %s22, 0
      %s363 = smul.addr %s360, 3
      %s364 = sadd.s32 %s362, %s363
      %s365 = smul.addr %s364, 2
      %s366 = scalar_lea.vmem %s0, %s365
      %p367 = scmp.lt.s32.totalorder %s21, 1
      %s368 = scalar_select %p367, %s21, 1
      %p369 = scmp.lt.s32.totalorder %s22, 0
      %s370 = scalar_select %p369, %s22, 0
      %s371 = smul.addr %s368, 3
      %s372 = sadd.s32 %s370, %s371
      %s373 = smul.addr %s372, 2
      %s374 = scalar_lea.vmem %s1, %s373
      %p375 = scmp.lt.s32.totalorder %s21, 1
      %s376 = scalar_select %p375, %s21, 1
      %p377 = scmp.lt.s32.totalorder %s22, 0
      %s378 = scalar_select %p377, %s22, 0
      %s379 = smul.addr %s376, 3
      %s380 = sadd.s32 %s378, %s379
      %s381 = smul.addr %s380, 2
      %s382 = scalar_lea.vmem %s2, %s381
      %p383 = scmp.lt.s32.totalorder %s21, 1
      %s384 = scalar_select %p383, %s21, 1
      %p385 = scmp.lt.s32.totalorder %s22, 0
      %s386 = scalar_select %p385, %s22, 0
      %s387 = smul.addr %s384, 3
      %s388 = sadd.s32 %s386, %s387
      %s389 = smul.addr %s388, 2
      %s390 = scalar_lea.vmem %s3, %s389
      %p391 = scmp.lt.s32.totalorder %s22, 0
      %s392 = scalar_select %p391, %s22, 0
      %s393 = smul.addr %s392, 4
      %s394 = scalar_lea.vmem %s4, %s393
      %p395 = scmp.lt.s32.totalorder %s22, 0
      %s396 = scalar_select %p395, %s22, 0
      %s397 = scalar_lea.vmem %s5, %s396
      %p398 = scmp.lt.s32.totalorder %s21, 1
      %s399 = scalar_select %p398, %s21, 1
      %p400 = scmp.lt.s32.totalorder %s22, 0
      %s401 = scalar_select %p400, %s22, 0
      %s402 = smul.addr %s399, 2
      %s403 = sadd.s32 %s401, %s402
      %s404 = scalar_lea.vmem %s6, %s403
      %v405 = vld [vmem:[%s366] sm:$0x3]
      %v406 = vld [vmem:[%s366 + $0x2] sm:$0x3]
      %v407 = vld [vmem:[%s366 + $0x4] sm:$0x3]
      %v408 = vld [vmem:[%s374] sm:$0x3]
      %v409 = vld [vmem:[%s374 + $0x2] sm:$0x3]
      %v410 = vld [vmem:[%s374 + $0x4] sm:$0x3]
      %v411 = vld [vmem:[%s382] sm:$0x3]
      %v412 = vld [vmem:[%s382 + $0x2] sm:$0x3]
      %v413 = vld [vmem:[%s390] sm:$0x3]
      %v414 = vld [vmem:[%s390 + $0x2] sm:$0x3]
      %v415 = vunpack.c.l.bf16 %v405
      %v416 = vunpack.c.l.bf16 %v406
      %v417 = vld [vmem:[%s394] sm:$0x1]
      %v418 = vlaneseq
      %v419 = vshrl.u32 %v418, 7
      %v420 = vsub.s32 0, %v419
      %v421 = vrot.slane %v417, %v420
      %v422 = vmul.f32 %v415, %v421
      %v423 = vmul.f32 %v416, %v421
      %v424 = vadd.f32 %v422, 0.0
      %v425 = vadd.f32 %v423, 0.0
      %v426 = vunpack.c.l.bf16 %v408
      %v427 = vunpack.c.l.bf16 %v409
      %v428 = vld [vmem:[%s394 + $0x1] sm:$0x1]
      %v429 = vlaneseq
      %v430 = vshrl.u32 %v429, 7
      %v431 = vsub.s32 0, %v430
      %v432 = vrot.slane %v428, %v431
      %v433 = vmul.f32 %v426, %v432
      %v434 = vmul.f32 %v427, %v432
      %v435 = vadd.f32 %v424, %v433
      %v436 = vadd.f32 %v425, %v434
      %v437 = vld [vmem:[%s394 + $0x2] sm:$0x1]
      %v438 = vlaneseq
      %v439 = vshrl.u32 %v438, 7
      %v440 = vsub.s32 0, %v439
      %v441 = vrot.slane %v437, %v440
      %v442 = vmul.f32 %v415, %v441
      %v443 = vmul.f32 %v416, %v441
      %v446 = vrot.slane %v442, 5
      %v447 = vrot.slane %v446, 4
      %v448 = vrot.slane %v443, 5
      %v449 = vrot.slane %v448, 4
      %v452 = vadd.f32 %v435, %v447
      %v453 = vadd.f32 %v436, %v449
      %v454 = vunpack.c.l.bf16 %v411
      %v455 = vunpack.c.l.bf16 %v412
      %s456 = scalar_lea.vmem %s394, 4
      %v457 = vld [vmem:[%s456] sm:$0x1]
      %v458 = vlaneseq
      %v459 = vshrl.u32 %v458, 7
      %v460 = vsub.s32 0, %v459
      %v461 = vrot.slane %v457, %v460
      %v462 = vmul.f32 %v454, %v461
      %v463 = vmul.f32 %v455, %v461
      %v464 = vadd.f32 %v452, %v462
      %v465 = vadd.f32 %v453, %v463
      %v466 = vunpack.c.l.bf16 %v413
      %v467 = vunpack.c.l.bf16 %v414
      %v468 = vld [vmem:[%s456 + $0x1] sm:$0x1]
      %v469 = vlaneseq
      %v470 = vshrl.u32 %v469, 7
      %v471 = vsub.s32 0, %v470
      %v472 = vrot.slane %v468, %v471
      %v473 = vmul.f32 %v466, %v472
      %v474 = vmul.f32 %v467, %v472
      %v475 = vadd.f32 %v464, %v473
      %v476 = vadd.f32 %v465, %v474
      %v477 = vld [vmem:[%s456 + $0x2] sm:$0x1]
      %v478 = vlaneseq
      %v479 = vshrl.u32 %v478, 7
      %v480 = vsub.s32 0, %v479
      %v481 = vrot.slane %v477, %v480
      %v482 = vmul.f32 %v454, %v481
      %v483 = vmul.f32 %v455, %v481
      %v486 = vrot.slane %v482, 5
      %v487 = vrot.slane %v486, 4
      %v488 = vrot.slane %v483, 5
      %v489 = vrot.slane %v488, 4
      %v492 = vadd.f32 %v475, %v487
      %v493 = vadd.f32 %v476, %v489
      %v494 = vunpack.c.l.bf16 %v407
      %s495 = scalar_lea.vmem %s394, 8
      %v496 = vld [vmem:[%s495] sm:$0x1]
      %v497 = vlaneseq
      %v498 = vshrl.u32 %v497, 7
      %v499 = vsub.s32 0, %v498
      %v500 = vrot.slane %v496, %v499
      %v501 = vmul.f32 %v416, %v500
      %v502 = vmul.f32 %v494, %v500
      %v503 = vadd.f32 %v492, %v501
      %v504 = vadd.f32 %v493, %v502
      %v505 = vunpack.c.l.bf16 %v410
      %v506 = vld [vmem:[%s495 + $0x1] sm:$0x1]
      %v507 = vlaneseq
      %v508 = vshrl.u32 %v507, 7
      %v509 = vsub.s32 0, %v508
      %v510 = vrot.slane %v506, %v509
      %v511 = vmul.f32 %v427, %v510
      %v512 = vmul.f32 %v505, %v510
      %v513 = vadd.f32 %v503, %v511
      %v514 = vadd.f32 %v504, %v512
      %v515 = vld [vmem:[%s495 + $0x2] sm:$0x1]
      %v516 = vlaneseq
      %v517 = vshrl.u32 %v516, 7
      %v518 = vsub.s32 0, %v517
      %v519 = vrot.slane %v515, %v518
      %v520 = vmul.f32 %v416, %v519
      %v521 = vmul.f32 %v494, %v519
      %v524 = vrot.slane %v520, 5
      %v525 = vrot.slane %v524, 4
      %v526 = vrot.slane %v521, 5
      %v527 = vrot.slane %v526, 4
      %v530 = vadd.f32 %v513, %v525
      %v531 = vadd.f32 %v514, %v527
      %v532 = vld [vmem:[%s397] sm:$0x1]
      %v534 = vlaneseq
      %v535 = vshrl.u32 %v534, 7
      %v536 = vsub.s32 0, %v535
      %v537 = vrot.slane %v532, %v536
      %v539 = vadd.f32 %v530, %v537
      %v540 = vadd.f32 %v531, %v537
      %v541 = vpack.c.bf16 %v539, %v539
      %v542 = vpack.c.bf16 %v540, %v540
      %543 = vst [vmem:[%s404] sm:$0x1] %v541
      %544 = vst [vmem:[%s404 + $0x1] sm:$0x1] %v542
      %p545 = scmp.lt.s32.totalorder %s21, 1
      %s546 = scalar_select %p545, %s21, 1
      %p547 = scmp.lt.s32.totalorder %s22, 0
      %s548 = scalar_select %p547, %s22, 0
      %s549 = smul.addr %s546, 2
      %s550 = sadd.s32 %s548, %s549
      %s551 = scalar_lea.vmem %s6, %s550
      // Predicated region
      $region45: #{_lambda_.11} parent=43 // pred_check
        %p552 = pneg %p213
      $region46: #{_lambda_.11} parent=43 // pred_check_branch
        %554 = sbr.rel (%p552) target = $region48
      $region47: #{_lambda_.11} parent=43 // pred_region
        _
      $region48: #{_lambda_.11} parent=43 // pred_fallthru
        _
    $region44: #{_lambda_.11} parent=5 // pred_fallthru
      _
    %p555 = scmp.le.s32.totalorder 2, %s12
    // Predicated region
    $region49: #{_lambda_.11} parent=5 // pred_check
      %p556 = pneg %p555
    $region50: #{_lambda_.11} parent=5 // pred_check_branch
      %558 = sbr.rel (%p556) target = $region52
    $region51: #{_lambda_.11} parent=5 // pred_region
      %s559 = ssub.s32 %s12, 2
      // Predicated region
      $region53: #{_lambda_.11} parent=51 // pred_check
        %p560 = pneg %p219
      $region54: #{_lambda_.11} parent=51 // pred_check_branch
        %562 = sbr.rel (%p560) target = $region56
      $region55: #{_lambda_.11} parent=51 // pred_region
        %p563 = scmp.lt.s32.totalorder %s23, 1
        %s564 = scalar_select %p563, %s23, 1
        %p565 = scmp.lt.s32.totalorder %s24, 0
        %s566 = scalar_select %p565, %s24, 0
        %s567 = smul.addr %s564, 2
        %s568 = sadd.s32 %s566, %s567
        %s569 = scalar_lea.vmem %s6, %s568
      $region56: #{_lambda_.11} parent=51 // pred_fallthru
        _
    $region52: #{_lambda_.11} parent=5 // pred_fallthru
      _
  $region6: #{_lambda_.11} parent=0 // loop_footer
    %s16 = sadd.s32 1, %s12
  $region7: #{_lambda_.11} parent=0 // loop_footer_branch
    %11 = sbr.rel target = $region3
  $region8: #{_lambda_.11} parent=0 // loop_exit
    _

// kernel: _lambda_.12
$region0: #{_lambda_.12}
  #allocation0 [shape = 'u32[]', space=smem, size = 0x4, offset = 0x4, fixed_abs, tag = 'smem constant byte address 0x4 - core index']
  #allocation1 [shape = 'u32[144,128]{1,0:T(1,128)}', space=vmem, size = 0x12000, scoped, tag = 'internal scratch']
  %s0 = inlined_call_operand.vmem [shape: bf16[8,128], index: 0, kind: input, shape index: {}]
  %s1 = inlined_call_operand.vmem [shape: bf16[128,128], index: 1, kind: input, shape index: {}]
  %s2 = inlined_call_operand.vmem [shape: f32[1,128], index: 2, kind: input, shape index: {}, may-alias: {2,4,6}]
  %s3 = inlined_call_operand.vmem [shape: bf16[128,128], index: 3, kind: input, shape index: {}]
  %s4 = inlined_call_operand.vmem [shape: f32[1,128], index: 4, kind: input, shape index: {}, may-alias: {2,4,6}]
  %s5 = inlined_call_operand.vmem [shape: bf16[128,128], index: 5, kind: input, shape index: {}]
  %s6 = inlined_call_operand.vmem [shape: f32[1,128], index: 6, kind: input, shape index: {}, may-alias: {2,4,6}]
  %s7 = inlined_call_operand.vmem [shape: bf16[8,128], index: 7, kind: output, shape index: {}]
  %s8 = sld [smem:[#allocation0]]
  $region38: #{_lambda_.12} parent=0
    _
  %s10 = ssub.s32 1, %s8
  %s11 = scalar_select 0, %s10, %s8
  // Predicated region
  $region2: #{_lambda_.12} parent=0 // pred_check
    _
  $region3: #{_lambda_.12} parent=0 // pred_check_branch
    %13 = sbr.rel (0) target = $region5
  $region4: #{_lambda_.12} parent=0 // pred_region
    _
  $region5: #{_lambda_.12} parent=0 // pred_fallthru
    _
  // Predicated region
  $region6: #{_lambda_.12} parent=0 // pred_check
    _
  $region7: #{_lambda_.12} parent=0 // pred_check_branch
    %15 = sbr.rel (0) target = $region9
  $region8: #{_lambda_.12} parent=0 // pred_region
    _
  $region9: #{_lambda_.12} parent=0 // pred_fallthru
    _
  // Predicated region
  $region10: #{_lambda_.12} parent=0 // pred_check
    _
  $region11: #{_lambda_.12} parent=0 // pred_check_branch
    %17 = sbr.rel (0) target = $region13
  $region12: #{_lambda_.12} parent=0 // pred_region
    _
  $region13: #{_lambda_.12} parent=0 // pred_fallthru
    _
  // Predicated region
  $region14: #{_lambda_.12} parent=0 // pred_check
    _
  $region15: #{_lambda_.12} parent=0 // pred_check_branch
    %19 = sbr.rel (0) target = $region17
  $region16: #{_lambda_.12} parent=0 // pred_region
    _
  $region17: #{_lambda_.12} parent=0 // pred_fallthru
    _
  // Predicated region
  $region18: #{_lambda_.12} parent=0 // pred_check
    _
  $region19: #{_lambda_.12} parent=0 // pred_check_branch
    %21 = sbr.rel (0) target = $region21
  $region20: #{_lambda_.12} parent=0 // pred_region
    _
  $region21: #{_lambda_.12} parent=0 // pred_fallthru
    _
  // Predicated region
  $region22: #{_lambda_.12} parent=0 // pred_check
    _
  $region23: #{_lambda_.12} parent=0 // pred_check_branch
    %23 = sbr.rel (0) target = $region25
  $region24: #{_lambda_.12} parent=0 // pred_region
    _
  $region25: #{_lambda_.12} parent=0 // pred_fallthru
    _
  // Predicated region
  $region26: #{_lambda_.12} parent=0 // pred_check
    _
  $region27: #{_lambda_.12} parent=0 // pred_check_branch
    %25 = sbr.rel (0) target = $region29
  $region28: #{_lambda_.12} parent=0 // pred_region
    _
  $region29: #{_lambda_.12} parent=0 // pred_fallthru
    _
  %v27 = vld [vmem:[%s0] sm:$0xf]
  %v28 = vld [vmem:[%s1] sm:$0xf]
  %v29 = vld [vmem:[%s1 + $0x4] sm:$0xf]
  %v30 = vld [vmem:[%s1 + $0x8] sm:$0xf]
  %v31 = vld [vmem:[%s1 + $0xc] sm:$0xf]
  %v32 = vld [vmem:[%s1 + $0x10] sm:$0xf]
  %v33 = vld [vmem:[%s1 + $0x14] sm:$0xf]
  %v34 = vld [vmem:[%s1 + $0x18] sm:$0xf]
  %v35 = vld [vmem:[%s1 + $0x1c] sm:$0xf]
  %v36 = vld [vmem:[%s1 + $0x20] sm:$0xf]
  %v37 = vld [vmem:[%s1 + $0x24] sm:$0xf]
  %v38 = vld [vmem:[%s1 + $0x28] sm:$0xf]
  %v39 = vld [vmem:[%s1 + $0x2c] sm:$0xf]
  %v40 = vld [vmem:[%s1 + $0x30] sm:$0xf]
  %v41 = vld [vmem:[%s1 + $0x34] sm:$0xf]
  %v42 = vld [vmem:[%s1 + $0x38] sm:$0xf]
  %v43 = vld [vmem:[%s1 + $0x3c] sm:$0xf]
  %v44 = vld [vmem:[%s2] sm:$0x1]
  %v46 = vlaneseq
  %v47 = vshrl.u32 %v46, 7
  %v48 = vsub.s32 0, %v47
  %v49 = vrot.slane %v44, %v48
  %v67 = vunpack.c.l.b16 %v28
  %v68 = vunpack.c.l.b16 %v29
  %v69 = vunpack.c.l.b16 %v30
  %v70 = vunpack.c.l.b16 %v31
  %v71 = vunpack.c.l.b16 %v32
  %v72 = vunpack.c.l.b16 %v33
  %v73 = vunpack.c.l.b16 %v34
  %v74 = vunpack.c.l.b16 %v35
  %v75 = vunpack.c.l.b16 %v36
  %v76 = vunpack.c.l.b16 %v37
  %v77 = vunpack.c.l.b16 %v38
  %v78 = vunpack.c.l.b16 %v39
  %v79 = vunpack.c.l.b16 %v40
  %v80 = vunpack.c.l.b16 %v41
  %v81 = vunpack.c.l.b16 %v42
  %v82 = vunpack.c.l.b16 %v43
  %v83 = vpack.c.b16 %v68, %v67
  %v84 = vpack.c.b16 %v70, %v69
  %v85 = vpack.c.b16 %v72, %v71
  %v86 = vpack.c.b16 %v74, %v73
  %v87 = vpack.c.b16 %v76, %v75
  %v88 = vpack.c.b16 %v78, %v77
  %v89 = vpack.c.b16 %v80, %v79
  %v90 = vpack.c.b16 %v82, %v81
  %99 = vmatprep.subr.bf16.mxu0 0
  %100 = vmatpush1.bf16.msra.mxu0 %v90
  %101 = vmatprep.subr.bf16.mxu0 0
  %102 = vmatpush1.bf16.msra.mxu0 %v89
  %103 = vmatprep.subr.bf16.mxu0 0
  %104 = vmatpush1.bf16.msra.mxu0 %v88
  %105 = vmatprep.subr.bf16.mxu0 0
  %106 = vmatpush1.bf16.msra.mxu0 %v87
  %107 = vmatprep.subr.bf16.mxu0 0
  %108 = vmatpush1.bf16.msra.mxu0 %v86
  %109 = vmatprep.subr.bf16.mxu0 0
  %110 = vmatpush1.bf16.msra.mxu0 %v85
  %111 = vmatprep.subr.bf16.mxu0 0
  %112 = vmatpush1.bf16.msra.mxu0 %v84
  %113 = vmatprep.subr.bf16.mxu0 0
  %114 = vmatpush1.bf16.msra.mxu0 %v83
  %115 = vmatprep.subr.bf16.mxu0 0
  %116 = vmatpush2.bf16.msra.mxu0 0
  %117 = vmatprep.subr.bf16.mxu0 0
  %118 = vmatpush2.bf16.msra.mxu0 0
  %119 = vmatprep.subr.bf16.mxu0 0
  %120 = vmatpush2.bf16.msra.mxu0 0
  %121 = vmatprep.subr.bf16.mxu0 0
  %122 = vmatpush2.bf16.msra.mxu0 0
  %123 = vmatprep.subr.bf16.mxu0 0
  %124 = vmatpush2.bf16.msra.mxu0 0
  %125 = vmatprep.subr.bf16.mxu0 0
  %126 = vmatpush2.bf16.msra.mxu0 0
  %127 = vmatprep.subr.bf16.mxu0 0
  %128 = vmatpush2.bf16.msra.mxu0 0
  %129 = vmatprep.subr.bf16.mxu0 0
  %130 = vmatpush2.bf16.msra.mxu0 0
  %131 = vmatprep.mubr.bf16.mxu0 0
  %132 = vmatmul.mubr.bf16.gmra.mxu0 %v27
  %v133 = vpop.f32.mrf.mxu0
  %v134 = vadd.f32 %v49, %v133
  %v135 = vpop.f32.mrf.mxu0
  %v136 = vpop.f32.mrf.mxu0
  %v137 = vpop.f32.mrf.mxu0
  %138 = vdwg.mxu0
  %v139 = vpack.c.bf16 %v134, %v134
  %v140 = vld [vmem:[%s3] sm:$0xf]
  %v141 = vld [vmem:[%s3 + $0x4] sm:$0xf]
  %v142 = vld [vmem:[%s3 + $0x8] sm:$0xf]
  %v143 = vld [vmem:[%s3 + $0xc] sm:$0xf]
  %v144 = vld [vmem:[%s3 + $0x10] sm:$0xf]
  %v145 = vld [vmem:[%s3 + $0x14] sm:$0xf]
  %v146 = vld [vmem:[%s3 + $0x18] sm:$0xf]
  %v147 = vld [vmem:[%s3 + $0x1c] sm:$0xf]
  %v148 = vld [vmem:[%s3 + $0x20] sm:$0xf]
  %v149 = vld [vmem:[%s3 + $0x24] sm:$0xf]
  %v150 = vld [vmem:[%s3 + $0x28] sm:$0xf]
  %v151 = vld [vmem:[%s3 + $0x2c] sm:$0xf]
  %v152 = vld [vmem:[%s3 + $0x30] sm:$0xf]
  %v153 = vld [vmem:[%s3 + $0x34] sm:$0xf]
  %v154 = vld [vmem:[%s3 + $0x38] sm:$0xf]
  %v155 = vld [vmem:[%s3 + $0x3c] sm:$0xf]
  %v156 = vld [vmem:[%s4] sm:$0x1]
  %v158 = vlaneseq
  %v159 = vshrl.u32 %v158, 7
  %v160 = vsub.s32 0, %v159
  %v161 = vrot.slane %v156, %v160
  %v179 = vunpack.c.l.b16 %v140
  %v180 = vunpack.c.l.b16 %v141
  %v181 = vunpack.c.l.b16 %v142
  %v182 = vunpack.c.l.b16 %v143
  %v183 = vunpack.c.l.b16 %v144
  %v184 = vunpack.c.l.b16 %v145
  %v185 = vunpack.c.l.b16 %v146
  %v186 = vunpack.c.l.b16 %v147
  %v187 = vunpack.c.l.b16 %v148
  %v188 = vunpack.c.l.b16 %v149
  %v189 = vunpack.c.l.b16 %v150
  %v190 = vunpack.c.l.b16 %v151
  %v191 = vunpack.c.l.b16 %v152
  %v192 = vunpack.c.l.b16 %v153
  %v193 = vunpack.c.l.b16 %v154
  %v194 = vunpack.c.l.b16 %v155
  %v195 = vpack.c.b16 %v180, %v179
  %v196 = vpack.c.b16 %v182, %v181
  %v197 = vpack.c.b16 %v184, %v183
  %v198 = vpack.c.b16 %v186, %v185
  %v199 = vpack.c.b16 %v188, %v187
  %v200 = vpack.c.b16 %v190, %v189
  %v201 = vpack.c.b16 %v192, %v191
  %v202 = vpack.c.b16 %v194, %v193
  %211 = vmatprep.subr.bf16.mxu0 0
  %212 = vmatpush1.bf16.msra.mxu0 %v202
  %213 = vmatprep.subr.bf16.mxu0 0
  %214 = vmatpush1.bf16.msra.mxu0 %v201
  %215 = vmatprep.subr.bf16.mxu0 0
  %216 = vmatpush1.bf16.msra.mxu0 %v200
  %217 = vmatprep.subr.bf16.mxu0 0
  %218 = vmatpush1.bf16.msra.mxu0 %v199
  %219 = vmatprep.subr.bf16.mxu0 0
  %220 = vmatpush1.bf16.msra.mxu0 %v198
  %221 = vmatprep.subr.bf16.mxu0 0
  %222 = vmatpush1.bf16.msra.mxu0 %v197
  %223 = vmatprep.subr.bf16.mxu0 0
  %224 = vmatpush1.bf16.msra.mxu0 %v196
  %225 = vmatprep.subr.bf16.mxu0 0
  %226 = vmatpush1.bf16.msra.mxu0 %v195
  %227 = vmatprep.subr.bf16.mxu0 0
  %228 = vmatpush2.bf16.msra.mxu0 0
  %229 = vmatprep.subr.bf16.mxu0 0
  %230 = vmatpush2.bf16.msra.mxu0 0
  %231 = vmatprep.subr.bf16.mxu0 0
  %232 = vmatpush2.bf16.msra.mxu0 0
  %233 = vmatprep.subr.bf16.mxu0 0
  %234 = vmatpush2.bf16.msra.mxu0 0
  %235 = vmatprep.subr.bf16.mxu0 0
  %236 = vmatpush2.bf16.msra.mxu0 0
  %237 = vmatprep.subr.bf16.mxu0 0
  %238 = vmatpush2.bf16.msra.mxu0 0
  %239 = vmatprep.subr.bf16.mxu0 0
  %240 = vmatpush2.bf16.msra.mxu0 0
  %241 = vmatprep.subr.bf16.mxu0 0
  %242 = vmatpush2.bf16.msra.mxu0 0
  %243 = vmatprep.mubr.bf16.mxu0 0
  %244 = vmatmul.mubr.bf16.gmra.mxu0 %v139
  %v245 = vpop.f32.mrf.mxu0
  %v246 = vadd.f32 %v161, %v245
  %v247 = vpop.f32.mrf.mxu0
  %v248 = vpop.f32.mrf.mxu0
  %v249 = vpop.f32.mrf.mxu0
  %250 = vdwg.mxu0
  %v251 = vmul.f32 %v246, 0.5
  %v252 = vmul.f32 %v246, 0.70710677
  %vm253 = vcmp.ge.f32.partialorder %v252, 0.0
  %v254 = vsel %vm253, 1.0, -1.0
  %v255 = vand.u32 2147483647, %v252
  %v256 = vmul.f32 %v255, 0.3275911
  %v257 = vadd.f32 %v256, 1.0
  %v258 = vrcp.pop %v257
  %v259 = vmul.f32 %v258, 1.0614054
  %v260 = vadd.f32 %v259, -1.4531521
  %v261 = vmul.f32 %v260, %v258
  %v262 = vadd.f32 %v261, 1.4214138
  %v263 = vmul.f32 %v262, %v258
  %v264 = vadd.f32 %v263, -0.28449672
  %v265 = vmul.f32 %v264, %v258
  %v266 = vadd.f32 %v265, 0.2548296
  %v267 = vmul.f32 %v266, %v258
  %v268 = vsub.f32 0.0, %v255
  %v269 = vmul.f32 %v268, %v255
  %v270 = vmul.f32 %v269, 1.442695
  %v271 = vpow.pop %v270
  %v272 = vmul.f32 %v267, %v271
  %v273 = vsub.f32 1.0, %v272
  %v274 = vmul.f32 %v254, %v273
  %v275 = vadd.f32 %v274, 1.0
  %v276 = vmul.f32 %v251, %v275
  %v277 = vpack.c.bf16 %v276, %v276
  %v278 = vld [vmem:[%s5] sm:$0xf]
  %v279 = vld [vmem:[%s5 + $0x4] sm:$0xf]
  %v280 = vld [vmem:[%s5 + $0x8] sm:$0xf]
  %v281 = vld [vmem:[%s5 + $0xc] sm:$0xf]
  %v282 = vld [vmem:[%s5 + $0x10] sm:$0xf]
  %v283 = vld [vmem:[%s5 + $0x14] sm:$0xf]
  %v284 = vld [vmem:[%s5 + $0x18] sm:$0xf]
  %v285 = vld [vmem:[%s5 + $0x1c] sm:$0xf]
  %v286 = vld [vmem:[%s5 + $0x20] sm:$0xf]
  %v287 = vld [vmem:[%s5 + $0x24] sm:$0xf]
  %v288 = vld [vmem:[%s5 + $0x28] sm:$0xf]
  %v289 = vld [vmem:[%s5 + $0x2c] sm:$0xf]
  %v290 = vld [vmem:[%s5 + $0x30] sm:$0xf]
  %v291 = vld [vmem:[%s5 + $0x34] sm:$0xf]
  %v292 = vld [vmem:[%s5 + $0x38] sm:$0xf]
  %v293 = vld [vmem:[%s5 + $0x3c] sm:$0xf]
  %v294 = vld [vmem:[%s6] sm:$0x1]
  %v296 = vlaneseq
  %v297 = vshrl.u32 %v296, 7
  %v298 = vsub.s32 0, %v297
  %v299 = vrot.slane %v294, %v298
  %v317 = vunpack.c.l.b16 %v278
  %v318 = vunpack.c.l.b16 %v279
  %v319 = vunpack.c.l.b16 %v280
  %v320 = vunpack.c.l.b16 %v281
  %v321 = vunpack.c.l.b16 %v282
  %v322 = vunpack.c.l.b16 %v283
  %v323 = vunpack.c.l.b16 %v284
  %v324 = vunpack.c.l.b16 %v285
  %v325 = vunpack.c.l.b16 %v286
  %v326 = vunpack.c.l.b16 %v287
  %v327 = vunpack.c.l.b16 %v288
  %v328 = vunpack.c.l.b16 %v289
  %v329 = vunpack.c.l.b16 %v290
  %v330 = vunpack.c.l.b16 %v291
  %v331 = vunpack.c.l.b16 %v292
  %v332 = vunpack.c.l.b16 %v293
  %v333 = vpack.c.b16 %v318, %v317
  %v334 = vpack.c.b16 %v320, %v319
  %v335 = vpack.c.b16 %v322, %v321
  %v336 = vpack.c.b16 %v324, %v323
  %v337 = vpack.c.b16 %v326, %v325
  %v338 = vpack.c.b16 %v328, %v327
  %v339 = vpack.c.b16 %v330, %v329
  %v340 = vpack.c.b16 %v332, %v331
  %349 = vmatprep.subr.bf16.mxu0 0
  %350 = vmatpush1.bf16.msra.mxu0 %v340
  %351 = vmatprep.subr.bf16.mxu0 0
  %352 = vmatpush1.bf16.msra.mxu0 %v339
  %353 = vmatprep.subr.bf16.mxu0 0
  %354 = vmatpush1.bf16.msra.mxu0 %v338
  %355 = vmatprep.subr.bf16.mxu0 0
  %356 = vmatpush1.bf16.msra.mxu0 %v337
  %357 = vmatprep.subr.bf16.mxu0 0
  %358 = vmatpush1.bf16.msra.mxu0 %v336
  %359 = vmatprep.subr.bf16.mxu0 0
  %360 = vmatpush1.bf16.msra.mxu0 %v335
  %361 = vmatprep.subr.bf16.mxu0 0
  %362 = vmatpush1.bf16.msra.mxu0 %v334
  %363 = vmatprep.subr.bf16.mxu0 0
  %364 = vmatpush1.bf16.msra.mxu0 %v333
  %365 = vmatprep.subr.bf16.mxu0 0
  %366 = vmatpush2.bf16.msra.mxu0 0
  %367 = vmatprep.subr.bf16.mxu0 0
  %368 = vmatpush2.bf16.msra.mxu0 0
  %369 = vmatprep.subr.bf16.mxu0 0
  %370 = vmatpush2.bf16.msra.mxu0 0
  %371 = vmatprep.subr.bf16.mxu0 0
  %372 = vmatpush2.bf16.msra.mxu0 0
  %373 = vmatprep.subr.bf16.mxu0 0
  %374 = vmatpush2.bf16.msra.mxu0 0
  %375 = vmatprep.subr.bf16.mxu0 0
  %376 = vmatpush2.bf16.msra.mxu0 0
  %377 = vmatprep.subr.bf16.mxu0 0
  %378 = vmatpush2.bf16.msra.mxu0 0
  %379 = vmatprep.subr.bf16.mxu0 0
  %380 = vmatpush2.bf16.msra.mxu0 0
  %381 = vmatprep.mubr.bf16.mxu0 0
  %382 = vmatmul.mubr.bf16.gmra.mxu0 %v277
  %v383 = vpop.f32.mrf.mxu0
  %v384 = vadd.f32 %v299, %v383
  %v385 = vpop.f32.mrf.mxu0
  %v386 = vpop.f32.mrf.mxu0
  %v387 = vpop.f32.mrf.mxu0
  %388 = vdwg.mxu0
  %v389 = vadd.f32 %v134, %v384
  %v390 = vpack.c.bf16 %v389, %v389
  %391 = vst [vmem:[%s7] sm:$0xf] %v390
  // Predicated region
  $region30: #{_lambda_.12} parent=0 // pred_check
    _
  $region31: #{_lambda_.12} parent=0 // pred_check_branch
    %393 = sbr.rel (0) target = $region33
  $region32: #{_lambda_.12} parent=0 // pred_region
    _
  $region33: #{_lambda_.12} parent=0 // pred_fallthru
    _
  // Predicated region
  $region34: #{_lambda_.12} parent=0 // pred_check
    _
  $region35: #{_lambda_.12} parent=0 // pred_check_branch
    %395 = sbr.rel (0) target = $region37
  $region36: #{_lambda_.12} parent=0 // pred_region
    _
  $region37: #{_lambda_.12} parent=0 // pred_fallthru
    _

// kernel: _lambda_.13
$region0: #{_lambda_.13}
  #allocation0 [shape = 'u32[]', space=smem, size = 0x4, offset = 0x4, fixed_abs, tag = 'smem constant byte address 0x4 - core index']
  #allocation1 [shape = 'u32[144,128]{1,0:T(1,128)}', space=vmem, size = 0x12000, scoped, tag = 'internal scratch']
  %s0 = inlined_call_operand.vmem [shape: bf16[2,4,128], index: 0, kind: input, shape index: {}]
  %s1 = inlined_call_operand.vmem [shape: bf16[128,128], index: 1, kind: input, shape index: {}]
  %s2 = inlined_call_operand.vmem [shape: f32[1,128], index: 2, kind: input, shape index: {}]
  %s3 = inlined_call_operand.hbm [shape: f32[2,128], index: 3, kind: output, shape index: {}]
  %s4 = sld [smem:[#allocation0]]
  $region22: #{_lambda_.13} parent=0
    _
  %s6 = ssub.s32 1, %s4
  %s7 = scalar_select 0, %s6, %s4
  $region1: #{_lambda_.13} parent=0
    #allocation2 [shape = 'u8[1024]{0}', space=vmem, size = 0x400, scoped, tag = 'output window, operand 0, single buffered']
    #allocation3 [shape = 's32[1]{0}', space=sflag, size = 0x4, scoped, tag = 'scoped memory for _lambda_.13']
    %8 = vsyncpa [#allocation3], 0
    // Predicated region
    $region2: #{_lambda_.13} parent=1 // pred_check
      _
    $region3: #{_lambda_.13} parent=1 // pred_check_branch
      %10 = sbr.rel (0) target = $region5
    $region4: #{_lambda_.13} parent=1 // pred_region
      _
    $region5: #{_lambda_.13} parent=1 // pred_fallthru
      _
    // Predicated region
    $region6: #{_lambda_.13} parent=1 // pred_check
      _
    $region7: #{_lambda_.13} parent=1 // pred_check_branch
      %12 = sbr.rel (0) target = $region9
    $region8: #{_lambda_.13} parent=1 // pred_region
      _
    $region9: #{_lambda_.13} parent=1 // pred_fallthru
      _
    // Predicated region
    $region10: #{_lambda_.13} parent=1 // pred_check
      _
    $region11: #{_lambda_.13} parent=1 // pred_check_branch
      %14 = sbr.rel (0) target = $region13
    $region12: #{_lambda_.13} parent=1 // pred_region
      _
    $region13: #{_lambda_.13} parent=1 // pred_fallthru
      _
    %v16 = vld [vmem:[%s0] sm:$0x3]
    %v17 = vld [vmem:[%s0 + $0x2] sm:$0x3]
    %v18 = vunpack.c.l.bf16 %v16
    %v19 = vunpack.c.l.bf16 %v17
    %vm20 = vcmask 1043456
    %v21 = vsel %vm20, %v18, 0.0
    %v22 = vrot.slane %v21, 4
    %v23 = vadd.f32 %v21, %v22
    %v24 = vrot.slane %v23, 2
    %v25 = vadd.f32 %v23, %v24
    %v26 = vrot.slane %v25, 1
    %v27 = vadd.f32 %v25, %v26
    %v28 = vsel %vm20, %v19, 0.0
    %v29 = vrot.slane %v28, 4
    %v30 = vadd.f32 %v28, %v29
    %v31 = vrot.slane %v30, 2
    %v32 = vadd.f32 %v30, %v31
    %v33 = vrot.slane %v32, 1
    %v34 = vadd.f32 %v32, %v33
    %v35 = vrcp.pop 4.0
    %v36 = vmul.f32 %v27, %v35
    %v37 = vmul.f32 %v34, %v35
    %v38 = vpack.c.bf16 %v36, %v36
    %v39 = vpack.c.bf16 %v37, %v37
    %v40 = vld [vmem:[%s1] sm:$0xf]
    %v41 = vld [vmem:[%s1 + $0x4] sm:$0xf]
    %v42 = vld [vmem:[%s1 + $0x8] sm:$0xf]
    %v43 = vld [vmem:[%s1 + $0xc] sm:$0xf]
    %v44 = vld [vmem:[%s1 + $0x10] sm:$0xf]
    %v45 = vld [vmem:[%s1 + $0x14] sm:$0xf]
    %v46 = vld [vmem:[%s1 + $0x18] sm:$0xf]
    %v47 = vld [vmem:[%s1 + $0x1c] sm:$0xf]
    %v48 = vld [vmem:[%s1 + $0x20] sm:$0xf]
    %v49 = vld [vmem:[%s1 + $0x24] sm:$0xf]
    %v50 = vld [vmem:[%s1 + $0x28] sm:$0xf]
    %v51 = vld [vmem:[%s1 + $0x2c] sm:$0xf]
    %v52 = vld [vmem:[%s1 + $0x30] sm:$0xf]
    %v53 = vld [vmem:[%s1 + $0x34] sm:$0xf]
    %v54 = vld [vmem:[%s1 + $0x38] sm:$0xf]
    %v55 = vld [vmem:[%s1 + $0x3c] sm:$0xf]
    %v56 = vld [vmem:[%s2] sm:$0x1]
    %v58 = vlaneseq
    %v59 = vshrl.u32 %v58, 7
    %v60 = vsub.s32 0, %v59
    %v61 = vrot.slane %v56, %v60
    %v65 = vunpack.c.l.b16 %v38
    %v66 = vunpack.c.l.b16 %v39
    %vm67 = vcmask 1041409
    %v68 = vsel %vm67, %v66, %v65
    %v69 = vpack.c.b16 %v68, %v68
    %v87 = vunpack.c.l.b16 %v40
    %v88 = vunpack.c.l.b16 %v41
    %v89 = vunpack.c.l.b16 %v42
    %v90 = vunpack.c.l.b16 %v43
    %v91 = vunpack.c.l.b16 %v44
    %v92 = vunpack.c.l.b16 %v45
    %v93 = vunpack.c.l.b16 %v46
    %v94 = vunpack.c.l.b16 %v47
    %v95 = vunpack.c.l.b16 %v48
    %v96 = vunpack.c.l.b16 %v49
    %v97 = vunpack.c.l.b16 %v50
    %v98 = vunpack.c.l.b16 %v51
    %v99 = vunpack.c.l.b16 %v52
    %v100 = vunpack.c.l.b16 %v53
    %v101 = vunpack.c.l.b16 %v54
    %v102 = vunpack.c.l.b16 %v55
    %v103 = vpack.c.b16 %v88, %v87
    %v104 = vpack.c.b16 %v90, %v89
    %v105 = vpack.c.b16 %v92, %v91
    %v106 = vpack.c.b16 %v94, %v93
    %v107 = vpack.c.b16 %v96, %v95
    %v108 = vpack.c.b16 %v98, %v97
    %v109 = vpack.c.b16 %v100, %v99
    %v110 = vpack.c.b16 %v102, %v101
    %119 = vmatprep.subr.bf16.mxu0 0
    %120 = vmatpush1.bf16.msra.mxu0 %v110
    %121 = vmatprep.subr.bf16.mxu0 0
    %122 = vmatpush1.bf16.msra.mxu0 %v109
    %123 = vmatprep.subr.bf16.mxu0 0
    %124 = vmatpush1.bf16.msra.mxu0 %v108
    %125 = vmatprep.subr.bf16.mxu0 0
    %126 = vmatpush1.bf16.msra.mxu0 %v107
    %127 = vmatprep.subr.bf16.mxu0 0
    %128 = vmatpush1.bf16.msra.mxu0 %v106
    %129 = vmatprep.subr.bf16.mxu0 0
    %130 = vmatpush1.bf16.msra.mxu0 %v105
    %131 = vmatprep.subr.bf16.mxu0 0
    %132 = vmatpush1.bf16.msra.mxu0 %v104
    %133 = vmatprep.subr.bf16.mxu0 0
    %134 = vmatpush1.bf16.msra.mxu0 %v103
    %135 = vmatprep.subr.bf16.mxu0 0
    %136 = vmatpush2.bf16.msra.mxu0 0
    %137 = vmatprep.subr.bf16.mxu0 0
    %138 = vmatpush2.bf16.msra.mxu0 0
    %139 = vmatprep.subr.bf16.mxu0 0
    %140 = vmatpush2.bf16.msra.mxu0 0
    %141 = vmatprep.subr.bf16.mxu0 0
    %142 = vmatpush2.bf16.msra.mxu0 0
    %143 = vmatprep.subr.bf16.mxu0 0
    %144 = vmatpush2.bf16.msra.mxu0 0
    %145 = vmatprep.subr.bf16.mxu0 0
    %146 = vmatpush2.bf16.msra.mxu0 0
    %147 = vmatprep.subr.bf16.mxu0 0
    %148 = vmatpush2.bf16.msra.mxu0 0
    %149 = vmatprep.subr.bf16.mxu0 0
    %150 = vmatpush2.bf16.msra.mxu0 0
    %151 = vmatprep.mubr.bf16.mxu0 0
    %152 = vmatmul.mubr.bf16.gmra.mxu0 %v69
    %v153 = vpop.f32.mrf.mxu0
    %v154 = vadd.f32 %v61, %v153
    %v155 = vpop.f32.mrf.mxu0
    %v156 = vpop.f32.mrf.mxu0
    %v157 = vpop.f32.mrf.mxu0
    %158 = vdwg.mxu0
    %159 = vst [vmem:[#allocation2] sm:$0x3] %v154
    // Predicated region
    $region14: #{_lambda_.13} parent=1 // pred_check
      _
    $region15: #{_lambda_.13} parent=1 // pred_check_branch
      %161 = sbr.rel (0) target = $region17
    $region16: #{_lambda_.13} parent=1 // pred_region
      %s163 = ssub.s32 32, 32
      %164 = vsyncadd [#allocation3], %s163
      %s166 = sshll.u32 [#allocation2], 4
      %s167 = int_to_ptr.vmem [resolvable:$true] %s166
      %169 = dma.vmem_to_hbm [thread:$0]  %s167, 32, %s3, [#allocation3]
    $region17: #{_lambda_.13} parent=1 // pred_fallthru
      _
    // Predicated region
    $region18: #{_lambda_.13} parent=1 // pred_check
      _
    $region19: #{_lambda_.13} parent=1 // pred_check_branch
      %171 = sbr.rel (0) target = $region21
    $region20: #{_lambda_.13} parent=1 // pred_region
      %172 = dma.done [#allocation3], 32
    $region21: #{_lambda_.13} parent=1 // pred_fallthru
      _
    %173 = vsyncpa [#allocation3], 1

</llo_original>
